<compile_context>
chip_gen: v6e
topology: v6e:2x2x1
jax: 0.10.0
libtpu: 0.0.40
codegen_flags: <defaults>
</compile_context>

<pallas_src>
import functools

import numpy as np
import jax
import jax.numpy as jnp
from jax.experimental import pallas as pl
from jax.experimental.pallas import tpu as pltpu


def _round_up(n, m):
    return (n + m - 1) // m * m


# ----------------------------------------------------------------------------
# Host-side planning: ConvTranspose2d(Cin, Cout, K, stride, padding) runs as
#     prod = W_all @ Xpad              # (K*K*Coutp, Cin) @ (Cin, batch*Hp*Hp)
#     acc[parity] = sum_taps prod[tap rows, off : off + Lw]
# with Xpad the zero-padded input flattened onto lanes and one accumulator per
# output parity (sub-pixel decomposition; PyTorch semantics Y = y*s - p + kh).
# ----------------------------------------------------------------------------
def _convt_plan(Cin, Cout, K, stride, padding, H_in, batch):
    H_out = (H_in - 1) * stride - 2 * padding + K
    assert H_out % stride == 0
    Hq = H_out // stride                      # sub-grid edge per parity

    raw, pad_amt = {}, 0
    for ry in range(stride):
        for rx in range(stride):
            taps = []
            for kh in range(K):
                if (ry + padding - kh) % stride:
                    continue
                oy = (ry + padding - kh) // stride
                for kw in range(K):
                    if (rx + padding - kw) % stride:
                        continue
                    ox = (rx + padding - kw) // stride
                    taps.append((kh * K + kw, oy, ox))
                    pad_amt = max(pad_amt, -oy, -ox)
            raw[(ry, rx)] = taps

    Hp = H_in + 2 * pad_amt
    parities, max_off = [], 0
    for ry in range(stride):
        for rx in range(stride):
            taps = []
            for t, oy, ox in raw[(ry, rx)]:
                oy, ox = oy + pad_amt, ox + pad_amt
                assert 0 <= oy <= Hp - Hq and 0 <= ox <= Hp - Hq
                off = oy * Hp + ox
                max_off = max(max_off, off)
                taps.append((t, off))
            parities.append(((ry, rx), taps))

    P = batch * Hp * Hp
    Lw = P - max_off
    assert (batch - 1) * Hp * Hp + (Hq - 1) * Hp + (Hq - 1) < Lw
    return dict(Cin=Cin, Cout=Cout, Coutp=_round_up(Cout, 8), K=K,
                stride=stride, padding=padding, H_in=H_in, H_out=H_out,
                Hq=Hq, Hp=Hp, pad_amt=pad_amt, P=P, Lw=Lw, max_off=max_off,
                parities=parities)


def _convt_weight(w, plan, cinp):
    """(Cin, Cout, K, K) PyTorch layout -> (K*K*Coutp, cinp) with Cout padded
    to 8 sublanes per tap (aligned tap slices) and Cin padded with zero
    columns to match the row count of the conv's input activation slab."""
    Cin, Cout, K, Coutp = plan["Cin"], plan["Cout"], plan["K"], plan["Coutp"]
    wkk = np.transpose(np.asarray(w, np.float32), (2, 3, 1, 0))
    wkk = wkk.reshape(K * K, Cout, Cin)
    wt = np.zeros((K * K * Coutp, cinp), np.float32)
    for t in range(K * K):
        wt[t * Coutp:t * Coutp + Cout, :Cin] = wkk[t]
    return wt


def _conv_bias(b, plan):
    bc = np.zeros((plan["Coutp"], 1), np.float32)
    bc[:plan["Cout"], 0] = np.asarray(b, np.float32)
    return bc


# ----------------------------------------------------------------------------
# In-kernel helpers
# ----------------------------------------------------------------------------
def _leaky(v):                                   # nn.LeakyReLU(0.2): mul + max
    return jnp.maximum(v, 0.2 * v)


def _conv_accumulate(xpad_bf16, w_all, plan, lw):
    """One bf16 MXU GEMM for all K*K taps, then per-parity shifted-slice adds.
    Returns a list over output parities of (Coutp, lw) f32 accumulators."""
    coutp = plan["Coutp"]
    prod = jnp.dot(w_all, xpad_bf16, preferred_element_type=jnp.float32)
    accs = []
    for _, taps in plan["parities"]:
        acc = None
        for t, off in taps:
            piece = prod[t * coutp:(t + 1) * coutp, off:off + lw]
            acc = piece if acc is None else acc + piece
        accs.append(acc)
    return accs


# ----------------------------------------------------------------------------
# The fused kernel
# ----------------------------------------------------------------------------
def _net3_kernel(x_ref, w1_ref, b1_ref, w2_ref, b2_ref, msk_ref, g_ref,
                 wc1_ref, bc1_ref, s1_ref, wc2_ref, bc2_ref, s3_ref,
                 wc3_ref, bc3_ref, o_ref, *, plan1, plan2, plan3, lw3_pad):
    f32, bf16 = jnp.float32, jnp.bfloat16

    # fc1 / fc2 (+ LeakyReLU): single-row (1, batch*feat) lane-dense layout,
    # block-diagonal bf16 weights, f32 accumulation / activation.
    h1 = _leaky(jnp.dot(x_ref[...].astype(bf16), w1_ref[...],
                        preferred_element_type=f32) + b1_ref[...])
    h2 = _leaky(jnp.dot(h1.astype(bf16), w2_ref[...],
                        preferred_element_type=f32) + b2_ref[...])

    # Lin_View + zero-pad of conv#1's frame: f32 channel mask + one 0/1
    # scatter GEMM (exact in bf16) -> xp1 (c4, batch*Hp1^2), channels-first.
    xp1 = jnp.dot((msk_ref[...] * h2).astype(bf16), g_ref[...],
                  preferred_element_type=f32)

    # ConvTranspose2d #1 (k3, s1) + LeakyReLU: one GEMM + 9 shifted adds.
    a1 = _conv_accumulate(xp1.astype(bf16), wc1_ref[...], plan1,
                          plan1["Lw"])[0]
    a1 = _leaky(a1 + bc1_ref[...])                       # (8, Lw1)

    # Shift + interior-mask into conv#2's zero-padded frame: 0/1 scatter GEMM
    # (replaces the old lane-concat + broadcast mask; garbage lanes of a1 hit
    #  zero scatter rows).
    xp2 = jnp.dot(a1.astype(bf16), s1_ref[...], preferred_element_type=f32)

    # ConvTranspose2d #2 (k4, s2, p1) + LeakyReLU: 4 output parities.
    a2 = [_leaky(a + bc2_ref[...])
          for a in _conv_accumulate(xp2.astype(bf16), wc2_ref[...], plan2,
                                    plan2["Lw"])]

    # Parity interleave + zero-pad into conv#3's frame: one 0/1 scatter GEMM
    # per parity, summed (every target column is written by exactly one
    # parity; padded channel rows stay zero).
    xp3 = None
    for p in range(len(a2)):
        part = jnp.dot(a2[p].astype(bf16), s3_ref[p],
                       preferred_element_type=f32)
        xp3 = part if xp3 is None else xp3 + part

    # ConvTranspose2d #3 (k4, s2, p1) + Sigmoid (EUP exp + approx reciprocal).
    a3 = _conv_accumulate(xp3.astype(bf16), wc3_ref[...], plan3, lw3_pad)
    for p in range(len(a3)):
        z = a3[p] + bc3_ref[...]
        s = pl.reciprocal(1.0 + jnp.exp(-z), approx=True)
        o_ref[p] = jnp.minimum(s, 1.0)        # guard approx recip overshoot


# ----------------------------------------------------------------------------
# Forward pass builder
# ----------------------------------------------------------------------------
def make_net3_forward(params, nChannels, capacity, x_fdim1, x_fdim2, k_view,
                      batch):
    c4 = capacity * 4
    kk = k_view * k_view
    F2 = c4 * kk

    plan1 = _convt_plan(c4, capacity * 2, 3, 1, 0, k_view, batch)
    plan2 = _convt_plan(capacity * 2, capacity, 4, 2, 1, plan1["H_out"], batch)
    plan3 = _convt_plan(capacity, nChannels, 4, 2, 1, plan2["H_out"], batch)
    assert len(plan1["parities"]) == 1 and plan2["stride"] == 2 \
        and plan3["stride"] == 2

    # lane-dense output: per-parity lane width padded to a vreg multiple
    lw3_pad = _round_up(plan3["Lw"], 128)
    p3_cols = plan3["max_off"] + lw3_pad      # columns of conv#3's frame slab

    f32np, bf16 = np.float32, jnp.bfloat16

    # fc1 / fc2 as block-diagonal single-row GEMMs (batch folded into K/N)
    fc1_w = np.asarray(params["fc1_w"], f32np)          # (x_fdim2, x_fdim1)
    fc2_w = np.asarray(params["fc2_w"], f32np)          # (x_fdim1, F2)
    w1blk = np.zeros((batch * x_fdim2, batch * x_fdim1), f32np)
    w2blk = np.zeros((batch * x_fdim1, batch * F2), f32np)
    for n in range(batch):
        w1blk[n * x_fdim2:(n + 1) * x_fdim2,
              n * x_fdim1:(n + 1) * x_fdim1] = fc1_w
        w2blk[n * x_fdim1:(n + 1) * x_fdim1, n * F2:(n + 1) * F2] = fc2_w
    b1row = np.tile(np.asarray(params["fc1_b"], f32np), batch)[None, :]
    b2row = np.tile(np.asarray(params["fc2_b"], f32np), batch)[None, :]

    # Lin_View + conv#1 zero-pad:
    #   xp1[c, n*Hp1^2 + (y+pa1)*Hp1 + (x+pa1)] = h2row[0, n*F2 + c*kk + y*k+x]
    Hp1, pa1 = plan1["Hp"], plan1["pad_amt"]
    mskbig = np.zeros((c4, batch * F2), f32np)
    gbig = np.zeros((batch * F2, plan1["P"]), f32np)
    for n in range(batch):
        for c in range(c4):
            mskbig[c, n * F2 + c * kk:n * F2 + (c + 1) * kk] = 1.0
        for f in range(F2):
            y, x = (f % kk) // k_view, (f % kk) % k_view
            gbig[n * F2 + f, n * Hp1 * Hp1 + (y + pa1) * Hp1 + (x + pa1)] = 1.0

    # conv#1 output frame -> conv#2 zero-padded frame (shift + interior mask)
    Hq1 = plan1["Hq"]
    Hp2, pa2 = plan2["Hp"], plan2["pad_amt"]
    s1 = np.zeros((plan1["Lw"], plan2["P"]), f32np)
    for n in range(batch):
        for y in range(Hq1):
            for x in range(Hq1):
                s1[n * Hp1 * Hp1 + y * Hp1 + x,
                   n * Hp2 * Hp2 + (y + pa2) * Hp2 + (x + pa2)] = 1.0

    # conv#2 parity sub-grids -> conv#3 zero-padded frame (interleave + pad)
    Hq2, st2 = plan2["Hq"], plan2["stride"]
    Hp3, pa3 = plan3["Hp"], plan3["pad_amt"]
    s3 = np.zeros((len(plan2["parities"]), plan2["Lw"], p3_cols), f32np)
    for i, ((ry, rx), _) in enumerate(plan2["parities"]):
        for n in range(batch):
            for m in range(Hq2):
                for x in range(Hq2):
                    s3[i, n * Hp2 * Hp2 + m * Hp2 + x,
                       n * Hp3 * Hp3 + (m * st2 + ry + pa3) * Hp3
                       + (x * st2 + rx + pa3)] = 1.0

    consts = [
        jnp.asarray(w1blk, bf16), jnp.asarray(b1row),
        jnp.asarray(w2blk, bf16), jnp.asarray(b2row),
        jnp.asarray(mskbig), jnp.asarray(gbig, bf16),
        jnp.asarray(_convt_weight(params["ct1_w"], plan1, c4), bf16),
        jnp.asarray(_conv_bias(params["ct1_b"], plan1)),
        jnp.asarray(s1, bf16),
        jnp.asarray(_convt_weight(params["ct2_w"], plan2,
                                  plan1["Coutp"]), bf16),
        jnp.asarray(_conv_bias(params["ct2_b"], plan2)),
        jnp.asarray(s3, bf16),
        jnp.asarray(_convt_weight(params["ct3_w"], plan3,
                                  plan2["Coutp"]), bf16),
        jnp.asarray(_conv_bias(params["ct3_b"], plan3)),
    ]

    n_par3 = len(plan3["parities"])
    out_struct = jax.ShapeDtypeStruct((n_par3, plan3["Coutp"], lw3_pad),
                                      jnp.float32)

    # advisory cost hint for XLA scheduling of the surrounding glue
    gemms = [
        (1, batch * x_fdim2, batch * x_fdim1),
        (1, batch * x_fdim1, batch * F2),
        (c4, batch * F2, plan1["P"]),
        (plan1["K"] ** 2 * plan1["Coutp"], c4, plan1["P"]),
        (plan1["Coutp"], plan1["Lw"], plan2["P"]),
        (plan2["K"] ** 2 * plan2["Coutp"], plan1["Coutp"], plan2["P"]),
    ] + [(plan2["Coutp"], plan2["Lw"], p3_cols)] * len(plan2["parities"]) + [
        (plan3["K"] ** 2 * plan3["Coutp"], plan2["Coutp"], p3_cols),
    ]
    cost = pl.CostEstimate(
        flops=int(sum(2 * m * k * n for m, k, n in gemms)),
        transcendentals=int(n_par3 * plan3["Coutp"] * lw3_pad),
        bytes_accessed=int(sum(a.size * a.dtype.itemsize for a in consts)
                           + batch * x_fdim2 * 4
                           + n_par3 * plan3["Coutp"] * lw3_pad * 4))

    vmem = pl.BlockSpec(memory_space=pltpu.MemorySpace.VMEM)
    run = pl.pallas_call(
        functools.partial(_net3_kernel, plan1=plan1, plan2=plan2, plan3=plan3,
                          lw3_pad=lw3_pad),
        out_shape=out_struct,
        in_specs=[vmem] * (1 + len(consts)),
        out_specs=vmem,
        cost_estimate=cost,
    )

    Hq3, st3 = plan3["Hq"], plan3["stride"]
    par_index3 = {pr: i for i, (pr, _) in enumerate(plan3["parities"])}
    width = min(lw3_pad, plan3["P"])

    @jax.jit
    def forward(x):
        out = run(x.reshape(1, batch * x_fdim2), *consts)   # (4, 8, lw3_pad)
        # TODO(synk): the final stride-2 parity interleave to NCHW would need
        # lane-strided stores in-kernel; it is left as tiny XLA glue on ~12KB.
        sub = {}
        for (ry, rx), i in par_index3.items():
            p = out[i, :nChannels, :width]
            p = jnp.pad(p, ((0, 0), (0, plan3["P"] - width)))
            sub[(ry, rx)] = p.reshape(nChannels, batch, Hp3, Hp3)[:, :, :Hq3,
                                                                  :Hq3]
        r0 = jnp.stack([sub[(0, 0)], sub[(0, 1)]], axis=-1)
        r1 = jnp.stack([sub[(1, 0)], sub[(1, 1)]], axis=-1)
        img = jnp.stack([r0, r1], axis=3).reshape(nChannels, batch,
                                                  st3 * Hq3, st3 * Hq3)
        return jnp.transpose(img, (1, 0, 2, 3))              # NCHW
    return forward


# ----------------------------------------------------------------------------
# Pure-JAX reference (direct PyTorch ConvTranspose2d semantics) for validation
# ----------------------------------------------------------------------------
def _ref_conv_transpose(x, w, b, stride, padding):
    Nb, Cin, H, W = x.shape
    _, Cout, K, _ = w.shape
    full = jnp.zeros((Nb, Cout, (H - 1) * stride + K, (W - 1) * stride + K),
                     jnp.float32)
    for kh in range(K):
        for kw in range(K):
            contrib = jnp.einsum('nchw,co->nohw', x, w[:, :, kh, kw])
            full = full.at[:, :, kh:kh + (H - 1) * stride + 1:stride,
                                 kw:kw + (W - 1) * stride + 1:stride].add(contrib)
    Ho = (H - 1) * stride - 2 * padding + K
    return full[:, :, padding:padding + Ho, padding:padding + Ho] \
        + b[None, :, None, None]


def _ref_forward(params, x, capacity, k_view):
    lk = lambda v: jnp.where(v >= 0, v, 0.2 * v)
    h = lk(x @ params["fc1_w"] + params["fc1_b"])
    h = lk(h @ params["fc2_w"] + params["fc2_b"])
    h = h.reshape(x.shape[0], capacity * 4, k_view, k_view)
    h = lk(_ref_conv_transpose(h, params["ct1_w"], params["ct1_b"], 1, 0))
    h = lk(_ref_conv_transpose(h, params["ct2_w"], params["ct2_b"], 2, 1))
    return jax.nn.sigmoid(
        _ref_conv_transpose(h, params["ct3_w"], params["ct3_b"], 2, 1))


if __name__ == "__main__":
    # synthetic config standing in for (args, cnn_kwargs, nChannels)
    nChannels = 3
    capacity = 4
    x_fdim1, x_fdim2 = 32, 8
    k_view = 4                                   # cnn_kwargs[2]
    # cnn_kwargs[0] = dict(kernel_size=4, stride=2, padding=1)
    # cnn_kwargs[1] = dict(kernel_size=3, stride=1)
    batch = 2

    key = jax.random.PRNGKey(0)
    keys = jax.random.split(key, 11)

    def u(k, shape, scale=0.1):
        return (jax.random.uniform(k, shape, jnp.float32) - 0.5) * 2.0 * scale

    params = {
        # Linear weights stored already transposed: (in, out)
        "fc1_w": u(keys[0], (x_fdim2, x_fdim1)),
        "fc1_b": u(keys[1], (x_fdim1,)),
        "fc2_w": u(keys[2], (x_fdim1, capacity * 4 * k_view ** 2)),
        "fc2_b": u(keys[3], (capacity * 4 * k_view ** 2,)),
        # ConvTranspose2d weights in PyTorch layout (Cin, Cout, K, K)
        "ct1_w": u(keys[4], (capacity * 4, capacity * 2, 3, 3)),
        "ct1_b": u(keys[5], (capacity * 2,)),
        "ct2_w": u(keys[6], (capacity * 2, capacity, 4, 4)),
        "ct2_b": u(keys[7], (capacity,)),
        "ct3_w": u(keys[8], (capacity, nChannels, 4, 4)),
        "ct3_b": u(keys[9], (nChannels,)),
    }
    x = jax.random.normal(keys[10], (batch, x_fdim2), jnp.float32)

    fwd = make_net3_forward(params, nChannels, capacity, x_fdim1, x_fdim2,
                            k_view, batch)
    out = jax.block_until_ready(fwd(x))

    # spatial: 4 --(k3,s1)--> 6 --(k4,s2,p1)--> 12 --(k4,s2,p1)--> 24
    assert out.shape == (batch, nChannels, 24, 24), out.shape
    assert bool(jnp.all(jnp.isfinite(out)))
    assert bool(jnp.all((out >= 0.0) & (out <= 1.0)))   # sigmoid range

    ref = _ref_forward(params, x, capacity, k_view)
    max_err = float(jnp.max(jnp.abs(out - ref)))
    assert max_err < 3e-2, f"max abs err vs reference: {max_err}"

    print("KERNEL_OK")
</pallas_src>

<mosaic_0001>
module attributes {stable_mosaic.version = 11 : i64} {
  func.func @_net3_kernel(%arg0: memref<1x16xf32, #tpu.memory_space<vmem>>, %arg1: memref<16x64xbf16, #tpu.memory_space<vmem>>, %arg2: memref<1x64xf32, #tpu.memory_space<vmem>>, %arg3: memref<64x512xbf16, #tpu.memory_space<vmem>>, %arg4: memref<1x512xf32, #tpu.memory_space<vmem>>, %arg5: memref<16x512xf32, #tpu.memory_space<vmem>>, %arg6: memref<512x128xbf16, #tpu.memory_space<vmem>>, %arg7: memref<72x16xbf16, #tpu.memory_space<vmem>>, %arg8: memref<8x1xf32, #tpu.memory_space<vmem>>, %arg9: memref<110x128xbf16, #tpu.memory_space<vmem>>, %arg10: memref<128x8xbf16, #tpu.memory_space<vmem>>, %arg11: memref<8x1xf32, #tpu.memory_space<vmem>>, %arg12: memref<4x110x414xbf16, #tpu.memory_space<vmem>>, %arg13: memref<128x8xbf16, #tpu.memory_space<vmem>>, %arg14: memref<8x1xf32, #tpu.memory_space<vmem>>, %arg15: memref<4x8x384xf32, #tpu.memory_space<vmem>>) attributes {dimension_semantics = [], scalar_prefetch = 0 : i64, scratch_operands = 0 : i64, tpu.core_type = #tpu.core_type<tc>} {
    %c0 = arith.constant 0 : index
    %c0_0 = arith.constant 0 : index
    %0 = vector.load %arg0[%c0, %c0_0] : memref<1x16xf32, #tpu.memory_space<vmem>>, vector<1x16xf32>
    %1 = arith.truncf %0 : vector<1x16xf32> to vector<1x16xbf16>
    %c0_1 = arith.constant 0 : index
    %c0_2 = arith.constant 0 : index
    %2 = vector.load %arg1[%c0_1, %c0_2] : memref<16x64xbf16, #tpu.memory_space<vmem>>, vector<16x64xbf16>
    %cst = arith.constant dense<0.000000e+00> : vector<1x64xf32>
    %3 = tpu.matmul %1, %2, %cst {dimension_numbers = #tpu.dot_dimension_numbers<[1], [0], [0], [1], [0, 0, 1, 1], [], []>} : vector<1x16xbf16>, vector<16x64xbf16>, vector<1x64xf32> -> vector<1x64xf32>
    %c0_3 = arith.constant 0 : index
    %c0_4 = arith.constant 0 : index
    %4 = vector.load %arg2[%c0_3, %c0_4] : memref<1x64xf32, #tpu.memory_space<vmem>>, vector<1x64xf32>
    %5 = arith.addf %3, %4 : vector<1x64xf32>
    %cst_5 = arith.constant 2.000000e-01 : f32
    %6 = vector.broadcast %cst_5 : f32 to vector<1x64xf32>
    %7 = arith.mulf %6, %5 : vector<1x64xf32>
    %8 = arith.maximumf %5, %7 : vector<1x64xf32>
    %9 = arith.truncf %8 : vector<1x64xf32> to vector<1x64xbf16>
    %c0_6 = arith.constant 0 : index
    %c0_7 = arith.constant 0 : index
    %10 = vector.load %arg3[%c0_6, %c0_7] : memref<64x512xbf16, #tpu.memory_space<vmem>>, vector<64x512xbf16>
    %cst_8 = arith.constant dense<0.000000e+00> : vector<1x512xf32>
    %11 = tpu.matmul %9, %10, %cst_8 {dimension_numbers = #tpu.dot_dimension_numbers<[1], [0], [0], [1], [0, 0, 1, 1], [], []>} : vector<1x64xbf16>, vector<64x512xbf16>, vector<1x512xf32> -> vector<1x512xf32>
    %c0_9 = arith.constant 0 : index
    %c0_10 = arith.constant 0 : index
    %12 = vector.load %arg4[%c0_9, %c0_10] : memref<1x512xf32, #tpu.memory_space<vmem>>, vector<1x512xf32>
    %13 = arith.addf %11, %12 : vector<1x512xf32>
    %cst_11 = arith.constant 2.000000e-01 : f32
    %14 = vector.broadcast %cst_11 : f32 to vector<1x512xf32>
    %15 = arith.mulf %14, %13 : vector<1x512xf32>
    %16 = arith.maximumf %13, %15 : vector<1x512xf32>
    %c0_12 = arith.constant 0 : index
    %c0_13 = arith.constant 0 : index
    %17 = vector.load %arg5[%c0_12, %c0_13] : memref<16x512xf32, #tpu.memory_space<vmem>>, vector<16x512xf32>
    %18 = vector.broadcast %16 : vector<1x512xf32> to vector<16x512xf32>
    %19 = arith.mulf %17, %18 : vector<16x512xf32>
    %20 = arith.truncf %19 : vector<16x512xf32> to vector<16x512xbf16>
    %c0_14 = arith.constant 0 : index
    %c0_15 = arith.constant 0 : index
    %21 = vector.load %arg6[%c0_14, %c0_15] : memref<512x128xbf16, #tpu.memory_space<vmem>>, vector<512x128xbf16>
    %cst_16 = arith.constant dense<0.000000e+00> : vector<16x128xf32>
    %22 = tpu.matmul %20, %21, %cst_16 {dimension_numbers = #tpu.dot_dimension_numbers<[1], [0], [0], [1], [0, 0, 1, 1], [], []>} : vector<16x512xbf16>, vector<512x128xbf16>, vector<16x128xf32> -> vector<16x128xf32>
    %23 = arith.truncf %22 : vector<16x128xf32> to vector<16x128xbf16>
    %c0_17 = arith.constant 0 : index
    %c0_18 = arith.constant 0 : index
    %24 = vector.load %arg7[%c0_17, %c0_18] : memref<72x16xbf16, #tpu.memory_space<vmem>>, vector<72x16xbf16>
    %cst_19 = arith.constant dense<0.000000e+00> : vector<72x128xf32>
    %25 = tpu.matmul %24, %23, %cst_19 {dimension_numbers = #tpu.dot_dimension_numbers<[1], [0], [0], [1], [0, 0, 1, 1], [], []>} : vector<72x16xbf16>, vector<16x128xbf16>, vector<72x128xf32> -> vector<72x128xf32>
    %26 = vector.extract_strided_slice %25 {offsets = [0, 18], sizes = [8, 110], strides = [1, 1]} : vector<72x128xf32> to vector<8x110xf32>
    %27 = vector.extract_strided_slice %25 {offsets = [8, 17], sizes = [8, 110], strides = [1, 1]} : vector<72x128xf32> to vector<8x110xf32>
    %28 = arith.addf %26, %27 : vector<8x110xf32>
    %29 = vector.extract_strided_slice %25 {offsets = [16, 16], sizes = [8, 110], strides = [1, 1]} : vector<72x128xf32> to vector<8x110xf32>
    %30 = arith.addf %28, %29 : vector<8x110xf32>
    %31 = vector.extract_strided_slice %25 {offsets = [24, 10], sizes = [8, 110], strides = [1, 1]} : vector<72x128xf32> to vector<8x110xf32>
    %32 = arith.addf %30, %31 : vector<8x110xf32>
    %33 = vector.extract_strided_slice %25 {offsets = [32, 9], sizes = [8, 110], strides = [1, 1]} : vector<72x128xf32> to vector<8x110xf32>
    %34 = arith.addf %32, %33 : vector<8x110xf32>
    %35 = vector.extract_strided_slice %25 {offsets = [40, 8], sizes = [8, 110], strides = [1, 1]} : vector<72x128xf32> to vector<8x110xf32>
    %36 = arith.addf %34, %35 : vector<8x110xf32>
    %37 = vector.extract_strided_slice %25 {offsets = [48, 2], sizes = [8, 110], strides = [1, 1]} : vector<72x128xf32> to vector<8x110xf32>
    %38 = arith.addf %36, %37 : vector<8x110xf32>
    %39 = vector.extract_strided_slice %25 {offsets = [56, 1], sizes = [8, 110], strides = [1, 1]} : vector<72x128xf32> to vector<8x110xf32>
    %40 = arith.addf %38, %39 : vector<8x110xf32>
    %41 = vector.extract_strided_slice %25 {offsets = [64, 0], sizes = [8, 110], strides = [1, 1]} : vector<72x128xf32> to vector<8x110xf32>
    %42 = arith.addf %40, %41 : vector<8x110xf32>
    %c0_20 = arith.constant 0 : index
    %c0_21 = arith.constant 0 : index
    %43 = vector.load %arg8[%c0_20, %c0_21] : memref<8x1xf32, #tpu.memory_space<vmem>>, vector<8x1xf32>
    %44 = vector.broadcast %43 : vector<8x1xf32> to vector<8x110xf32>
    %45 = arith.addf %42, %44 : vector<8x110xf32>
    %cst_22 = arith.constant 2.000000e-01 : f32
    %46 = vector.broadcast %cst_22 : f32 to vector<8x110xf32>
    %47 = arith.mulf %46, %45 : vector<8x110xf32>
    %48 = arith.maximumf %45, %47 : vector<8x110xf32>
    %49 = arith.truncf %48 : vector<8x110xf32> to vector<8x110xbf16>
    %c0_23 = arith.constant 0 : index
    %c0_24 = arith.constant 0 : index
    %50 = vector.load %arg9[%c0_23, %c0_24] : memref<110x128xbf16, #tpu.memory_space<vmem>>, vector<110x128xbf16>
    %cst_25 = arith.constant dense<0.000000e+00> : vector<8x128xf32>
    %51 = tpu.matmul %49, %50, %cst_25 {dimension_numbers = #tpu.dot_dimension_numbers<[1], [0], [0], [1], [0, 0, 1, 1], [], []>} : vector<8x110xbf16>, vector<110x128xbf16>, vector<8x128xf32> -> vector<8x128xf32>
    %52 = arith.truncf %51 : vector<8x128xf32> to vector<8x128xbf16>
    %c0_26 = arith.constant 0 : index
    %c0_27 = arith.constant 0 : index
    %53 = vector.load %arg10[%c0_26, %c0_27] : memref<128x8xbf16, #tpu.memory_space<vmem>>, vector<128x8xbf16>
    %cst_28 = arith.constant dense<0.000000e+00> : vector<128x128xf32>
    %54 = tpu.matmul %53, %52, %cst_28 {dimension_numbers = #tpu.dot_dimension_numbers<[1], [0], [0], [1], [0, 0, 1, 1], [], []>} : vector<128x8xbf16>, vector<8x128xbf16>, vector<128x128xf32> -> vector<128x128xf32>
    %55 = vector.extract_strided_slice %54 {offsets = [40, 9], sizes = [8, 110], strides = [1, 1]} : vector<128x128xf32> to vector<8x110xf32>
    %56 = vector.extract_strided_slice %54 {offsets = [56, 8], sizes = [8, 110], strides = [1, 1]} : vector<128x128xf32> to vector<8x110xf32>
    %57 = arith.addf %55, %56 : vector<8x110xf32>
    %58 = vector.extract_strided_slice %54 {offsets = [104, 1], sizes = [8, 110], strides = [1, 1]} : vector<128x128xf32> to vector<8x110xf32>
    %59 = arith.addf %57, %58 : vector<8x110xf32>
    %60 = vector.extract_strided_slice %54 {offsets = [120, 0], sizes = [8, 110], strides = [1, 1]} : vector<128x128xf32> to vector<8x110xf32>
    %61 = arith.addf %59, %60 : vector<8x110xf32>
    %62 = vector.extract_strided_slice %54 {offsets = [32, 10], sizes = [8, 110], strides = [1, 1]} : vector<128x128xf32> to vector<8x110xf32>
    %63 = vector.extract_strided_slice %54 {offsets = [48, 9], sizes = [8, 110], strides = [1, 1]} : vector<128x128xf32> to vector<8x110xf32>
    %64 = arith.addf %62, %63 : vector<8x110xf32>
    %65 = vector.extract_strided_slice %54 {offsets = [96, 2], sizes = [8, 110], strides = [1, 1]} : vector<128x128xf32> to vector<8x110xf32>
    %66 = arith.addf %64, %65 : vector<8x110xf32>
    %67 = vector.extract_strided_slice %54 {offsets = [112, 1], sizes = [8, 110], strides = [1, 1]} : vector<128x128xf32> to vector<8x110xf32>
    %68 = arith.addf %66, %67 : vector<8x110xf32>
    %69 = vector.extract_strided_slice %54 {offsets = [8, 17], sizes = [8, 110], strides = [1, 1]} : vector<128x128xf32> to vector<8x110xf32>
    %70 = vector.extract_strided_slice %54 {offsets = [24, 16], sizes = [8, 110], strides = [1, 1]} : vector<128x128xf32> to vector<8x110xf32>
    %71 = arith.addf %69, %70 : vector<8x110xf32>
    %72 = vector.extract_strided_slice %54 {offsets = [72, 9], sizes = [8, 110], strides = [1, 1]} : vector<128x128xf32> to vector<8x110xf32>
    %73 = arith.addf %71, %72 : vector<8x110xf32>
    %74 = vector.extract_strided_slice %54 {offsets = [88, 8], sizes = [8, 110], strides = [1, 1]} : vector<128x128xf32> to vector<8x110xf32>
    %75 = arith.addf %73, %74 : vector<8x110xf32>
    %76 = vector.extract_strided_slice %54 {offsets = [0, 18], sizes = [8, 110], strides = [1, 1]} : vector<128x128xf32> to vector<8x110xf32>
    %77 = vector.extract_strided_slice %54 {offsets = [16, 17], sizes = [8, 110], strides = [1, 1]} : vector<128x128xf32> to vector<8x110xf32>
    %78 = arith.addf %76, %77 : vector<8x110xf32>
    %79 = vector.extract_strided_slice %54 {offsets = [64, 10], sizes = [8, 110], strides = [1, 1]} : vector<128x128xf32> to vector<8x110xf32>
    %80 = arith.addf %78, %79 : vector<8x110xf32>
    %81 = vector.extract_strided_slice %54 {offsets = [80, 9], sizes = [8, 110], strides = [1, 1]} : vector<128x128xf32> to vector<8x110xf32>
    %82 = arith.addf %80, %81 : vector<8x110xf32>
    %c0_29 = arith.constant 0 : index
    %c0_30 = arith.constant 0 : index
    %83 = vector.load %arg11[%c0_29, %c0_30] : memref<8x1xf32, #tpu.memory_space<vmem>>, vector<8x1xf32>
    %84 = vector.broadcast %83 : vector<8x1xf32> to vector<8x110xf32>
    %85 = arith.addf %61, %84 : vector<8x110xf32>
    %cst_31 = arith.constant 2.000000e-01 : f32
    %86 = vector.broadcast %cst_31 : f32 to vector<8x110xf32>
    %87 = arith.mulf %86, %85 : vector<8x110xf32>
    %88 = arith.maximumf %85, %87 : vector<8x110xf32>
    %c0_32 = arith.constant 0 : index
    %c0_33 = arith.constant 0 : index
    %89 = vector.load %arg11[%c0_32, %c0_33] : memref<8x1xf32, #tpu.memory_space<vmem>>, vector<8x1xf32>
    %90 = vector.broadcast %89 : vector<8x1xf32> to vector<8x110xf32>
    %91 = arith.addf %68, %90 : vector<8x110xf32>
    %cst_34 = arith.constant 2.000000e-01 : f32
    %92 = vector.broadcast %cst_34 : f32 to vector<8x110xf32>
    %93 = arith.mulf %92, %91 : vector<8x110xf32>
    %94 = arith.maximumf %91, %93 : vector<8x110xf32>
    %c0_35 = arith.constant 0 : index
    %c0_36 = arith.constant 0 : index
    %95 = vector.load %arg11[%c0_35, %c0_36] : memref<8x1xf32, #tpu.memory_space<vmem>>, vector<8x1xf32>
    %96 = vector.broadcast %95 : vector<8x1xf32> to vector<8x110xf32>
    %97 = arith.addf %75, %96 : vector<8x110xf32>
    %cst_37 = arith.constant 2.000000e-01 : f32
    %98 = vector.broadcast %cst_37 : f32 to vector<8x110xf32>
    %99 = arith.mulf %98, %97 : vector<8x110xf32>
    %100 = arith.maximumf %97, %99 : vector<8x110xf32>
    %c0_38 = arith.constant 0 : index
    %c0_39 = arith.constant 0 : index
    %101 = vector.load %arg11[%c0_38, %c0_39] : memref<8x1xf32, #tpu.memory_space<vmem>>, vector<8x1xf32>
    %102 = vector.broadcast %101 : vector<8x1xf32> to vector<8x110xf32>
    %103 = arith.addf %82, %102 : vector<8x110xf32>
    %cst_40 = arith.constant 2.000000e-01 : f32
    %104 = vector.broadcast %cst_40 : f32 to vector<8x110xf32>
    %105 = arith.mulf %104, %103 : vector<8x110xf32>
    %106 = arith.maximumf %103, %105 : vector<8x110xf32>
    %107 = arith.truncf %88 : vector<8x110xf32> to vector<8x110xbf16>
    %c0_41 = arith.constant 0 : index
    %c0_42 = arith.constant 0 : index
    %c0_43 = arith.constant 0 : index
    %108 = vector.load %arg12[%c0_41, %c0_42, %c0_43] : memref<4x110x414xbf16, #tpu.memory_space<vmem>>, vector<1x110x414xbf16>
    %109 = vector.shape_cast %108 : vector<1x110x414xbf16> to vector<110x414xbf16>
    %cst_44 = arith.constant dense<0.000000e+00> : vector<8x414xf32>
    %110 = tpu.matmul %107, %109, %cst_44 {dimension_numbers = #tpu.dot_dimension_numbers<[1], [0], [0], [1], [0, 0, 1, 1], [], []>} : vector<8x110xbf16>, vector<110x414xbf16>, vector<8x414xf32> -> vector<8x414xf32>
    %111 = arith.truncf %94 : vector<8x110xf32> to vector<8x110xbf16>
    %c1 = arith.constant 1 : index
    %c0_45 = arith.constant 0 : index
    %c0_46 = arith.constant 0 : index
    %112 = vector.load %arg12[%c1, %c0_45, %c0_46] : memref<4x110x414xbf16, #tpu.memory_space<vmem>>, vector<1x110x414xbf16>
    %113 = vector.shape_cast %112 : vector<1x110x414xbf16> to vector<110x414xbf16>
    %cst_47 = arith.constant dense<0.000000e+00> : vector<8x414xf32>
    %114 = tpu.matmul %111, %113, %cst_47 {dimension_numbers = #tpu.dot_dimension_numbers<[1], [0], [0], [1], [0, 0, 1, 1], [], []>} : vector<8x110xbf16>, vector<110x414xbf16>, vector<8x414xf32> -> vector<8x414xf32>
    %115 = arith.addf %110, %114 : vector<8x414xf32>
    %116 = arith.truncf %100 : vector<8x110xf32> to vector<8x110xbf16>
    %c2 = arith.constant 2 : index
    %c0_48 = arith.constant 0 : index
    %c0_49 = arith.constant 0 : index
    %117 = vector.load %arg12[%c2, %c0_48, %c0_49] : memref<4x110x414xbf16, #tpu.memory_space<vmem>>, vector<1x110x414xbf16>
    %118 = vector.shape_cast %117 : vector<1x110x414xbf16> to vector<110x414xbf16>
    %cst_50 = arith.constant dense<0.000000e+00> : vector<8x414xf32>
    %119 = tpu.matmul %116, %118, %cst_50 {dimension_numbers = #tpu.dot_dimension_numbers<[1], [0], [0], [1], [0, 0, 1, 1], [], []>} : vector<8x110xbf16>, vector<110x414xbf16>, vector<8x414xf32> -> vector<8x414xf32>
    %120 = arith.addf %115, %119 : vector<8x414xf32>
    %121 = arith.truncf %106 : vector<8x110xf32> to vector<8x110xbf16>
    %c3 = arith.constant 3 : index
    %c0_51 = arith.constant 0 : index
    %c0_52 = arith.constant 0 : index
    %122 = vector.load %arg12[%c3, %c0_51, %c0_52] : memref<4x110x414xbf16, #tpu.memory_space<vmem>>, vector<1x110x414xbf16>
    %123 = vector.shape_cast %122 : vector<1x110x414xbf16> to vector<110x414xbf16>
    %cst_53 = arith.constant dense<0.000000e+00> : vector<8x414xf32>
    %124 = tpu.matmul %121, %123, %cst_53 {dimension_numbers = #tpu.dot_dimension_numbers<[1], [0], [0], [1], [0, 0, 1, 1], [], []>} : vector<8x110xbf16>, vector<110x414xbf16>, vector<8x414xf32> -> vector<8x414xf32>
    %125 = arith.addf %120, %124 : vector<8x414xf32>
    %126 = arith.truncf %125 : vector<8x414xf32> to vector<8x414xbf16>
    %c0_54 = arith.constant 0 : index
    %c0_55 = arith.constant 0 : index
    %127 = vector.load %arg13[%c0_54, %c0_55] : memref<128x8xbf16, #tpu.memory_space<vmem>>, vector<128x8xbf16>
    %cst_56 = arith.constant dense<0.000000e+00> : vector<128x414xf32>
    %128 = tpu.matmul %127, %126, %cst_56 {dimension_numbers = #tpu.dot_dimension_numbers<[1], [0], [0], [1], [0, 0, 1, 1], [], []>} : vector<128x8xbf16>, vector<8x414xbf16>, vector<128x414xf32> -> vector<128x414xf32>
    %129 = vector.extract_strided_slice %128 {offsets = [40, 15], sizes = [8, 384], strides = [1, 1]} : vector<128x414xf32> to vector<8x384xf32>
    %130 = vector.extract_strided_slice %128 {offsets = [56, 14], sizes = [8, 384], strides = [1, 1]} : vector<128x414xf32> to vector<8x384xf32>
    %131 = arith.addf %129, %130 : vector<8x384xf32>
    %132 = vector.extract_strided_slice %128 {offsets = [104, 1], sizes = [8, 384], strides = [1, 1]} : vector<128x414xf32> to vector<8x384xf32>
    %133 = arith.addf %131, %132 : vector<8x384xf32>
    %134 = vector.extract_strided_slice %128 {offsets = [120, 0], sizes = [8, 384], strides = [1, 1]} : vector<128x414xf32> to vector<8x384xf32>
    %135 = arith.addf %133, %134 : vector<8x384xf32>
    %136 = vector.extract_strided_slice %128 {offsets = [32, 16], sizes = [8, 384], strides = [1, 1]} : vector<128x414xf32> to vector<8x384xf32>
    %137 = vector.extract_strided_slice %128 {offsets = [48, 15], sizes = [8, 384], strides = [1, 1]} : vector<128x414xf32> to vector<8x384xf32>
    %138 = arith.addf %136, %137 : vector<8x384xf32>
    %139 = vector.extract_strided_slice %128 {offsets = [96, 2], sizes = [8, 384], strides = [1, 1]} : vector<128x414xf32> to vector<8x384xf32>
    %140 = arith.addf %138, %139 : vector<8x384xf32>
    %141 = vector.extract_strided_slice %128 {offsets = [112, 1], sizes = [8, 384], strides = [1, 1]} : vector<128x414xf32> to vector<8x384xf32>
    %142 = arith.addf %140, %141 : vector<8x384xf32>
    %143 = vector.extract_strided_slice %128 {offsets = [8, 29], sizes = [8, 384], strides = [1, 1]} : vector<128x414xf32> to vector<8x384xf32>
    %144 = vector.extract_strided_slice %128 {offsets = [24, 28], sizes = [8, 384], strides = [1, 1]} : vector<128x414xf32> to vector<8x384xf32>
    %145 = arith.addf %143, %144 : vector<8x384xf32>
    %146 = vector.extract_strided_slice %128 {offsets = [72, 15], sizes = [8, 384], strides = [1, 1]} : vector<128x414xf32> to vector<8x384xf32>
    %147 = arith.addf %145, %146 : vector<8x384xf32>
    %148 = vector.extract_strided_slice %128 {offsets = [88, 14], sizes = [8, 384], strides = [1, 1]} : vector<128x414xf32> to vector<8x384xf32>
    %149 = arith.addf %147, %148 : vector<8x384xf32>
    %150 = vector.extract_strided_slice %128 {offsets = [0, 30], sizes = [8, 384], strides = [1, 1]} : vector<128x414xf32> to vector<8x384xf32>
    %151 = vector.extract_strided_slice %128 {offsets = [16, 29], sizes = [8, 384], strides = [1, 1]} : vector<128x414xf32> to vector<8x384xf32>
    %152 = arith.addf %150, %151 : vector<8x384xf32>
    %153 = vector.extract_strided_slice %128 {offsets = [64, 16], sizes = [8, 384], strides = [1, 1]} : vector<128x414xf32> to vector<8x384xf32>
    %154 = arith.addf %152, %153 : vector<8x384xf32>
    %155 = vector.extract_strided_slice %128 {offsets = [80, 15], sizes = [8, 384], strides = [1, 1]} : vector<128x414xf32> to vector<8x384xf32>
    %156 = arith.addf %154, %155 : vector<8x384xf32>
    %c0_57 = arith.constant 0 : index
    %c0_58 = arith.constant 0 : index
    %157 = vector.load %arg14[%c0_57, %c0_58] : memref<8x1xf32, #tpu.memory_space<vmem>>, vector<8x1xf32>
    %158 = vector.broadcast %157 : vector<8x1xf32> to vector<8x384xf32>
    %159 = arith.addf %135, %158 : vector<8x384xf32>
    %cst_59 = arith.constant 0.000000e+00 : f32
    %160 = vector.broadcast %cst_59 : f32 to vector<8x384xf32>
    %161 = arith.subf %160, %159 : vector<8x384xf32>
    %162 = math.exp %161 : vector<8x384xf32>
    %cst_60 = arith.constant 1.000000e+00 : f32
    %163 = vector.broadcast %cst_60 : f32 to vector<8x384xf32>
    %164 = arith.addf %163, %162 : vector<8x384xf32>
    %165 = tpu.reciprocal %164 {approx = true} : vector<8x384xf32> -> vector<8x384xf32>
    %cst_61 = arith.constant 1.000000e+00 : f32
    %166 = vector.broadcast %cst_61 : f32 to vector<8x384xf32>
    %167 = arith.minimumf %165, %166 : vector<8x384xf32>
    %c0_62 = arith.constant 0 : index
    %c0_63 = arith.constant 0 : index
    %c0_64 = arith.constant 0 : index
    %168 = vector.load %arg15[%c0_62, %c0_63, %c0_64] : memref<4x8x384xf32, #tpu.memory_space<vmem>>, vector<1x8x384xf32>
    %169 = vector.shape_cast %168 : vector<1x8x384xf32> to vector<8x384xf32>
    %170 = vector.shape_cast %167 : vector<8x384xf32> to vector<1x8x384xf32>
    tpu.vector_store %arg15[%c0_62, %c0_63, %c0_64], %170 {strides = array<i32>} : memref<4x8x384xf32, #tpu.memory_space<vmem>>, vector<1x8x384xf32>,
    %c0_65 = arith.constant 0 : index
    %c0_66 = arith.constant 0 : index
    %171 = vector.load %arg14[%c0_65, %c0_66] : memref<8x1xf32, #tpu.memory_space<vmem>>, vector<8x1xf32>
    %172 = vector.broadcast %171 : vector<8x1xf32> to vector<8x384xf32>
    %173 = arith.addf %142, %172 : vector<8x384xf32>
    %cst_67 = arith.constant 0.000000e+00 : f32
    %174 = vector.broadcast %cst_67 : f32 to vector<8x384xf32>
    %175 = arith.subf %174, %173 : vector<8x384xf32>
    %176 = math.exp %175 : vector<8x384xf32>
    %cst_68 = arith.constant 1.000000e+00 : f32
    %177 = vector.broadcast %cst_68 : f32 to vector<8x384xf32>
    %178 = arith.addf %177, %176 : vector<8x384xf32>
    %179 = tpu.reciprocal %178 {approx = true} : vector<8x384xf32> -> vector<8x384xf32>
    %cst_69 = arith.constant 1.000000e+00 : f32
    %180 = vector.broadcast %cst_69 : f32 to vector<8x384xf32>
    %181 = arith.minimumf %179, %180 : vector<8x384xf32>
    %c1_70 = arith.constant 1 : index
    %c0_71 = arith.constant 0 : index
    %c0_72 = arith.constant 0 : index
    %182 = vector.load %arg15[%c1_70, %c0_71, %c0_72] : memref<4x8x384xf32, #tpu.memory_space<vmem>>, vector<1x8x384xf32>
    %183 = vector.shape_cast %182 : vector<1x8x384xf32> to vector<8x384xf32>
    %184 = vector.shape_cast %181 : vector<8x384xf32> to vector<1x8x384xf32>
    tpu.vector_store %arg15[%c1_70, %c0_71, %c0_72], %184 {strides = array<i32>} : memref<4x8x384xf32, #tpu.memory_space<vmem>>, vector<1x8x384xf32>,
    %c0_73 = arith.constant 0 : index
    %c0_74 = arith.constant 0 : index
    %185 = vector.load %arg14[%c0_73, %c0_74] : memref<8x1xf32, #tpu.memory_space<vmem>>, vector<8x1xf32>
    %186 = vector.broadcast %185 : vector<8x1xf32> to vector<8x384xf32>
    %187 = arith.addf %149, %186 : vector<8x384xf32>
    %cst_75 = arith.constant 0.000000e+00 : f32
    %188 = vector.broadcast %cst_75 : f32 to vector<8x384xf32>
    %189 = arith.subf %188, %187 : vector<8x384xf32>
    %190 = math.exp %189 : vector<8x384xf32>
    %cst_76 = arith.constant 1.000000e+00 : f32
    %191 = vector.broadcast %cst_76 : f32 to vector<8x384xf32>
    %192 = arith.addf %191, %190 : vector<8x384xf32>
    %193 = tpu.reciprocal %192 {approx = true} : vector<8x384xf32> -> vector<8x384xf32>
    %cst_77 = arith.constant 1.000000e+00 : f32
    %194 = vector.broadcast %cst_77 : f32 to vector<8x384xf32>
    %195 = arith.minimumf %193, %194 : vector<8x384xf32>
    %c2_78 = arith.constant 2 : index
    %c0_79 = arith.constant 0 : index
    %c0_80 = arith.constant 0 : index
    %196 = vector.load %arg15[%c2_78, %c0_79, %c0_80] : memref<4x8x384xf32, #tpu.memory_space<vmem>>, vector<1x8x384xf32>
    %197 = vector.shape_cast %196 : vector<1x8x384xf32> to vector<8x384xf32>
    %198 = vector.shape_cast %195 : vector<8x384xf32> to vector<1x8x384xf32>
    tpu.vector_store %arg15[%c2_78, %c0_79, %c0_80], %198 {strides = array<i32>} : memref<4x8x384xf32, #tpu.memory_space<vmem>>, vector<1x8x384xf32>,
    %c0_81 = arith.constant 0 : index
    %c0_82 = arith.constant 0 : index
    %199 = vector.load %arg14[%c0_81, %c0_82] : memref<8x1xf32, #tpu.memory_space<vmem>>, vector<8x1xf32>
    %200 = vector.broadcast %199 : vector<8x1xf32> to vector<8x384xf32>
    %201 = arith.addf %156, %200 : vector<8x384xf32>
    %cst_83 = arith.constant 0.000000e+00 : f32
    %202 = vector.broadcast %cst_83 : f32 to vector<8x384xf32>
    %203 = arith.subf %202, %201 : vector<8x384xf32>
    %204 = math.exp %203 : vector<8x384xf32>
    %cst_84 = arith.constant 1.000000e+00 : f32
    %205 = vector.broadcast %cst_84 : f32 to vector<8x384xf32>
    %206 = arith.addf %205, %204 : vector<8x384xf32>
    %207 = tpu.reciprocal %206 {approx = true} : vector<8x384xf32> -> vector<8x384xf32>
    %cst_85 = arith.constant 1.000000e+00 : f32
    %208 = vector.broadcast %cst_85 : f32 to vector<8x384xf32>
    %209 = arith.minimumf %207, %208 : vector<8x384xf32>
    %c3_86 = arith.constant 3 : index
    %c0_87 = arith.constant 0 : index
    %c0_88 = arith.constant 0 : index
    %210 = vector.load %arg15[%c3_86, %c0_87, %c0_88] : memref<4x8x384xf32, #tpu.memory_space<vmem>>, vector<1x8x384xf32>
    %211 = vector.shape_cast %210 : vector<1x8x384xf32> to vector<8x384xf32>
    %212 = vector.shape_cast %209 : vector<8x384xf32> to vector<1x8x384xf32>
    tpu.vector_store %arg15[%c3_86, %c0_87, %c0_88], %212 {strides = array<i32>} : memref<4x8x384xf32, #tpu.memory_space<vmem>>, vector<1x8x384xf32>,
    return
  }
}

</mosaic_0001>

<llo_original>
// kernel: forward.1
$region0: #{forward.1}
  #allocation0 [shape = 'u32[]', space=smem, size = 0x4, offset = 0x4, fixed_abs, tag = 'smem constant byte address 0x4 - core index']
  #allocation1 [shape = 'u32[144,128]{1,0:T(1,128)}', space=vmem, size = 0x12000, scoped, tag = 'internal scratch']
  %s0 = inlined_call_operand.vmem [shape: f32[1,16], index: 0, kind: input, shape index: {}]
  %s1 = inlined_call_operand.hbm [shape: bf16[16,64], index: 1, kind: input, shape index: {}]
  %s2 = inlined_call_operand.vmem [shape: f32[1,64], index: 2, kind: input, shape index: {}]
  %s3 = inlined_call_operand.hbm [shape: bf16[64,512], index: 3, kind: input, shape index: {}]
  %s4 = inlined_call_operand.hbm [shape: f32[1,512], index: 4, kind: input, shape index: {}]
  %s5 = inlined_call_operand.hbm [shape: f32[16,512], index: 5, kind: input, shape index: {}]
  %s6 = inlined_call_operand.hbm [shape: bf16[512,128], index: 6, kind: input, shape index: {}]
  %s7 = inlined_call_operand.hbm [shape: bf16[72,16], index: 7, kind: input, shape index: {}]
  %s8 = inlined_call_operand.hbm [shape: f32[8,1], index: 8, kind: input, shape index: {}]
  %s9 = inlined_call_operand.hbm [shape: bf16[110,128], index: 9, kind: input, shape index: {}]
  %s10 = inlined_call_operand.hbm [shape: bf16[128,8], index: 10, kind: input, shape index: {}]
  %s11 = inlined_call_operand.vmem [shape: f32[8,1], index: 11, kind: input, shape index: {}]
  %s12 = inlined_call_operand.hbm [shape: bf16[4,110,414], index: 12, kind: input, shape index: {}]
  %s13 = inlined_call_operand.hbm [shape: bf16[128,8], index: 13, kind: input, shape index: {}]
  %s14 = inlined_call_operand.vmem [shape: f32[8,1], index: 14, kind: input, shape index: {}]
  %s15 = inlined_call_operand.vmem [shape: f32[4,8,384], index: 15, kind: output, shape index: {}]
  %s16 = sld [smem:[#allocation0]]
  $region114: #{forward.1} parent=0
    _
  %s18 = ssub.s32 1, %s16
  %s19 = scalar_select 0, %s18, %s16
  $region1: #{forward.1} parent=0
    #allocation2 [shape = 'u8[4096]{0}', space=vmem, size = 0x1000, scoped, tag = 'input window, operand 1, single buffered']
    #allocation3 [shape = 's32[1]{0}', space=sflag, size = 0x4, scoped, tag = 'scoped memory for forward.1']
    #allocation4 [shape = 'u8[65536]{0}', space=vmem, size = 0x10000, scoped, tag = 'input window, operand 3, single buffered']
    #allocation5 [shape = 's32[1]{0}', space=sflag, size = 0x4, scoped, tag = 'scoped memory for forward.1']
    #allocation6 [shape = 'u8[2048]{0}', space=vmem, size = 0x800, scoped, tag = 'input window, operand 4, single buffered']
    #allocation7 [shape = 'u8[32768]{0}', space=vmem, size = 0x8000, scoped, tag = 'input window, operand 5, single buffered']
    #allocation8 [shape = 's32[1]{0}', space=sflag, size = 0x4, scoped, tag = 'scoped memory for forward.1']
    #allocation9 [shape = 'u8[131072]{0}', space=vmem, size = 0x20000, scoped, tag = 'input window, operand 6, single buffered']
    #allocation10 [shape = 'u8[18432]{0}', space=vmem, size = 0x4800, scoped, tag = 'input window, operand 7, single buffered']
    #allocation11 [shape = 's32[1]{0}', space=sflag, size = 0x4, scoped, tag = 'scoped memory for forward.1']
    #allocation12 [shape = 'u8[4096]{0}', space=vmem, size = 0x1000, scoped, tag = 'input window, operand 8, single buffered']
    #allocation13 [shape = 'u8[28672]{0}', space=vmem, size = 0x7000, scoped, tag = 'input window, operand 9, single buffered']
    #allocation14 [shape = 's32[1]{0}', space=sflag, size = 0x4, scoped, tag = 'scoped memory for forward.1']
    #allocation15 [shape = 'u8[32768]{0}', space=vmem, size = 0x8000, scoped, tag = 'input window, operand 10, single buffered']
    #allocation16 [shape = 'u8[458752]{0}', space=vmem, size = 0x70000, scoped, tag = 'input window, operand 12, single buffered']
    #allocation17 [shape = 's32[1]{0}', space=sflag, size = 0x4, scoped, tag = 'scoped memory for forward.1']
    #allocation18 [shape = 'u8[32768]{0}', space=vmem, size = 0x8000, scoped, tag = 'input window, operand 13, single buffered']
    %20 = vsyncpa [#allocation3], 0
    %21 = vsyncpa [#allocation5], 0
    %22 = vsyncpa [#allocation8], 0
    %23 = vsyncpa [#allocation11], 0
    %24 = vsyncpa [#allocation14], 0
    %25 = vsyncpa [#allocation17], 0
    // Predicated region
    $region2: #{forward.1} parent=1 // pred_check
      _
    $region3: #{forward.1} parent=1 // pred_check_branch
      %27 = sbr.rel (0) target = $region5
    $region4: #{forward.1} parent=1 // pred_region
      _
    $region5: #{forward.1} parent=1 // pred_fallthru
      _
    // Predicated region
    $region6: #{forward.1} parent=1 // pred_check
      _
    $region7: #{forward.1} parent=1 // pred_check_branch
      %29 = sbr.rel (0) target = $region9
    $region8: #{forward.1} parent=1 // pred_region
      %s31 = ssub.s32 128, 128
      %32 = vsyncadd [#allocation3], %s31
      %s33 = sshll.u32 [#allocation2], 4
      %s34 = int_to_ptr.vmem [resolvable:$true] %s33
      %39 = dma.hbm_to_vmem [thread:$0]  %s1, 128, %s34, [#allocation3], 64, 64, 4
    $region9: #{forward.1} parent=1 // pred_fallthru
      _
    // Predicated region
    $region10: #{forward.1} parent=1 // pred_check
      _
    $region11: #{forward.1} parent=1 // pred_check_branch
      %41 = sbr.rel (0) target = $region13
    $region12: #{forward.1} parent=1 // pred_region
      _
    $region13: #{forward.1} parent=1 // pred_fallthru
      _
    // Predicated region
    $region14: #{forward.1} parent=1 // pred_check
      _
    $region15: #{forward.1} parent=1 // pred_check_branch
      %43 = sbr.rel (0) target = $region17
    $region16: #{forward.1} parent=1 // pred_region
      %s45 = ssub.s32 2048, 2048
      %46 = vsyncadd [#allocation5], %s45
      %s47 = sshll.u32 [#allocation4], 4
      %s48 = int_to_ptr.vmem [resolvable:$true] %s47
      %53 = dma.hbm_to_vmem [thread:$0]  %s3, 2048, %s48, [#allocation5], 256, 256, 16
    $region17: #{forward.1} parent=1 // pred_fallthru
      _
    // Predicated region
    $region18: #{forward.1} parent=1 // pred_check
      _
    $region19: #{forward.1} parent=1 // pred_check_branch
      %55 = sbr.rel (0) target = $region21
    $region20: #{forward.1} parent=1 // pred_region
      %s57 = ssub.s32 64, 64
      %58 = vsyncadd [#allocation5], %s57
      %s60 = sshll.u32 [#allocation6], 4
      %s61 = int_to_ptr.vmem [resolvable:$true] %s60
      %63 = dma.hbm_to_vmem [thread:$0]  %s4, 64, %s61, [#allocation5]
    $region21: #{forward.1} parent=1 // pred_fallthru
      _
    // Predicated region
    $region22: #{forward.1} parent=1 // pred_check
      _
    $region23: #{forward.1} parent=1 // pred_check_branch
      %65 = sbr.rel (0) target = $region25
    $region24: #{forward.1} parent=1 // pred_region
      %s67 = ssub.s32 1024, 1024
      %68 = vsyncadd [#allocation8], %s67
      %s69 = sshll.u32 [#allocation7], 4
      %s70 = int_to_ptr.vmem [resolvable:$true] %s69
      %75 = dma.hbm_to_vmem [thread:$0]  %s5, 1024, %s70, [#allocation8], 512, 512, 32
    $region25: #{forward.1} parent=1 // pred_fallthru
      _
    // Predicated region
    $region26: #{forward.1} parent=1 // pred_check
      _
    $region27: #{forward.1} parent=1 // pred_check_branch
      %77 = sbr.rel (0) target = $region29
    $region28: #{forward.1} parent=1 // pred_region
      %s79 = ssub.s32 4096, 4096
      %80 = vsyncadd [#allocation8], %s79
      %s81 = sshll.u32 [#allocation9], 4
      %s82 = int_to_ptr.vmem [resolvable:$true] %s81
      %87 = dma.hbm_to_vmem [thread:$0]  %s6, 4096, %s82, [#allocation8], 64, 64, 4
    $region29: #{forward.1} parent=1 // pred_fallthru
      _
    // Predicated region
    $region30: #{forward.1} parent=1 // pred_check
      _
    $region31: #{forward.1} parent=1 // pred_check_branch
      %89 = sbr.rel (0) target = $region33
    $region32: #{forward.1} parent=1 // pred_region
      %s91 = ssub.s32 576, 576
      %92 = vsyncadd [#allocation11], %s91
      %s93 = sshll.u32 [#allocation10], 4
      %s94 = int_to_ptr.vmem [resolvable:$true] %s93
      %99 = dma.hbm_to_vmem [thread:$0]  %s7, 576, %s94, [#allocation11], 64, 64, 4
    $region33: #{forward.1} parent=1 // pred_fallthru
      _
    // Predicated region
    $region34: #{forward.1} parent=1 // pred_check
      _
    $region35: #{forward.1} parent=1 // pred_check_branch
      %101 = sbr.rel (0) target = $region37
    $region36: #{forward.1} parent=1 // pred_region
      %s103 = ssub.s32 128, 128
      %104 = vsyncadd [#allocation11], %s103
      %s106 = sshll.u32 [#allocation12], 4
      %s107 = int_to_ptr.vmem [resolvable:$true] %s106
      %109 = dma.hbm_to_vmem [thread:$0]  %s8, 128, %s107, [#allocation11]
    $region37: #{forward.1} parent=1 // pred_fallthru
      _
    // Predicated region
    $region38: #{forward.1} parent=1 // pred_check
      _
    $region39: #{forward.1} parent=1 // pred_check_branch
      %111 = sbr.rel (0) target = $region41
    $region40: #{forward.1} parent=1 // pred_region
      %s113 = ssub.s32 896, 896
      %114 = vsyncadd [#allocation14], %s113
      %s115 = sshll.u32 [#allocation13], 4
      %s116 = int_to_ptr.vmem [resolvable:$true] %s115
      %121 = dma.hbm_to_vmem [thread:$0]  %s9, 896, %s116, [#allocation14], 64, 64, 4
    $region41: #{forward.1} parent=1 // pred_fallthru
      _
    // Predicated region
    $region42: #{forward.1} parent=1 // pred_check
      _
    $region43: #{forward.1} parent=1 // pred_check_branch
      %123 = sbr.rel (0) target = $region45
    $region44: #{forward.1} parent=1 // pred_region
      %s125 = ssub.s32 1024, 1024
      %126 = vsyncadd [#allocation14], %s125
      %s127 = sshll.u32 [#allocation15], 4
      %s128 = int_to_ptr.vmem [resolvable:$true] %s127
      %133 = dma.hbm_to_vmem [thread:$0]  %s10, 1024, %s128, [#allocation14], 64, 64, 4
    $region45: #{forward.1} parent=1 // pred_fallthru
      _
    // Predicated region
    $region46: #{forward.1} parent=1 // pred_check
      _
    $region47: #{forward.1} parent=1 // pred_check_branch
      %135 = sbr.rel (0) target = $region49
    $region48: #{forward.1} parent=1 // pred_region
      _
    $region49: #{forward.1} parent=1 // pred_fallthru
      _
    // Predicated region
    $region50: #{forward.1} parent=1 // pred_check
      _
    $region51: #{forward.1} parent=1 // pred_check_branch
      %137 = sbr.rel (0) target = $region53
    $region52: #{forward.1} parent=1 // pred_region
      %s139 = ssub.s32 14336, 14336
      %140 = vsyncadd [#allocation17], %s139
      %s141 = sshll.u32 [#allocation16], 4
      %s142 = int_to_ptr.vmem [resolvable:$true] %s141
      %147 = dma.hbm_to_vmem [thread:$0]  %s12, 14336, %s142, [#allocation17], 256, 256, 16
    $region53: #{forward.1} parent=1 // pred_fallthru
      _
    // Predicated region
    $region54: #{forward.1} parent=1 // pred_check
      _
    $region55: #{forward.1} parent=1 // pred_check_branch
      %149 = sbr.rel (0) target = $region57
    $region56: #{forward.1} parent=1 // pred_region
      %s151 = ssub.s32 1024, 1024
      %152 = vsyncadd [#allocation17], %s151
      %s153 = sshll.u32 [#allocation18], 4
      %s154 = int_to_ptr.vmem [resolvable:$true] %s153
      %159 = dma.hbm_to_vmem [thread:$0]  %s13, 1024, %s154, [#allocation17], 64, 64, 4
    $region57: #{forward.1} parent=1 // pred_fallthru
      _
    // Predicated region
    $region58: #{forward.1} parent=1 // pred_check
      _
    $region59: #{forward.1} parent=1 // pred_check_branch
      %161 = sbr.rel (0) target = $region61
    $region60: #{forward.1} parent=1 // pred_region
      _
    $region61: #{forward.1} parent=1 // pred_fallthru
      _
    // Predicated region
    $region62: #{forward.1} parent=1 // pred_check
      _
    $region63: #{forward.1} parent=1 // pred_check_branch
      %163 = sbr.rel (0) target = $region65
    $region64: #{forward.1} parent=1 // pred_region
      %164 = dma.done [#allocation3], 128
    $region65: #{forward.1} parent=1 // pred_fallthru
      _
    // Predicated region
    $region66: #{forward.1} parent=1 // pred_check
      _
    $region67: #{forward.1} parent=1 // pred_check_branch
      %166 = sbr.rel (0) target = $region69
    $region68: #{forward.1} parent=1 // pred_region
      %167 = dma.done [#allocation5], 2048
    $region69: #{forward.1} parent=1 // pred_fallthru
      _
    // Predicated region
    $region70: #{forward.1} parent=1 // pred_check
      _
    $region71: #{forward.1} parent=1 // pred_check_branch
      %169 = sbr.rel (0) target = $region73
    $region72: #{forward.1} parent=1 // pred_region
      %170 = dma.done [#allocation5], 64
    $region73: #{forward.1} parent=1 // pred_fallthru
      _
    // Predicated region
    $region74: #{forward.1} parent=1 // pred_check
      _
    $region75: #{forward.1} parent=1 // pred_check_branch
      %172 = sbr.rel (0) target = $region77
    $region76: #{forward.1} parent=1 // pred_region
      %173 = dma.done [#allocation8], 1024
    $region77: #{forward.1} parent=1 // pred_fallthru
      _
    // Predicated region
    $region78: #{forward.1} parent=1 // pred_check
      _
    $region79: #{forward.1} parent=1 // pred_check_branch
      %175 = sbr.rel (0) target = $region81
    $region80: #{forward.1} parent=1 // pred_region
      %176 = dma.done [#allocation8], 4096
    $region81: #{forward.1} parent=1 // pred_fallthru
      _
    // Predicated region
    $region82: #{forward.1} parent=1 // pred_check
      _
    $region83: #{forward.1} parent=1 // pred_check_branch
      %178 = sbr.rel (0) target = $region85
    $region84: #{forward.1} parent=1 // pred_region
      %179 = dma.done [#allocation11], 576
    $region85: #{forward.1} parent=1 // pred_fallthru
      _
    // Predicated region
    $region86: #{forward.1} parent=1 // pred_check
      _
    $region87: #{forward.1} parent=1 // pred_check_branch
      %181 = sbr.rel (0) target = $region89
    $region88: #{forward.1} parent=1 // pred_region
      %182 = dma.done [#allocation11], 128
    $region89: #{forward.1} parent=1 // pred_fallthru
      _
    // Predicated region
    $region90: #{forward.1} parent=1 // pred_check
      _
    $region91: #{forward.1} parent=1 // pred_check_branch
      %184 = sbr.rel (0) target = $region93
    $region92: #{forward.1} parent=1 // pred_region
      %185 = dma.done [#allocation14], 896
    $region93: #{forward.1} parent=1 // pred_fallthru
      _
    // Predicated region
    $region94: #{forward.1} parent=1 // pred_check
      _
    $region95: #{forward.1} parent=1 // pred_check_branch
      %187 = sbr.rel (0) target = $region97
    $region96: #{forward.1} parent=1 // pred_region
      %188 = dma.done [#allocation14], 1024
    $region97: #{forward.1} parent=1 // pred_fallthru
      _
    // Predicated region
    $region98: #{forward.1} parent=1 // pred_check
      _
    $region99: #{forward.1} parent=1 // pred_check_branch
      %190 = sbr.rel (0) target = $region101
    $region100: #{forward.1} parent=1 // pred_region
      %191 = dma.done [#allocation17], 14336
    $region101: #{forward.1} parent=1 // pred_fallthru
      _
    // Predicated region
    $region102: #{forward.1} parent=1 // pred_check
      _
    $region103: #{forward.1} parent=1 // pred_check_branch
      %193 = sbr.rel (0) target = $region105
    $region104: #{forward.1} parent=1 // pred_region
      %194 = dma.done [#allocation17], 1024
    $region105: #{forward.1} parent=1 // pred_fallthru
      _
    %v196 = vld [vmem:[%s0] sm:$0x1]
    %v197 = vpack.c.bf16 %v196, %v196
    %v198 = vld [vmem:[#allocation2] sm:$0xf]
    %v199 = vld [vmem:[#allocation2 + $0x4] sm:$0xf]
    %v200 = vld [vmem:[%s2] sm:$0x1]
    %v203 = vunpack.c.l.b16 %v198
    %v204 = vunpack.c.l.b16 %v199
    %v205 = vpack.c.b16 %v204, %v203
    %vm207 = vcmask 130048
    %v209 = vsel %vm207, %v197, 0
    %211 = vmatprep.subr.bf16.mxu0 0
    %212 = vmatpush1.bf16.msra.mxu0 0
    %213 = vmatprep.subr.bf16.mxu0 0
    %214 = vmatpush1.bf16.msra.mxu0 0
    %215 = vmatprep.subr.bf16.mxu0 0
    %216 = vmatpush1.bf16.msra.mxu0 0
    %217 = vmatprep.subr.bf16.mxu0 0
    %218 = vmatpush1.bf16.msra.mxu0 0
    %219 = vmatprep.subr.bf16.mxu0 0
    %220 = vmatpush1.bf16.msra.mxu0 0
    %221 = vmatprep.subr.bf16.mxu0 0
    %222 = vmatpush1.bf16.msra.mxu0 0
    %223 = vmatprep.subr.bf16.mxu0 0
    %224 = vmatpush1.bf16.msra.mxu0 0
    %225 = vmatprep.subr.bf16.mxu0 0
    %226 = vmatpush1.bf16.msra.mxu0 %v205
    %227 = vmatprep.subr.bf16.mxu0 0
    %228 = vmatpush2.bf16.msra.mxu0 0
    %229 = vmatprep.subr.bf16.mxu0 0
    %230 = vmatpush2.bf16.msra.mxu0 0
    %231 = vmatprep.subr.bf16.mxu0 0
    %232 = vmatpush2.bf16.msra.mxu0 0
    %233 = vmatprep.subr.bf16.mxu0 0
    %234 = vmatpush2.bf16.msra.mxu0 0
    %235 = vmatprep.subr.bf16.mxu0 0
    %236 = vmatpush2.bf16.msra.mxu0 0
    %237 = vmatprep.subr.bf16.mxu0 0
    %238 = vmatpush2.bf16.msra.mxu0 0
    %239 = vmatprep.subr.bf16.mxu0 0
    %240 = vmatpush2.bf16.msra.mxu0 0
    %241 = vmatprep.subr.bf16.mxu0 0
    %242 = vmatpush2.bf16.msra.mxu0 0
    %243 = vmatprep.mubr.bf16.mxu0 0
    %244 = vmatmul.mubr.bf16.gmra.mxu0 %v209
    %v245 = vpop.f32.mrf.mxu0
    %v246 = vadd.f32 %v200, %v245
    %v247 = vpop.f32.mrf.mxu0
    %v248 = vpop.f32.mrf.mxu0
    %v249 = vpop.f32.mrf.mxu0
    %250 = vdwg.mxu0
    %v251 = vmul.f32 %v246, 0.2
    %v252 = vmax.f32 %v246, %v251
    %v253 = vpack.c.bf16 %v252, %v252
    %v254 = vld [vmem:[#allocation4] sm:$0xff]
    %v255 = vld [vmem:[#allocation4 + $0x8] sm:$0xff]
    %v256 = vld [vmem:[#allocation4 + $0x10] sm:$0xff]
    %v257 = vld [vmem:[#allocation4 + $0x18] sm:$0xff]
    %v258 = vld [vmem:[#allocation4 + $0x20] sm:$0xff]
    %v259 = vld [vmem:[#allocation4 + $0x28] sm:$0xff]
    %v260 = vld [vmem:[#allocation4 + $0x30] sm:$0xff]
    %v261 = vld [vmem:[#allocation4 + $0x38] sm:$0xff]
    %v262 = vld [vmem:[#allocation4 + $0x40] sm:$0xff]
    %v263 = vld [vmem:[#allocation4 + $0x48] sm:$0xff]
    %v264 = vld [vmem:[#allocation4 + $0x50] sm:$0xff]
    %v265 = vld [vmem:[#allocation4 + $0x58] sm:$0xff]
    %v266 = vld [vmem:[#allocation4 + $0x60] sm:$0xff]
    %v267 = vld [vmem:[#allocation4 + $0x68] sm:$0xff]
    %v268 = vld [vmem:[#allocation4 + $0x70] sm:$0xff]
    %v269 = vld [vmem:[#allocation4 + $0x78] sm:$0xff]
    %v270 = vld [vmem:[#allocation6] sm:$0xf]
    %v287 = vunpack.c.l.b16 %v254
    %v288 = vunpack.c.h.b16 %v254
    %v289 = vunpack.c.l.b16 %v255
    %v290 = vunpack.c.h.b16 %v255
    %v291 = vunpack.c.l.b16 %v256
    %v292 = vunpack.c.h.b16 %v256
    %v293 = vunpack.c.l.b16 %v257
    %v294 = vunpack.c.h.b16 %v257
    %v295 = vunpack.c.l.b16 %v258
    %v296 = vunpack.c.h.b16 %v258
    %v297 = vunpack.c.l.b16 %v259
    %v298 = vunpack.c.h.b16 %v259
    %v299 = vunpack.c.l.b16 %v260
    %v300 = vunpack.c.h.b16 %v260
    %v301 = vunpack.c.l.b16 %v261
    %v302 = vunpack.c.h.b16 %v261
    %v303 = vunpack.c.l.b16 %v262
    %v304 = vunpack.c.h.b16 %v262
    %v305 = vunpack.c.l.b16 %v263
    %v306 = vunpack.c.h.b16 %v263
    %v307 = vunpack.c.l.b16 %v264
    %v308 = vunpack.c.h.b16 %v264
    %v309 = vunpack.c.l.b16 %v265
    %v310 = vunpack.c.h.b16 %v265
    %v311 = vunpack.c.l.b16 %v266
    %v312 = vunpack.c.h.b16 %v266
    %v313 = vunpack.c.l.b16 %v267
    %v314 = vunpack.c.h.b16 %v267
    %v315 = vunpack.c.l.b16 %v268
    %v316 = vunpack.c.h.b16 %v268
    %v317 = vunpack.c.l.b16 %v269
    %v318 = vunpack.c.h.b16 %v269
    %v319 = vpack.c.b16 %v291, %v287
    %v320 = vpack.c.b16 %v292, %v288
    %v321 = vpack.c.b16 %v293, %v289
    %v322 = vpack.c.b16 %v294, %v290
    %v323 = vpack.c.b16 %v299, %v295
    %v324 = vpack.c.b16 %v300, %v296
    %v325 = vpack.c.b16 %v301, %v297
    %v326 = vpack.c.b16 %v302, %v298
    %v327 = vpack.c.b16 %v307, %v303
    %v328 = vpack.c.b16 %v308, %v304
    %v329 = vpack.c.b16 %v309, %v305
    %v330 = vpack.c.b16 %v310, %v306
    %v331 = vpack.c.b16 %v315, %v311
    %v332 = vpack.c.b16 %v316, %v312
    %v333 = vpack.c.b16 %v317, %v313
    %v334 = vpack.c.b16 %v318, %v314
    %v352 = vlaneseq
    %v353 = vshrl.u32 %v352, 7
    %v354 = vsub.s32 0, %v353
    %v355 = vrot.slane %v270, %v354
    %v356 = vlaneseq
    %v357 = vshrl.u32 %v356, 7
    %v358 = vsub.s32 1, %v357
    %v359 = vrot.slane %v270, %v358
    %v360 = vlaneseq
    %v361 = vshrl.u32 %v360, 7
    %v362 = vsub.s32 2, %v361
    %v363 = vrot.slane %v270, %v362
    %v364 = vlaneseq
    %v365 = vshrl.u32 %v364, 7
    %v366 = vsub.s32 3, %v365
    %v367 = vrot.slane %v270, %v366
    %vm372 = vcmask 523264
    %v374 = vsel %vm372, %v253, 0
    %376 = vmatprep.subr.bf16.mxu0 0
    %377 = vmatpush1.bf16.msra.mxu0 0
    %378 = vmatprep.subr.bf16.mxu0 0
    %379 = vmatpush1.bf16.msra.mxu0 0
    %380 = vmatprep.subr.bf16.mxu0 0
    %381 = vmatpush1.bf16.msra.mxu0 0
    %382 = vmatprep.subr.bf16.mxu0 0
    %383 = vmatpush1.bf16.msra.mxu0 0
    %384 = vmatprep.subr.bf16.mxu0 %v332
    %385 = vmatpush1.bf16.msra.mxu0 %v331
    %386 = vmatprep.subr.bf16.mxu0 %v328
    %387 = vmatpush1.bf16.msra.mxu0 %v327
    %388 = vmatprep.subr.bf16.mxu0 %v324
    %389 = vmatpush1.bf16.msra.mxu0 %v323
    %390 = vmatprep.subr.bf16.mxu0 %v320
    %391 = vmatpush1.bf16.msra.mxu0 %v319
    %392 = vmatprep.subr.bf16.mxu0 0
    %393 = vmatpush2.bf16.msra.mxu0 0
    %394 = vmatprep.subr.bf16.mxu0 0
    %395 = vmatpush2.bf16.msra.mxu0 0
    %396 = vmatprep.subr.bf16.mxu0 0
    %397 = vmatpush2.bf16.msra.mxu0 0
    %398 = vmatprep.subr.bf16.mxu0 0
    %399 = vmatpush2.bf16.msra.mxu0 0
    %400 = vmatprep.subr.bf16.mxu0 0
    %401 = vmatpush2.bf16.msra.mxu0 0
    %402 = vmatprep.subr.bf16.mxu0 0
    %403 = vmatpush2.bf16.msra.mxu0 0
    %404 = vmatprep.subr.bf16.mxu0 0
    %405 = vmatpush2.bf16.msra.mxu0 0
    %406 = vmatprep.subr.bf16.mxu0 0
    %407 = vmatpush2.bf16.msra.mxu0 0
    %408 = vmatprep.mubr.bf16.mxu0 0
    %409 = vmatmul.mubr.bf16.gmra.mxu0 %v374
    %v410 = vpop.f32.mrf.mxu0
    %v411 = vadd.f32 %v355, %v410
    %v412 = vpop.f32.mrf.mxu0
    %v413 = vadd.f32 %v359, %v412
    %v414 = vpop.f32.mrf.mxu0
    %v415 = vpop.f32.mrf.mxu0
    %416 = vdwg.mxu0
    %417 = vmatprep.subr.bf16.mxu0 0
    %418 = vmatpush1.bf16.msra.mxu0 0
    %419 = vmatprep.subr.bf16.mxu0 0
    %420 = vmatpush1.bf16.msra.mxu0 0
    %421 = vmatprep.subr.bf16.mxu0 0
    %422 = vmatpush1.bf16.msra.mxu0 0
    %423 = vmatprep.subr.bf16.mxu0 0
    %424 = vmatpush1.bf16.msra.mxu0 0
    %425 = vmatprep.subr.bf16.mxu0 %v334
    %426 = vmatpush1.bf16.msra.mxu0 %v333
    %427 = vmatprep.subr.bf16.mxu0 %v330
    %428 = vmatpush1.bf16.msra.mxu0 %v329
    %429 = vmatprep.subr.bf16.mxu0 %v326
    %430 = vmatpush1.bf16.msra.mxu0 %v325
    %431 = vmatprep.subr.bf16.mxu0 %v322
    %432 = vmatpush1.bf16.msra.mxu0 %v321
    %433 = vmatprep.subr.bf16.mxu0 0
    %434 = vmatpush2.bf16.msra.mxu0 0
    %435 = vmatprep.subr.bf16.mxu0 0
    %436 = vmatpush2.bf16.msra.mxu0 0
    %437 = vmatprep.subr.bf16.mxu0 0
    %438 = vmatpush2.bf16.msra.mxu0 0
    %439 = vmatprep.subr.bf16.mxu0 0
    %440 = vmatpush2.bf16.msra.mxu0 0
    %441 = vmatprep.subr.bf16.mxu0 0
    %442 = vmatpush2.bf16.msra.mxu0 0
    %443 = vmatprep.subr.bf16.mxu0 0
    %444 = vmatpush2.bf16.msra.mxu0 0
    %445 = vmatprep.subr.bf16.mxu0 0
    %446 = vmatpush2.bf16.msra.mxu0 0
    %447 = vmatprep.subr.bf16.mxu0 0
    %448 = vmatpush2.bf16.msra.mxu0 0
    %449 = vmatprep.mubr.bf16.mxu0 0
    %450 = vmatmul.mubr.bf16.gmra.mxu0 %v374
    %v451 = vpop.f32.mrf.mxu0
    %v452 = vadd.f32 %v363, %v451
    %v453 = vpop.f32.mrf.mxu0
    %v454 = vadd.f32 %v367, %v453
    %v455 = vpop.f32.mrf.mxu0
    %v456 = vpop.f32.mrf.mxu0
    %457 = vdwg.mxu0
    %v458 = vmul.f32 %v411, 0.2
    %v459 = vmul.f32 %v413, 0.2
    %v460 = vmul.f32 %v452, 0.2
    %v461 = vmul.f32 %v454, 0.2
    %v462 = vmax.f32 %v411, %v458
    %v463 = vmax.f32 %v413, %v459
    %v464 = vmax.f32 %v452, %v460
    %v465 = vmax.f32 %v454, %v461
    %v466 = vld [vmem:[#allocation7] sm:$0xff]
    %v467 = vld [vmem:[#allocation7 + $0x8] sm:$0xff]
    %v468 = vld [vmem:[#allocation7 + $0x10] sm:$0xff]
    %v469 = vld [vmem:[#allocation7 + $0x18] sm:$0xff]
    %v470 = vld [vmem:[#allocation7 + $0x20] sm:$0xff]
    %v471 = vld [vmem:[#allocation7 + $0x28] sm:$0xff]
    %v472 = vld [vmem:[#allocation7 + $0x30] sm:$0xff]
    %v473 = vld [vmem:[#allocation7 + $0x38] sm:$0xff]
    %v474 = vlaneseq
    %v475 = vshrl.u32 %v474, 7
    %v476 = vsub.s32 0, %v475
    %v477 = vrot.slane %v462, %v476
    %v478 = vlaneseq
    %v479 = vshrl.u32 %v478, 7
    %v480 = vsub.s32 0, %v479
    %v481 = vrot.slane %v463, %v480
    %v482 = vlaneseq
    %v483 = vshrl.u32 %v482, 7
    %v484 = vsub.s32 0, %v483
    %v485 = vrot.slane %v464, %v484
    %v486 = vlaneseq
    %v487 = vshrl.u32 %v486, 7
    %v488 = vsub.s32 0, %v487
    %v489 = vrot.slane %v465, %v488
    %v490 = vmul.f32 %v466, %v477
    %v491 = vmul.f32 %v467, %v481
    %v492 = vmul.f32 %v468, %v485
    %v493 = vmul.f32 %v469, %v489
    %v494 = vmul.f32 %v470, %v477
    %v495 = vmul.f32 %v471, %v481
    %v496 = vmul.f32 %v472, %v485
    %v497 = vmul.f32 %v473, %v489
    %v498 = vpack.c.bf16 %v494, %v490
    %v499 = vpack.c.bf16 %v495, %v491
    %v500 = vpack.c.bf16 %v496, %v492
    %v501 = vpack.c.bf16 %v497, %v493
    %v502 = vld [vmem:[#allocation9] sm:$0xf]
    %v503 = vld [vmem:[#allocation9 + $0x4] sm:$0xf]
    %v504 = vld [vmem:[#allocation9 + $0x8] sm:$0xf]
    %v505 = vld [vmem:[#allocation9 + $0xc] sm:$0xf]
    %v506 = vld [vmem:[#allocation9 + $0x10] sm:$0xf]
    %v507 = vld [vmem:[#allocation9 + $0x14] sm:$0xf]
    %v508 = vld [vmem:[#allocation9 + $0x18] sm:$0xf]
    %v509 = vld [vmem:[#allocation9 + $0x1c] sm:$0xf]
    %v510 = vld [vmem:[#allocation9 + $0x20] sm:$0xf]
    %v511 = vld [vmem:[#allocation9 + $0x24] sm:$0xf]
    %v512 = vld [vmem:[#allocation9 + $0x28] sm:$0xf]
    %v513 = vld [vmem:[#allocation9 + $0x2c] sm:$0xf]
    %v514 = vld [vmem:[#allocation9 + $0x30] sm:$0xf]
    %v515 = vld [vmem:[#allocation9 + $0x34] sm:$0xf]
    %v516 = vld [vmem:[#allocation9 + $0x38] sm:$0xf]
    %v517 = vld [vmem:[#allocation9 + $0x3c] sm:$0xf]
    %v518 = vld [vmem:[#allocation9 + $0x40] sm:$0xf]
    %v519 = vld [vmem:[#allocation9 + $0x44] sm:$0xf]
    %v520 = vld [vmem:[#allocation9 + $0x48] sm:$0xf]
    %v521 = vld [vmem:[#allocation9 + $0x4c] sm:$0xf]
    %v522 = vld [vmem:[#allocation9 + $0x50] sm:$0xf]
    %v523 = vld [vmem:[#allocation9 + $0x54] sm:$0xf]
    %v524 = vld [vmem:[#allocation9 + $0x58] sm:$0xf]
    %v525 = vld [vmem:[#allocation9 + $0x5c] sm:$0xf]
    %v526 = vld [vmem:[#allocation9 + $0x60] sm:$0xf]
    %v527 = vld [vmem:[#allocation9 + $0x64] sm:$0xf]
    %v528 = vld [vmem:[#allocation9 + $0x68] sm:$0xf]
    %v529 = vld [vmem:[#allocation9 + $0x6c] sm:$0xf]
    %v530 = vld [vmem:[#allocation9 + $0x70] sm:$0xf]
    %v531 = vld [vmem:[#allocation9 + $0x74] sm:$0xf]
    %v532 = vld [vmem:[#allocation9 + $0x78] sm:$0xf]
    %v533 = vld [vmem:[#allocation9 + $0x7c] sm:$0xf]
    %v534 = vld [vmem:[#allocation9 + $0x80] sm:$0xf]
    %v535 = vld [vmem:[#allocation9 + $0x84] sm:$0xf]
    %v536 = vld [vmem:[#allocation9 + $0x88] sm:$0xf]
    %v537 = vld [vmem:[#allocation9 + $0x8c] sm:$0xf]
    %v538 = vld [vmem:[#allocation9 + $0x90] sm:$0xf]
    %v539 = vld [vmem:[#allocation9 + $0x94] sm:$0xf]
    %v540 = vld [vmem:[#allocation9 + $0x98] sm:$0xf]
    %v541 = vld [vmem:[#allocation9 + $0x9c] sm:$0xf]
    %v542 = vld [vmem:[#allocation9 + $0xa0] sm:$0xf]
    %v543 = vld [vmem:[#allocation9 + $0xa4] sm:$0xf]
    %v544 = vld [vmem:[#allocation9 + $0xa8] sm:$0xf]
    %v545 = vld [vmem:[#allocation9 + $0xac] sm:$0xf]
    %v546 = vld [vmem:[#allocation9 + $0xb0] sm:$0xf]
    %v547 = vld [vmem:[#allocation9 + $0xb4] sm:$0xf]
    %v548 = vld [vmem:[#allocation9 + $0xb8] sm:$0xf]
    %v549 = vld [vmem:[#allocation9 + $0xbc] sm:$0xf]
    %v550 = vld [vmem:[#allocation9 + $0xc0] sm:$0xf]
    %v551 = vld [vmem:[#allocation9 + $0xc4] sm:$0xf]
    %v552 = vld [vmem:[#allocation9 + $0xc8] sm:$0xf]
    %v553 = vld [vmem:[#allocation9 + $0xcc] sm:$0xf]
    %v554 = vld [vmem:[#allocation9 + $0xd0] sm:$0xf]
    %v555 = vld [vmem:[#allocation9 + $0xd4] sm:$0xf]
    %v556 = vld [vmem:[#allocation9 + $0xd8] sm:$0xf]
    %v557 = vld [vmem:[#allocation9 + $0xdc] sm:$0xf]
    %v558 = vld [vmem:[#allocation9 + $0xe0] sm:$0xf]
    %v559 = vld [vmem:[#allocation9 + $0xe4] sm:$0xf]
    %v560 = vld [vmem:[#allocation9 + $0xe8] sm:$0xf]
    %v561 = vld [vmem:[#allocation9 + $0xec] sm:$0xf]
    %v562 = vld [vmem:[#allocation9 + $0xf0] sm:$0xf]
    %v563 = vld [vmem:[#allocation9 + $0xf4] sm:$0xf]
    %v564 = vld [vmem:[#allocation9 + $0xf8] sm:$0xf]
    %v565 = vld [vmem:[#allocation9 + $0xfc] sm:$0xf]
    %v630 = vunpack.c.l.b16 %v502
    %v631 = vunpack.c.l.b16 %v503
    %v632 = vunpack.c.l.b16 %v504
    %v633 = vunpack.c.l.b16 %v505
    %v634 = vunpack.c.l.b16 %v506
    %v635 = vunpack.c.l.b16 %v507
    %v636 = vunpack.c.l.b16 %v508
    %v637 = vunpack.c.l.b16 %v509
    %v638 = vunpack.c.l.b16 %v510
    %v639 = vunpack.c.l.b16 %v511
    %v640 = vunpack.c.l.b16 %v512
    %v641 = vunpack.c.l.b16 %v513
    %v642 = vunpack.c.l.b16 %v514
    %v643 = vunpack.c.l.b16 %v515
    %v644 = vunpack.c.l.b16 %v516
    %v645 = vunpack.c.l.b16 %v517
    %v646 = vunpack.c.l.b16 %v518
    %v647 = vunpack.c.l.b16 %v519
    %v648 = vunpack.c.l.b16 %v520
    %v649 = vunpack.c.l.b16 %v521
    %v650 = vunpack.c.l.b16 %v522
    %v651 = vunpack.c.l.b16 %v523
    %v652 = vunpack.c.l.b16 %v524
    %v653 = vunpack.c.l.b16 %v525
    %v654 = vunpack.c.l.b16 %v526
    %v655 = vunpack.c.l.b16 %v527
    %v656 = vunpack.c.l.b16 %v528
    %v657 = vunpack.c.l.b16 %v529
    %v658 = vunpack.c.l.b16 %v530
    %v659 = vunpack.c.l.b16 %v531
    %v660 = vunpack.c.l.b16 %v532
    %v661 = vunpack.c.l.b16 %v533
    %v662 = vunpack.c.l.b16 %v534
    %v663 = vunpack.c.l.b16 %v535
    %v664 = vunpack.c.l.b16 %v536
    %v665 = vunpack.c.l.b16 %v537
    %v666 = vunpack.c.l.b16 %v538
    %v667 = vunpack.c.l.b16 %v539
    %v668 = vunpack.c.l.b16 %v540
    %v669 = vunpack.c.l.b16 %v541
    %v670 = vunpack.c.l.b16 %v542
    %v671 = vunpack.c.l.b16 %v543
    %v672 = vunpack.c.l.b16 %v544
    %v673 = vunpack.c.l.b16 %v545
    %v674 = vunpack.c.l.b16 %v546
    %v675 = vunpack.c.l.b16 %v547
    %v676 = vunpack.c.l.b16 %v548
    %v677 = vunpack.c.l.b16 %v549
    %v678 = vunpack.c.l.b16 %v550
    %v679 = vunpack.c.l.b16 %v551
    %v680 = vunpack.c.l.b16 %v552
    %v681 = vunpack.c.l.b16 %v553
    %v682 = vunpack.c.l.b16 %v554
    %v683 = vunpack.c.l.b16 %v555
    %v684 = vunpack.c.l.b16 %v556
    %v685 = vunpack.c.l.b16 %v557
    %v686 = vunpack.c.l.b16 %v558
    %v687 = vunpack.c.l.b16 %v559
    %v688 = vunpack.c.l.b16 %v560
    %v689 = vunpack.c.l.b16 %v561
    %v690 = vunpack.c.l.b16 %v562
    %v691 = vunpack.c.l.b16 %v563
    %v692 = vunpack.c.l.b16 %v564
    %v693 = vunpack.c.l.b16 %v565
    %v694 = vpack.c.b16 %v631, %v630
    %v695 = vpack.c.b16 %v633, %v632
    %v696 = vpack.c.b16 %v635, %v634
    %v697 = vpack.c.b16 %v637, %v636
    %v698 = vpack.c.b16 %v639, %v638
    %v699 = vpack.c.b16 %v641, %v640
    %v700 = vpack.c.b16 %v643, %v642
    %v701 = vpack.c.b16 %v645, %v644
    %v702 = vpack.c.b16 %v647, %v646
    %v703 = vpack.c.b16 %v649, %v648
    %v704 = vpack.c.b16 %v651, %v650
    %v705 = vpack.c.b16 %v653, %v652
    %v706 = vpack.c.b16 %v655, %v654
    %v707 = vpack.c.b16 %v657, %v656
    %v708 = vpack.c.b16 %v659, %v658
    %v709 = vpack.c.b16 %v661, %v660
    %v710 = vpack.c.b16 %v663, %v662
    %v711 = vpack.c.b16 %v665, %v664
    %v712 = vpack.c.b16 %v667, %v666
    %v713 = vpack.c.b16 %v669, %v668
    %v714 = vpack.c.b16 %v671, %v670
    %v715 = vpack.c.b16 %v673, %v672
    %v716 = vpack.c.b16 %v675, %v674
    %v717 = vpack.c.b16 %v677, %v676
    %v718 = vpack.c.b16 %v679, %v678
    %v719 = vpack.c.b16 %v681, %v680
    %v720 = vpack.c.b16 %v683, %v682
    %v721 = vpack.c.b16 %v685, %v684
    %v722 = vpack.c.b16 %v687, %v686
    %v723 = vpack.c.b16 %v689, %v688
    %v724 = vpack.c.b16 %v691, %v690
    %v725 = vpack.c.b16 %v693, %v692
    %758 = vmatprep.subr.bf16.mxu0 0
    %759 = vmatpush1.bf16.msra.mxu0 %v701
    %760 = vmatprep.subr.bf16.mxu0 0
    %761 = vmatpush1.bf16.msra.mxu0 %v700
    %762 = vmatprep.subr.bf16.mxu0 0
    %763 = vmatpush1.bf16.msra.mxu0 %v699
    %764 = vmatprep.subr.bf16.mxu0 0
    %765 = vmatpush1.bf16.msra.mxu0 %v698
    %766 = vmatprep.subr.bf16.mxu0 0
    %767 = vmatpush1.bf16.msra.mxu0 %v697
    %768 = vmatprep.subr.bf16.mxu0 0
    %769 = vmatpush1.bf16.msra.mxu0 %v696
    %770 = vmatprep.subr.bf16.mxu0 0
    %771 = vmatpush1.bf16.msra.mxu0 %v695
    %772 = vmatprep.subr.bf16.mxu0 0
    %773 = vmatpush1.bf16.msra.mxu0 %v694
    %774 = vmatprep.subr.bf16.mxu0 0
    %775 = vmatpush2.bf16.msra.mxu0 %v709
    %776 = vmatprep.subr.bf16.mxu0 0
    %777 = vmatpush2.bf16.msra.mxu0 %v708
    %778 = vmatprep.subr.bf16.mxu0 0
    %779 = vmatpush2.bf16.msra.mxu0 %v707
    %780 = vmatprep.subr.bf16.mxu0 0
    %781 = vmatpush2.bf16.msra.mxu0 %v706
    %782 = vmatprep.subr.bf16.mxu0 0
    %783 = vmatpush2.bf16.msra.mxu0 %v705
    %784 = vmatprep.subr.bf16.mxu0 0
    %785 = vmatpush2.bf16.msra.mxu0 %v704
    %786 = vmatprep.subr.bf16.mxu0 0
    %787 = vmatpush2.bf16.msra.mxu0 %v703
    %788 = vmatprep.subr.bf16.mxu0 0
    %789 = vmatpush2.bf16.msra.mxu0 %v702
    %790 = vmatprep.mubr.bf16.mxu0 %v499
    %791 = vmatmul.mubr.bf16.gmra.mxu0 %v498
    %v792 = vpop.f32.mrf.mxu0
    %v793 = vadd.f32 0.0, %v792
    %v794 = vpop.f32.mrf.mxu0
    %v795 = vpop.f32.mrf.mxu0
    %v796 = vadd.f32 0.0, %v795
    %v797 = vpop.f32.mrf.mxu0
    %798 = vdwg.mxu0
    %799 = vmatprep.subr.bf16.mxu0 0
    %800 = vmatpush1.bf16.msra.mxu0 %v717
    %801 = vmatprep.subr.bf16.mxu0 0
    %802 = vmatpush1.bf16.msra.mxu0 %v716
    %803 = vmatprep.subr.bf16.mxu0 0
    %804 = vmatpush1.bf16.msra.mxu0 %v715
    %805 = vmatprep.subr.bf16.mxu0 0
    %806 = vmatpush1.bf16.msra.mxu0 %v714
    %807 = vmatprep.subr.bf16.mxu0 0
    %808 = vmatpush1.bf16.msra.mxu0 %v713
    %809 = vmatprep.subr.bf16.mxu0 0
    %810 = vmatpush1.bf16.msra.mxu0 %v712
    %811 = vmatprep.subr.bf16.mxu0 0
    %812 = vmatpush1.bf16.msra.mxu0 %v711
    %813 = vmatprep.subr.bf16.mxu0 0
    %814 = vmatpush1.bf16.msra.mxu0 %v710
    %815 = vmatprep.subr.bf16.mxu0 0
    %816 = vmatpush2.bf16.msra.mxu0 %v725
    %817 = vmatprep.subr.bf16.mxu0 0
    %818 = vmatpush2.bf16.msra.mxu0 %v724
    %819 = vmatprep.subr.bf16.mxu0 0
    %820 = vmatpush2.bf16.msra.mxu0 %v723
    %821 = vmatprep.subr.bf16.mxu0 0
    %822 = vmatpush2.bf16.msra.mxu0 %v722
    %823 = vmatprep.subr.bf16.mxu0 0
    %824 = vmatpush2.bf16.msra.mxu0 %v721
    %825 = vmatprep.subr.bf16.mxu0 0
    %826 = vmatpush2.bf16.msra.mxu0 %v720
    %827 = vmatprep.subr.bf16.mxu0 0
    %828 = vmatpush2.bf16.msra.mxu0 %v719
    %829 = vmatprep.subr.bf16.mxu0 0
    %830 = vmatpush2.bf16.msra.mxu0 %v718
    %831 = vmatprep.mubr.bf16.mxu0 %v501
    %832 = vmatmul.mubr.bf16.gmra.mxu0 %v500
    %v833 = vpop.f32.mrf.mxu0
    %v834 = vadd.f32 %v793, %v833
    %v835 = vpop.f32.mrf.mxu0
    %v836 = vpop.f32.mrf.mxu0
    %v837 = vadd.f32 %v796, %v836
    %v838 = vpop.f32.mrf.mxu0
    %839 = vdwg.mxu0
    %v840 = vpack.c.bf16 %v837, %v834
    %v841 = vld [vmem:[#allocation10] sm:$0xf]
    %v842 = vld [vmem:[#allocation10 + $0x4] sm:$0xf]
    %v843 = vld [vmem:[#allocation10 + $0x8] sm:$0xf]
    %v844 = vld [vmem:[#allocation10 + $0xc] sm:$0xf]
    %v845 = vld [vmem:[#allocation10 + $0x10] sm:$0xf]
    %v846 = vld [vmem:[#allocation10 + $0x14] sm:$0xf]
    %v847 = vld [vmem:[#allocation10 + $0x18] sm:$0xf]
    %v848 = vld [vmem:[#allocation10 + $0x1c] sm:$0xf]
    %v849 = vld [vmem:[#allocation10 + $0x20] sm:$0xf]
    %v859 = vunpack.c.l.b16 %v841
    %v860 = vunpack.c.l.b16 %v842
    %v861 = vunpack.c.l.b16 %v843
    %v862 = vunpack.c.l.b16 %v844
    %v863 = vunpack.c.l.b16 %v845
    %v864 = vunpack.c.l.b16 %v846
    %v865 = vunpack.c.l.b16 %v847
    %v866 = vunpack.c.l.b16 %v848
    %v867 = vunpack.c.l.b16 %v849
    %v868 = vpack.c.b16 %v860, %v859
    %v869 = vpack.c.b16 %v862, %v861
    %v870 = vpack.c.b16 %v864, %v863
    %v871 = vpack.c.b16 %v866, %v865
    %v872 = vpack.c.b16 %v867, %v867
    %v874 = vsel %vm207, %v868, 0
    %v877 = vsel %vm207, %v869, 0
    %v880 = vsel %vm207, %v870, 0
    %v883 = vsel %vm207, %v871, 0
    %v886 = vsel %vm207, %v872, 0
    %888 = vmatprep.subr.bf16.mxu0 0
    %889 = vmatpush1.bf16.msra.mxu0 0
    %890 = vmatprep.subr.bf16.mxu0 0
    %891 = vmatpush1.bf16.msra.mxu0 0
    %892 = vmatprep.subr.bf16.mxu0 0
    %893 = vmatpush1.bf16.msra.mxu0 0
    %894 = vmatprep.subr.bf16.mxu0 0
    %895 = vmatpush1.bf16.msra.mxu0 0
    %896 = vmatprep.subr.bf16.mxu0 0
    %897 = vmatpush1.bf16.msra.mxu0 0
    %898 = vmatprep.subr.bf16.mxu0 0
    %899 = vmatpush1.bf16.msra.mxu0 0
    %900 = vmatprep.subr.bf16.mxu0 0
    %901 = vmatpush1.bf16.msra.mxu0 0
    %902 = vmatprep.subr.bf16.mxu0 0
    %903 = vmatpush1.bf16.msra.mxu0 %v840
    %904 = vmatprep.subr.bf16.mxu0 0
    %905 = vmatpush2.bf16.msra.mxu0 0
    %906 = vmatprep.subr.bf16.mxu0 0
    %907 = vmatpush2.bf16.msra.mxu0 0
    %908 = vmatprep.subr.bf16.mxu0 0
    %909 = vmatpush2.bf16.msra.mxu0 0
    %910 = vmatprep.subr.bf16.mxu0 0
    %911 = vmatpush2.bf16.msra.mxu0 0
    %912 = vmatprep.subr.bf16.mxu0 0
    %913 = vmatpush2.bf16.msra.mxu0 0
    %914 = vmatprep.subr.bf16.mxu0 0
    %915 = vmatpush2.bf16.msra.mxu0 0
    %916 = vmatprep.subr.bf16.mxu0 0
    %917 = vmatpush2.bf16.msra.mxu0 0
    %918 = vmatprep.subr.bf16.mxu0 0
    %919 = vmatpush2.bf16.msra.mxu0 0
    %920 = vmatprep.mubr.bf16.mxu0 0
    %921 = vmatmul.mubr.bf16.gmra.mxu0 %v874
    %v922 = vpop.f32.mrf.mxu0
    %v923 = vadd.f32 0.0, %v922
    %v924 = vpop.f32.mrf.mxu0
    %v925 = vpop.f32.mrf.mxu0
    %v926 = vadd.f32 0.0, %v925
    %v927 = vpop.f32.mrf.mxu0
    %928 = vmatprep.mubr.bf16.mxu0 0
    %929 = vmatmul.mubr.bf16.gmra.mxu0 %v877
    %v930 = vpop.f32.mrf.mxu0
    %v931 = vadd.f32 0.0, %v930
    %v932 = vpop.f32.mrf.mxu0
    %v933 = vpop.f32.mrf.mxu0
    %v934 = vadd.f32 0.0, %v933
    %v935 = vpop.f32.mrf.mxu0
    %936 = vmatprep.mubr.bf16.mxu0 0
    %937 = vmatmul.mubr.bf16.gmra.mxu0 %v880
    %v938 = vpop.f32.mrf.mxu0
    %v939 = vadd.f32 0.0, %v938
    %v940 = vpop.f32.mrf.mxu0
    %v941 = vpop.f32.mrf.mxu0
    %v942 = vadd.f32 0.0, %v941
    %v943 = vpop.f32.mrf.mxu0
    %944 = vmatprep.mubr.bf16.mxu0 0
    %945 = vmatmul.mubr.bf16.gmra.mxu0 %v883
    %v946 = vpop.f32.mrf.mxu0
    %v947 = vadd.f32 0.0, %v946
    %v948 = vpop.f32.mrf.mxu0
    %v949 = vpop.f32.mrf.mxu0
    %v950 = vadd.f32 0.0, %v949
    %v951 = vpop.f32.mrf.mxu0
    %952 = vmatprep.mubr.bf16.mxu0 0
    %953 = vmatmul.mubr.bf16.gmra.mxu0 %v886
    %v954 = vpop.f32.mrf.mxu0
    %v955 = vadd.f32 0.0, %v954
    %v956 = vpop.f32.mrf.mxu0
    %v957 = vpop.f32.mrf.mxu0
    %v958 = vpop.f32.mrf.mxu0
    %959 = vdwg.mxu0
    %961 = vrot.lane.b32.xlu0 %v926, 1
    %v962 = vpop.permute.xlu0 %961
    %v964 = vadd.f32 %v923, %v962
    %966 = vrot.lane.b32.xlu0 %v931, 2
    %v967 = vpop.permute.xlu0 %966
    %v969 = vadd.f32 %v964, %v967
    %971 = vrot.lane.b32.xlu0 %v934, 8
    %v972 = vpop.permute.xlu0 %971
    %v974 = vadd.f32 %v969, %v972
    %976 = vrot.lane.b32.xlu0 %v939, 9
    %v977 = vpop.permute.xlu0 %976
    %v979 = vadd.f32 %v974, %v977
    %981 = vrot.lane.b32.xlu0 %v942, 10
    %v982 = vpop.permute.xlu0 %981
    %v984 = vadd.f32 %v979, %v982
    %986 = vrot.lane.b32.xlu0 %v947, 16
    %v987 = vpop.permute.xlu0 %986
    %v989 = vadd.f32 %v984, %v987
    %991 = vrot.lane.b32.xlu0 %v950, 17
    %v992 = vpop.permute.xlu0 %991
    %v994 = vadd.f32 %v989, %v992
    %996 = vrot.lane.b32.xlu0 %v955, 18
    %v997 = vpop.permute.xlu0 %996
    %v999 = vadd.f32 %v994, %v997
    %v1000 = vld [vmem:[#allocation12] sm:$0xff]
    %1002 = vset.pattern.permute.xlu0 0
    %1003 = vperm.xlu0 %1002, %v1000
    %v1004 = vpop.permute.xlu0 %1003
    %v1006 = vadd.f32 %v999, %v1004
    %v1007 = vmul.f32 %v1006, 0.2
    %v1008 = vmax.f32 %v1006, %v1007
    %v1009 = vpack.c.bf16 %v1008, %v1008
    %v1010 = vld [vmem:[#allocation13] sm:$0xf]
    %v1011 = vld [vmem:[#allocation13 + $0x4] sm:$0xf]
    %v1012 = vld [vmem:[#allocation13 + $0x8] sm:$0xf]
    %v1013 = vld [vmem:[#allocation13 + $0xc] sm:$0xf]
    %v1014 = vld [vmem:[#allocation13 + $0x10] sm:$0xf]
    %v1015 = vld [vmem:[#allocation13 + $0x14] sm:$0xf]
    %v1016 = vld [vmem:[#allocation13 + $0x18] sm:$0xf]
    %v1017 = vld [vmem:[#allocation13 + $0x1c] sm:$0xf]
    %v1018 = vld [vmem:[#allocation13 + $0x20] sm:$0xf]
    %v1019 = vld [vmem:[#allocation13 + $0x24] sm:$0xf]
    %v1020 = vld [vmem:[#allocation13 + $0x28] sm:$0xf]
    %v1021 = vld [vmem:[#allocation13 + $0x2c] sm:$0xf]
    %v1022 = vld [vmem:[#allocation13 + $0x30] sm:$0xf]
    %v1023 = vld [vmem:[#allocation13 + $0x34] sm:$0x7]
    %1025 = vrot.lane.b32.xlu0 %v1009, 110
    %v1026 = vpop.permute.xlu0 %1025
    %v1041 = vunpack.c.l.b16 %v1010
    %v1042 = vunpack.c.l.b16 %v1011
    %v1043 = vunpack.c.l.b16 %v1012
    %v1044 = vunpack.c.l.b16 %v1013
    %v1045 = vunpack.c.l.b16 %v1014
    %v1046 = vunpack.c.l.b16 %v1015
    %v1047 = vunpack.c.l.b16 %v1016
    %v1048 = vunpack.c.l.b16 %v1017
    %v1049 = vunpack.c.l.b16 %v1018
    %v1050 = vunpack.c.l.b16 %v1019
    %v1051 = vunpack.c.l.b16 %v1020
    %v1052 = vunpack.c.l.b16 %v1021
    %v1053 = vunpack.c.l.b16 %v1022
    %v1054 = vunpack.c.l.b16 %v1023
    %v1055 = vpack.c.b16 %v1042, %v1041
    %v1056 = vpack.c.b16 %v1044, %v1043
    %v1057 = vpack.c.b16 %v1046, %v1045
    %v1058 = vpack.c.b16 %v1048, %v1047
    %v1059 = vpack.c.b16 %v1050, %v1049
    %v1060 = vpack.c.b16 %v1052, %v1051
    %v1061 = vpack.c.b16 %v1054, %v1053
    %vm1068 = vcmask 900096
    %v1070 = vsel %vm1068, %v1026, 0
    %vm1072 = vcmask 1046528
    %v1074 = vsel %vm1072, %v1061, 0
    %1076 = vmatprep.subr.bf16.mxu0 0
    %1077 = vmatpush1.bf16.msra.mxu0 0
    %1078 = vmatprep.subr.bf16.mxu0 0
    %1079 = vmatpush1.bf16.msra.mxu0 %v1074
    %1080 = vmatprep.subr.bf16.mxu0 0
    %1081 = vmatpush1.bf16.msra.mxu0 %v1060
    %1082 = vmatprep.subr.bf16.mxu0 0
    %1083 = vmatpush1.bf16.msra.mxu0 %v1059
    %1084 = vmatprep.subr.bf16.mxu0 0
    %1085 = vmatpush1.bf16.msra.mxu0 %v1058
    %1086 = vmatprep.subr.bf16.mxu0 0
    %1087 = vmatpush1.bf16.msra.mxu0 %v1057
    %1088 = vmatprep.subr.bf16.mxu0 0
    %1089 = vmatpush1.bf16.msra.mxu0 %v1056
    %1090 = vmatprep.subr.bf16.mxu0 0
    %1091 = vmatpush1.bf16.msra.mxu0 %v1055
    %1092 = vmatprep.subr.bf16.mxu0 0
    %1093 = vmatpush2.bf16.msra.mxu0 0
    %1094 = vmatprep.subr.bf16.mxu0 0
    %1095 = vmatpush2.bf16.msra.mxu0 0
    %1096 = vmatprep.subr.bf16.mxu0 0
    %1097 = vmatpush2.bf16.msra.mxu0 0
    %1098 = vmatprep.subr.bf16.mxu0 0
    %1099 = vmatpush2.bf16.msra.mxu0 0
    %1100 = vmatprep.subr.bf16.mxu0 0
    %1101 = vmatpush2.bf16.msra.mxu0 0
    %1102 = vmatprep.subr.bf16.mxu0 0
    %1103 = vmatpush2.bf16.msra.mxu0 0
    %1104 = vmatprep.subr.bf16.mxu0 0
    %1105 = vmatpush2.bf16.msra.mxu0 0
    %1106 = vmatprep.subr.bf16.mxu0 0
    %1107 = vmatpush2.bf16.msra.mxu0 0
    %1108 = vmatprep.mubr.bf16.mxu0 0
    %1109 = vmatmul.mubr.bf16.gmra.mxu0 %v1070
    %v1110 = vpop.f32.mrf.mxu0
    %v1111 = vadd.f32 0.0, %v1110
    %v1112 = vpop.f32.mrf.mxu0
    %v1113 = vpop.f32.mrf.mxu0
    %v1114 = vpop.f32.mrf.mxu0
    %1115 = vdwg.mxu0
    %v1116 = vpack.c.bf16 %v1111, %v1111
    %v1117 = vld [vmem:[#allocation15] sm:$0xf]
    %v1118 = vld [vmem:[#allocation15 + $0x4] sm:$0xf]
    %v1119 = vld [vmem:[#allocation15 + $0x8] sm:$0xf]
    %v1120 = vld [vmem:[#allocation15 + $0xc] sm:$0xf]
    %v1121 = vld [vmem:[#allocation15 + $0x10] sm:$0xf]
    %v1122 = vld [vmem:[#allocation15 + $0x14] sm:$0xf]
    %v1123 = vld [vmem:[#allocation15 + $0x18] sm:$0xf]
    %v1124 = vld [vmem:[#allocation15 + $0x1c] sm:$0xf]
    %v1125 = vld [vmem:[#allocation15 + $0x20] sm:$0xf]
    %v1126 = vld [vmem:[#allocation15 + $0x24] sm:$0xf]
    %v1127 = vld [vmem:[#allocation15 + $0x28] sm:$0xf]
    %v1128 = vld [vmem:[#allocation15 + $0x2c] sm:$0xf]
    %v1129 = vld [vmem:[#allocation15 + $0x30] sm:$0xf]
    %v1130 = vld [vmem:[#allocation15 + $0x34] sm:$0xf]
    %v1131 = vld [vmem:[#allocation15 + $0x38] sm:$0xf]
    %v1132 = vld [vmem:[#allocation15 + $0x3c] sm:$0xf]
    %v1149 = vunpack.c.l.b16 %v1117
    %v1150 = vunpack.c.l.b16 %v1118
    %v1151 = vunpack.c.l.b16 %v1119
    %v1152 = vunpack.c.l.b16 %v1120
    %v1153 = vunpack.c.l.b16 %v1121
    %v1154 = vunpack.c.l.b16 %v1122
    %v1155 = vunpack.c.l.b16 %v1123
    %v1156 = vunpack.c.l.b16 %v1124
    %v1157 = vunpack.c.l.b16 %v1125
    %v1158 = vunpack.c.l.b16 %v1126
    %v1159 = vunpack.c.l.b16 %v1127
    %v1160 = vunpack.c.l.b16 %v1128
    %v1161 = vunpack.c.l.b16 %v1129
    %v1162 = vunpack.c.l.b16 %v1130
    %v1163 = vunpack.c.l.b16 %v1131
    %v1164 = vunpack.c.l.b16 %v1132
    %v1165 = vpack.c.b16 %v1150, %v1149
    %v1166 = vpack.c.b16 %v1152, %v1151
    %v1167 = vpack.c.b16 %v1154, %v1153
    %v1168 = vpack.c.b16 %v1156, %v1155
    %v1169 = vpack.c.b16 %v1158, %v1157
    %v1170 = vpack.c.b16 %v1160, %v1159
    %v1171 = vpack.c.b16 %v1162, %v1161
    %v1172 = vpack.c.b16 %v1164, %v1163
    %vm1173 = vcmask 64512
    %v1175 = vsel %vm1173, %v1165, 0
    %v1178 = vsel %vm1173, %v1166, 0
    %v1181 = vsel %vm1173, %v1167, 0
    %v1184 = vsel %vm1173, %v1168, 0
    %v1187 = vsel %vm1173, %v1169, 0
    %v1190 = vsel %vm1173, %v1170, 0
    %v1193 = vsel %vm1173, %v1171, 0
    %v1196 = vsel %vm1173, %v1172, 0
    %vm1198 = vcmask 1043456
    %v1200 = vsel %vm1198, %v1116, 0
    %1202 = vmatprep.subr.bf16.mxu0 0
    %1203 = vmatpush1.bf16.msra.mxu0 0
    %1204 = vmatprep.subr.bf16.mxu0 0
    %1205 = vmatpush1.bf16.msra.mxu0 0
    %1206 = vmatprep.subr.bf16.mxu0 0
    %1207 = vmatpush1.bf16.msra.mxu0 0
    %1208 = vmatprep.subr.bf16.mxu0 0
    %1209 = vmatpush1.bf16.msra.mxu0 0
    %1210 = vmatprep.subr.bf16.mxu0 0
    %1211 = vmatpush1.bf16.msra.mxu0 0
    %1212 = vmatprep.subr.bf16.mxu0 0
    %1213 = vmatpush1.bf16.msra.mxu0 0
    %1214 = vmatprep.subr.bf16.mxu0 0
    %1215 = vmatpush1.bf16.msra.mxu0 0
    %1216 = vmatprep.subr.bf16.mxu0 0
    %1217 = vmatpush1.bf16.msra.mxu0 %v1200
    %1218 = vmatprep.subr.bf16.mxu0 0
    %1219 = vmatpush2.bf16.msra.mxu0 0
    %1220 = vmatprep.subr.bf16.mxu0 0
    %1221 = vmatpush2.bf16.msra.mxu0 0
    %1222 = vmatprep.subr.bf16.mxu0 0
    %1223 = vmatpush2.bf16.msra.mxu0 0
    %1224 = vmatprep.subr.bf16.mxu0 0
    %1225 = vmatpush2.bf16.msra.mxu0 0
    %1226 = vmatprep.subr.bf16.mxu0 0
    %1227 = vmatpush2.bf16.msra.mxu0 0
    %1228 = vmatprep.subr.bf16.mxu0 0
    %1229 = vmatpush2.bf16.msra.mxu0 0
    %1230 = vmatprep.subr.bf16.mxu0 0
    %1231 = vmatpush2.bf16.msra.mxu0 0
    %1232 = vmatprep.subr.bf16.mxu0 0
    %1233 = vmatpush2.bf16.msra.mxu0 0
    %1234 = vmatprep.mubr.bf16.mxu0 0
    %1235 = vmatmul.mubr.bf16.gmra.mxu0 %v1175
    %v1236 = vpop.f32.mrf.mxu0
    %v1237 = vadd.f32 0.0, %v1236
    %v1238 = vpop.f32.mrf.mxu0
    %v1239 = vpop.f32.mrf.mxu0
    %v1240 = vadd.f32 0.0, %v1239
    %v1241 = vpop.f32.mrf.mxu0
    %1242 = vmatprep.mubr.bf16.mxu0 0
    %1243 = vmatmul.mubr.bf16.gmra.mxu0 %v1178
    %v1244 = vpop.f32.mrf.mxu0
    %v1245 = vadd.f32 0.0, %v1244
    %v1246 = vpop.f32.mrf.mxu0
    %v1247 = vpop.f32.mrf.mxu0
    %v1248 = vadd.f32 0.0, %v1247
    %v1249 = vpop.f32.mrf.mxu0
    %1250 = vmatprep.mubr.bf16.mxu0 0
    %1251 = vmatmul.mubr.bf16.gmra.mxu0 %v1181
    %v1252 = vpop.f32.mrf.mxu0
    %v1253 = vadd.f32 0.0, %v1252
    %v1254 = vpop.f32.mrf.mxu0
    %v1255 = vpop.f32.mrf.mxu0
    %v1256 = vadd.f32 0.0, %v1255
    %v1257 = vpop.f32.mrf.mxu0
    %1258 = vmatprep.mubr.bf16.mxu0 0
    %1259 = vmatmul.mubr.bf16.gmra.mxu0 %v1184
    %v1260 = vpop.f32.mrf.mxu0
    %v1261 = vadd.f32 0.0, %v1260
    %v1262 = vpop.f32.mrf.mxu0
    %v1263 = vpop.f32.mrf.mxu0
    %v1264 = vadd.f32 0.0, %v1263
    %v1265 = vpop.f32.mrf.mxu0
    %1266 = vmatprep.mubr.bf16.mxu0 0
    %1267 = vmatmul.mubr.bf16.gmra.mxu0 %v1187
    %v1268 = vpop.f32.mrf.mxu0
    %v1269 = vadd.f32 0.0, %v1268
    %v1270 = vpop.f32.mrf.mxu0
    %v1271 = vpop.f32.mrf.mxu0
    %v1272 = vadd.f32 0.0, %v1271
    %v1273 = vpop.f32.mrf.mxu0
    %1274 = vmatprep.mubr.bf16.mxu0 0
    %1275 = vmatmul.mubr.bf16.gmra.mxu0 %v1190
    %v1276 = vpop.f32.mrf.mxu0
    %v1277 = vadd.f32 0.0, %v1276
    %v1278 = vpop.f32.mrf.mxu0
    %v1279 = vpop.f32.mrf.mxu0
    %v1280 = vadd.f32 0.0, %v1279
    %v1281 = vpop.f32.mrf.mxu0
    %1282 = vmatprep.mubr.bf16.mxu0 0
    %1283 = vmatmul.mubr.bf16.gmra.mxu0 %v1193
    %v1284 = vpop.f32.mrf.mxu0
    %v1285 = vadd.f32 0.0, %v1284
    %v1286 = vpop.f32.mrf.mxu0
    %v1287 = vpop.f32.mrf.mxu0
    %v1288 = vadd.f32 0.0, %v1287
    %v1289 = vpop.f32.mrf.mxu0
    %1290 = vmatprep.mubr.bf16.mxu0 0
    %1291 = vmatmul.mubr.bf16.gmra.mxu0 %v1196
    %v1292 = vpop.f32.mrf.mxu0
    %v1293 = vadd.f32 0.0, %v1292
    %v1294 = vpop.f32.mrf.mxu0
    %v1295 = vpop.f32.mrf.mxu0
    %v1296 = vadd.f32 0.0, %v1295
    %v1297 = vpop.f32.mrf.mxu0
    %1298 = vdwg.mxu0
    %1300 = vrot.lane.b32.xlu0 %v1264, 1
    %v1301 = vpop.permute.xlu0 %1300
    %v1303 = vadd.f32 %v1256, %v1301
    %1305 = vrot.lane.b32.xlu0 %v1288, 8
    %v1306 = vpop.permute.xlu0 %1305
    %v1308 = vadd.f32 %v1303, %v1306
    %1310 = vrot.lane.b32.xlu0 %v1296, 9
    %v1311 = vpop.permute.xlu0 %1310
    %v1313 = vadd.f32 %v1308, %v1311
    %1315 = vrot.lane.b32.xlu0 %v1261, 1
    %v1316 = vpop.permute.xlu0 %1315
    %v1318 = vadd.f32 %v1253, %v1316
    %1320 = vrot.lane.b32.xlu0 %v1285, 8
    %v1321 = vpop.permute.xlu0 %1320
    %v1323 = vadd.f32 %v1318, %v1321
    %1325 = vrot.lane.b32.xlu0 %v1293, 9
    %v1326 = vpop.permute.xlu0 %1325
    %v1328 = vadd.f32 %v1323, %v1326
    %1330 = vrot.lane.b32.xlu0 %v1248, 1
    %v1331 = vpop.permute.xlu0 %1330
    %v1333 = vadd.f32 %v1240, %v1331
    %1335 = vrot.lane.b32.xlu0 %v1272, 8
    %v1336 = vpop.permute.xlu0 %1335
    %v1338 = vadd.f32 %v1333, %v1336
    %1340 = vrot.lane.b32.xlu0 %v1280, 9
    %v1341 = vpop.permute.xlu0 %1340
    %v1343 = vadd.f32 %v1338, %v1341
    %1345 = vrot.lane.b32.xlu0 %v1245, 1
    %v1346 = vpop.permute.xlu0 %1345
    %v1348 = vadd.f32 %v1237, %v1346
    %1350 = vrot.lane.b32.xlu0 %v1269, 8
    %v1351 = vpop.permute.xlu0 %1350
    %v1353 = vadd.f32 %v1348, %v1351
    %1355 = vrot.lane.b32.xlu0 %v1277, 9
    %v1356 = vpop.permute.xlu0 %1355
    %v1358 = vadd.f32 %v1353, %v1356
    %v1359 = vld [vmem:[%s11] sm:$0xff]
    %1361 = vset.pattern.permute.xlu0 0
    %1362 = vperm.xlu0 %1361, %v1359
    %v1363 = vpop.permute.xlu0 %1362
    %v1365 = vadd.f32 %v1313, %v1363
    %v1366 = vmul.f32 %v1365, 0.2
    %v1367 = vmax.f32 %v1365, %v1366
    %v1368 = vadd.f32 %v1328, %v1363
    %v1369 = vmul.f32 %v1368, 0.2
    %v1370 = vmax.f32 %v1368, %v1369
    %v1371 = vadd.f32 %v1343, %v1363
    %v1372 = vmul.f32 %v1371, 0.2
    %v1373 = vmax.f32 %v1371, %v1372
    %v1374 = vadd.f32 %v1358, %v1363
    %v1375 = vmul.f32 %v1374, 0.2
    %v1376 = vmax.f32 %v1374, %v1375
    %v1377 = vpack.c.bf16 %v1367, %v1367
    %v1378 = vld [vmem:[#allocation16] sm:$0xff]
    %v1379 = vld [vmem:[#allocation16 + $0x8] sm:$0xff]
    %v1380 = vld [vmem:[#allocation16 + $0x10] sm:$0xff]
    %v1381 = vld [vmem:[#allocation16 + $0x18] sm:$0xff]
    %v1382 = vld [vmem:[#allocation16 + $0x20] sm:$0xff]
    %v1383 = vld [vmem:[#allocation16 + $0x28] sm:$0xff]
    %v1384 = vld [vmem:[#allocation16 + $0x30] sm:$0xff]
    %v1385 = vld [vmem:[#allocation16 + $0x38] sm:$0xff]
    %v1386 = vld [vmem:[#allocation16 + $0x40] sm:$0xff]
    %v1387 = vld [vmem:[#allocation16 + $0x48] sm:$0xff]
    %v1388 = vld [vmem:[#allocation16 + $0x50] sm:$0xff]
    %v1389 = vld [vmem:[#allocation16 + $0x58] sm:$0xff]
    %v1390 = vld [vmem:[#allocation16 + $0x60] sm:$0xff]
    %v1391 = vld [vmem:[#allocation16 + $0x68] sm:$0xff]
    %v1392 = vld [vmem:[#allocation16 + $0x70] sm:$0xff]
    %v1393 = vld [vmem:[#allocation16 + $0x78] sm:$0xff]
    %v1394 = vld [vmem:[#allocation16 + $0x80] sm:$0xff]
    %v1395 = vld [vmem:[#allocation16 + $0x88] sm:$0xff]
    %v1396 = vld [vmem:[#allocation16 + $0x90] sm:$0xff]
    %v1397 = vld [vmem:[#allocation16 + $0x98] sm:$0xff]
    %v1398 = vld [vmem:[#allocation16 + $0xa0] sm:$0xff]
    %v1399 = vld [vmem:[#allocation16 + $0xa8] sm:$0xff]
    %v1400 = vld [vmem:[#allocation16 + $0xb0] sm:$0xff]
    %v1401 = vld [vmem:[#allocation16 + $0xb8] sm:$0xff]
    %v1402 = vld [vmem:[#allocation16 + $0xc0] sm:$0xff]
    %v1403 = vld [vmem:[#allocation16 + $0xc8] sm:$0xff]
    %v1404 = vld [vmem:[#allocation16 + $0xd0] sm:$0x77]
    %v1405 = vld [vmem:[#allocation16 + $0xd8] sm:$0x77]
    %v1406 = vpack.c.bf16 %v1370, %v1370
    %s1407 = scalar_lea.vmem [#allocation16], 224
    %v1408 = vld [vmem:[%s1407] sm:$0xff]
    %v1409 = vld [vmem:[%s1407 + $0x8] sm:$0xff]
    %v1410 = vld [vmem:[%s1407 + $0x10] sm:$0xff]
    %v1411 = vld [vmem:[%s1407 + $0x18] sm:$0xff]
    %v1412 = vld [vmem:[%s1407 + $0x20] sm:$0xff]
    %v1413 = vld [vmem:[%s1407 + $0x28] sm:$0xff]
    %v1414 = vld [vmem:[%s1407 + $0x30] sm:$0xff]
    %v1415 = vld [vmem:[%s1407 + $0x38] sm:$0xff]
    %v1416 = vld [vmem:[%s1407 + $0x40] sm:$0xff]
    %v1417 = vld [vmem:[%s1407 + $0x48] sm:$0xff]
    %v1418 = vld [vmem:[%s1407 + $0x50] sm:$0xff]
    %v1419 = vld [vmem:[%s1407 + $0x58] sm:$0xff]
    %v1420 = vld [vmem:[%s1407 + $0x60] sm:$0xff]
    %v1421 = vld [vmem:[%s1407 + $0x68] sm:$0xff]
    %v1422 = vld [vmem:[%s1407 + $0x70] sm:$0xff]
    %v1423 = vld [vmem:[%s1407 + $0x78] sm:$0xff]
    %v1424 = vld [vmem:[%s1407 + $0x80] sm:$0xff]
    %v1425 = vld [vmem:[%s1407 + $0x88] sm:$0xff]
    %v1426 = vld [vmem:[%s1407 + $0x90] sm:$0xff]
    %v1427 = vld [vmem:[%s1407 + $0x98] sm:$0xff]
    %v1428 = vld [vmem:[%s1407 + $0xa0] sm:$0xff]
    %v1429 = vld [vmem:[%s1407 + $0xa8] sm:$0xff]
    %v1430 = vld [vmem:[%s1407 + $0xb0] sm:$0xff]
    %v1431 = vld [vmem:[%s1407 + $0xb8] sm:$0xff]
    %v1432 = vld [vmem:[%s1407 + $0xc0] sm:$0xff]
    %v1433 = vld [vmem:[%s1407 + $0xc8] sm:$0xff]
    %v1434 = vld [vmem:[%s1407 + $0xd0] sm:$0x77]
    %v1435 = vld [vmem:[%s1407 + $0xd8] sm:$0x77]
    %1437 = vrot.lane.b32.xlu0 %v1406, 118
    %v1438 = vpop.permute.xlu0 %1437
    %v1467 = vunpack.c.l.b16 %v1408
    %v1468 = vunpack.c.h.b16 %v1408
    %v1469 = vunpack.c.l.b16 %v1409
    %v1470 = vunpack.c.h.b16 %v1409
    %v1471 = vunpack.c.l.b16 %v1410
    %v1472 = vunpack.c.h.b16 %v1410
    %v1473 = vunpack.c.l.b16 %v1411
    %v1474 = vunpack.c.h.b16 %v1411
    %v1475 = vunpack.c.l.b16 %v1412
    %v1476 = vunpack.c.h.b16 %v1412
    %v1477 = vunpack.c.l.b16 %v1413
    %v1478 = vunpack.c.h.b16 %v1413
    %v1479 = vunpack.c.l.b16 %v1414
    %v1480 = vunpack.c.h.b16 %v1414
    %v1481 = vunpack.c.l.b16 %v1415
    %v1482 = vunpack.c.h.b16 %v1415
    %v1483 = vunpack.c.l.b16 %v1416
    %v1484 = vunpack.c.h.b16 %v1416
    %v1485 = vunpack.c.l.b16 %v1417
    %v1486 = vunpack.c.h.b16 %v1417
    %v1487 = vunpack.c.l.b16 %v1418
    %v1488 = vunpack.c.h.b16 %v1418
    %v1489 = vunpack.c.l.b16 %v1419
    %v1490 = vunpack.c.h.b16 %v1419
    %v1491 = vunpack.c.l.b16 %v1420
    %v1492 = vunpack.c.h.b16 %v1420
    %v1493 = vunpack.c.l.b16 %v1421
    %v1494 = vunpack.c.h.b16 %v1421
    %v1495 = vunpack.c.l.b16 %v1422
    %v1496 = vunpack.c.h.b16 %v1422
    %v1497 = vunpack.c.l.b16 %v1423
    %v1498 = vunpack.c.h.b16 %v1423
    %v1499 = vunpack.c.l.b16 %v1424
    %v1500 = vunpack.c.h.b16 %v1424
    %v1501 = vunpack.c.l.b16 %v1425
    %v1502 = vunpack.c.h.b16 %v1425
    %v1503 = vunpack.c.l.b16 %v1426
    %v1504 = vunpack.c.h.b16 %v1426
    %v1505 = vunpack.c.l.b16 %v1427
    %v1506 = vunpack.c.h.b16 %v1427
    %v1507 = vunpack.c.l.b16 %v1428
    %v1508 = vunpack.c.h.b16 %v1428
    %v1509 = vunpack.c.l.b16 %v1429
    %v1510 = vunpack.c.h.b16 %v1429
    %v1511 = vunpack.c.l.b16 %v1430
    %v1512 = vunpack.c.h.b16 %v1430
    %v1513 = vunpack.c.l.b16 %v1431
    %v1514 = vunpack.c.h.b16 %v1431
    %v1515 = vunpack.c.l.b16 %v1432
    %v1516 = vunpack.c.h.b16 %v1432
    %v1517 = vunpack.c.l.b16 %v1433
    %v1518 = vunpack.c.h.b16 %v1433
    %v1519 = vunpack.c.l.b16 %v1434
    %v1520 = vunpack.c.h.b16 %v1434
    %v1521 = vunpack.c.l.b16 %v1435
    %v1522 = vunpack.c.h.b16 %v1435
    %v1523 = vpack.c.b16 %v1471, %v1467
    %v1524 = vpack.c.b16 %v1472, %v1468
    %v1525 = vpack.c.b16 %v1473, %v1469
    %v1526 = vpack.c.b16 %v1474, %v1470
    %v1527 = vpack.c.b16 %v1479, %v1475
    %v1528 = vpack.c.b16 %v1480, %v1476
    %v1529 = vpack.c.b16 %v1481, %v1477
    %v1530 = vpack.c.b16 %v1482, %v1478
    %v1531 = vpack.c.b16 %v1487, %v1483
    %v1532 = vpack.c.b16 %v1488, %v1484
    %v1533 = vpack.c.b16 %v1489, %v1485
    %v1534 = vpack.c.b16 %v1490, %v1486
    %v1535 = vpack.c.b16 %v1495, %v1491
    %v1536 = vpack.c.b16 %v1496, %v1492
    %v1537 = vpack.c.b16 %v1497, %v1493
    %v1538 = vpack.c.b16 %v1498, %v1494
    %v1539 = vpack.c.b16 %v1503, %v1499
    %v1540 = vpack.c.b16 %v1504, %v1500
    %v1541 = vpack.c.b16 %v1505, %v1501
    %v1542 = vpack.c.b16 %v1506, %v1502
    %v1543 = vpack.c.b16 %v1511, %v1507
    %v1544 = vpack.c.b16 %v1512, %v1508
    %v1545 = vpack.c.b16 %v1513, %v1509
    %v1546 = vpack.c.b16 %v1514, %v1510
    %v1547 = vpack.c.b16 %v1519, %v1515
    %v1548 = vpack.c.b16 %v1520, %v1516
    %v1549 = vpack.c.b16 %v1521, %v1517
    %v1550 = vpack.c.b16 %v1522, %v1518
    %v1576 = vsel %vm1068, %v1438, 0
    %v1579 = vsel %vm1072, %v1547, 0
    %v1582 = vsel %vm1072, %v1548, 0
    %v1585 = vsel %vm1072, %v1549, 0
    %v1588 = vsel %vm1072, %v1550, 0
    %1590 = vmatprep.subr.bf16.mxu0 0
    %1591 = vmatpush1.bf16.msra.mxu0 0
    %1592 = vmatprep.subr.bf16.mxu0 %v1582
    %1593 = vmatpush1.bf16.msra.mxu0 %v1579
    %1594 = vmatprep.subr.bf16.mxu0 %v1544
    %1595 = vmatpush1.bf16.msra.mxu0 %v1543
    %1596 = vmatprep.subr.bf16.mxu0 %v1540
    %1597 = vmatpush1.bf16.msra.mxu0 %v1539
    %1598 = vmatprep.subr.bf16.mxu0 %v1536
    %1599 = vmatpush1.bf16.msra.mxu0 %v1535
    %1600 = vmatprep.subr.bf16.mxu0 %v1532
    %1601 = vmatpush1.bf16.msra.mxu0 %v1531
    %1602 = vmatprep.subr.bf16.mxu0 %v1528
    %1603 = vmatpush1.bf16.msra.mxu0 %v1527
    %1604 = vmatprep.subr.bf16.mxu0 %v1524
    %1605 = vmatpush1.bf16.msra.mxu0 %v1523
    %1606 = vmatprep.subr.bf16.mxu0 0
    %1607 = vmatpush2.bf16.msra.mxu0 0
    %1608 = vmatprep.subr.bf16.mxu0 0
    %1609 = vmatpush2.bf16.msra.mxu0 0
    %1610 = vmatprep.subr.bf16.mxu0 0
    %1611 = vmatpush2.bf16.msra.mxu0 0
    %1612 = vmatprep.subr.bf16.mxu0 0
    %1613 = vmatpush2.bf16.msra.mxu0 0
    %1614 = vmatprep.subr.bf16.mxu0 0
    %1615 = vmatpush2.bf16.msra.mxu0 0
    %1616 = vmatprep.subr.bf16.mxu0 0
    %1617 = vmatpush2.bf16.msra.mxu0 0
    %1618 = vmatprep.subr.bf16.mxu0 0
    %1619 = vmatpush2.bf16.msra.mxu0 0
    %1620 = vmatprep.subr.bf16.mxu0 0
    %1621 = vmatpush2.bf16.msra.mxu0 0
    %1622 = vmatprep.mubr.bf16.mxu0 0
    %1623 = vmatmul.mubr.bf16.gmra.mxu0 %v1576
    %v1624 = vpop.f32.mrf.mxu0
    %v1625 = vadd.f32 0.0, %v1624
    %v1626 = vpop.f32.mrf.mxu0
    %v1627 = vadd.f32 0.0, %v1626
    %v1628 = vpop.f32.mrf.mxu0
    %v1629 = vpop.f32.mrf.mxu0
    %1630 = vdwg.mxu0
    %1631 = vmatprep.subr.bf16.mxu0 0
    %1632 = vmatpush1.bf16.msra.mxu0 0
    %1633 = vmatprep.subr.bf16.mxu0 %v1588
    %1634 = vmatpush1.bf16.msra.mxu0 %v1585
    %1635 = vmatprep.subr.bf16.mxu0 %v1546
    %1636 = vmatpush1.bf16.msra.mxu0 %v1545
    %1637 = vmatprep.subr.bf16.mxu0 %v1542
    %1638 = vmatpush1.bf16.msra.mxu0 %v1541
    %1639 = vmatprep.subr.bf16.mxu0 %v1538
    %1640 = vmatpush1.bf16.msra.mxu0 %v1537
    %1641 = vmatprep.subr.bf16.mxu0 %v1534
    %1642 = vmatpush1.bf16.msra.mxu0 %v1533
    %1643 = vmatprep.subr.bf16.mxu0 %v1530
    %1644 = vmatpush1.bf16.msra.mxu0 %v1529
    %1645 = vmatprep.subr.bf16.mxu0 %v1526
    %1646 = vmatpush1.bf16.msra.mxu0 %v1525
    %1647 = vmatprep.subr.bf16.mxu0 0
    %1648 = vmatpush2.bf16.msra.mxu0 0
    %1649 = vmatprep.subr.bf16.mxu0 0
    %1650 = vmatpush2.bf16.msra.mxu0 0
    %1651 = vmatprep.subr.bf16.mxu0 0
    %1652 = vmatpush2.bf16.msra.mxu0 0
    %1653 = vmatprep.subr.bf16.mxu0 0
    %1654 = vmatpush2.bf16.msra.mxu0 0
    %1655 = vmatprep.subr.bf16.mxu0 0
    %1656 = vmatpush2.bf16.msra.mxu0 0
    %1657 = vmatprep.subr.bf16.mxu0 0
    %1658 = vmatpush2.bf16.msra.mxu0 0
    %1659 = vmatprep.subr.bf16.mxu0 0
    %1660 = vmatpush2.bf16.msra.mxu0 0
    %1661 = vmatprep.subr.bf16.mxu0 0
    %1662 = vmatpush2.bf16.msra.mxu0 0
    %1663 = vmatprep.mubr.bf16.mxu0 0
    %1664 = vmatmul.mubr.bf16.gmra.mxu0 %v1576
    %v1665 = vpop.f32.mrf.mxu0
    %v1666 = vadd.f32 0.0, %v1665
    %v1667 = vpop.f32.mrf.mxu0
    %v1668 = vadd.f32 0.0, %v1667
    %v1669 = vpop.f32.mrf.mxu0
    %v1670 = vpop.f32.mrf.mxu0
    %1671 = vdwg.mxu0
    %1673 = vrot.lane.b32.xlu0 %v1377, 119
    %v1674 = vpop.permute.xlu0 %1673
    %v1703 = vunpack.c.l.b16 %v1378
    %v1704 = vunpack.c.h.b16 %v1378
    %v1705 = vunpack.c.l.b16 %v1379
    %v1706 = vunpack.c.h.b16 %v1379
    %v1707 = vunpack.c.l.b16 %v1380
    %v1708 = vunpack.c.h.b16 %v1380
    %v1709 = vunpack.c.l.b16 %v1381
    %v1710 = vunpack.c.h.b16 %v1381
    %v1711 = vunpack.c.l.b16 %v1382
    %v1712 = vunpack.c.h.b16 %v1382
    %v1713 = vunpack.c.l.b16 %v1383
    %v1714 = vunpack.c.h.b16 %v1383
    %v1715 = vunpack.c.l.b16 %v1384
    %v1716 = vunpack.c.h.b16 %v1384
    %v1717 = vunpack.c.l.b16 %v1385
    %v1718 = vunpack.c.h.b16 %v1385
    %v1719 = vunpack.c.l.b16 %v1386
    %v1720 = vunpack.c.h.b16 %v1386
    %v1721 = vunpack.c.l.b16 %v1387
    %v1722 = vunpack.c.h.b16 %v1387
    %v1723 = vunpack.c.l.b16 %v1388
    %v1724 = vunpack.c.h.b16 %v1388
    %v1725 = vunpack.c.l.b16 %v1389
    %v1726 = vunpack.c.h.b16 %v1389
    %v1727 = vunpack.c.l.b16 %v1390
    %v1728 = vunpack.c.h.b16 %v1390
    %v1729 = vunpack.c.l.b16 %v1391
    %v1730 = vunpack.c.h.b16 %v1391
    %v1731 = vunpack.c.l.b16 %v1392
    %v1732 = vunpack.c.h.b16 %v1392
    %v1733 = vunpack.c.l.b16 %v1393
    %v1734 = vunpack.c.h.b16 %v1393
    %v1735 = vunpack.c.l.b16 %v1394
    %v1736 = vunpack.c.h.b16 %v1394
    %v1737 = vunpack.c.l.b16 %v1395
    %v1738 = vunpack.c.h.b16 %v1395
    %v1739 = vunpack.c.l.b16 %v1396
    %v1740 = vunpack.c.h.b16 %v1396
    %v1741 = vunpack.c.l.b16 %v1397
    %v1742 = vunpack.c.h.b16 %v1397
    %v1743 = vunpack.c.l.b16 %v1398
    %v1744 = vunpack.c.h.b16 %v1398
    %v1745 = vunpack.c.l.b16 %v1399
    %v1746 = vunpack.c.h.b16 %v1399
    %v1747 = vunpack.c.l.b16 %v1400
    %v1748 = vunpack.c.h.b16 %v1400
    %v1749 = vunpack.c.l.b16 %v1401
    %v1750 = vunpack.c.h.b16 %v1401
    %v1751 = vunpack.c.l.b16 %v1402
    %v1752 = vunpack.c.h.b16 %v1402
    %v1753 = vunpack.c.l.b16 %v1403
    %v1754 = vunpack.c.h.b16 %v1403
    %v1755 = vunpack.c.l.b16 %v1404
    %v1756 = vunpack.c.h.b16 %v1404
    %v1757 = vunpack.c.l.b16 %v1405
    %v1758 = vunpack.c.h.b16 %v1405
    %v1759 = vpack.c.b16 %v1707, %v1703
    %v1760 = vpack.c.b16 %v1708, %v1704
    %v1761 = vpack.c.b16 %v1709, %v1705
    %v1762 = vpack.c.b16 %v1710, %v1706
    %v1763 = vpack.c.b16 %v1715, %v1711
    %v1764 = vpack.c.b16 %v1716, %v1712
    %v1765 = vpack.c.b16 %v1717, %v1713
    %v1766 = vpack.c.b16 %v1718, %v1714
    %v1767 = vpack.c.b16 %v1723, %v1719
    %v1768 = vpack.c.b16 %v1724, %v1720
    %v1769 = vpack.c.b16 %v1725, %v1721
    %v1770 = vpack.c.b16 %v1726, %v1722
    %v1771 = vpack.c.b16 %v1731, %v1727
    %v1772 = vpack.c.b16 %v1732, %v1728
    %v1773 = vpack.c.b16 %v1733, %v1729
    %v1774 = vpack.c.b16 %v1734, %v1730
    %v1775 = vpack.c.b16 %v1739, %v1735
    %v1776 = vpack.c.b16 %v1740, %v1736
    %v1777 = vpack.c.b16 %v1741, %v1737
    %v1778 = vpack.c.b16 %v1742, %v1738
    %v1779 = vpack.c.b16 %v1747, %v1743
    %v1780 = vpack.c.b16 %v1748, %v1744
    %v1781 = vpack.c.b16 %v1749, %v1745
    %v1782 = vpack.c.b16 %v1750, %v1746
    %v1783 = vpack.c.b16 %v1755, %v1751
    %v1784 = vpack.c.b16 %v1756, %v1752
    %v1785 = vpack.c.b16 %v1757, %v1753
    %v1786 = vpack.c.b16 %v1758, %v1754
    %v1812 = vsel %vm1068, %v1674, 0
    %v1815 = vsel %vm1072, %v1783, 0
    %v1818 = vsel %vm1072, %v1784, 0
    %v1821 = vsel %vm1072, %v1785, 0
    %v1824 = vsel %vm1072, %v1786, 0
    %1826 = vmatprep.subr.bf16.mxu0 0
    %1827 = vmatpush1.bf16.msra.mxu0 0
    %1828 = vmatprep.subr.bf16.mxu0 %v1818
    %1829 = vmatpush1.bf16.msra.mxu0 %v1815
    %1830 = vmatprep.subr.bf16.mxu0 %v1780
    %1831 = vmatpush1.bf16.msra.mxu0 %v1779
    %1832 = vmatprep.subr.bf16.mxu0 %v1776
    %1833 = vmatpush1.bf16.msra.mxu0 %v1775
    %1834 = vmatprep.subr.bf16.mxu0 %v1772
    %1835 = vmatpush1.bf16.msra.mxu0 %v1771
    %1836 = vmatprep.subr.bf16.mxu0 %v1768
    %1837 = vmatpush1.bf16.msra.mxu0 %v1767
    %1838 = vmatprep.subr.bf16.mxu0 %v1764
    %1839 = vmatpush1.bf16.msra.mxu0 %v1763
    %1840 = vmatprep.subr.bf16.mxu0 %v1760
    %1841 = vmatpush1.bf16.msra.mxu0 %v1759
    %1842 = vmatprep.subr.bf16.mxu0 0
    %1843 = vmatpush2.bf16.msra.mxu0 0
    %1844 = vmatprep.subr.bf16.mxu0 0
    %1845 = vmatpush2.bf16.msra.mxu0 0
    %1846 = vmatprep.subr.bf16.mxu0 0
    %1847 = vmatpush2.bf16.msra.mxu0 0
    %1848 = vmatprep.subr.bf16.mxu0 0
    %1849 = vmatpush2.bf16.msra.mxu0 0
    %1850 = vmatprep.subr.bf16.mxu0 0
    %1851 = vmatpush2.bf16.msra.mxu0 0
    %1852 = vmatprep.subr.bf16.mxu0 0
    %1853 = vmatpush2.bf16.msra.mxu0 0
    %1854 = vmatprep.subr.bf16.mxu0 0
    %1855 = vmatpush2.bf16.msra.mxu0 0
    %1856 = vmatprep.subr.bf16.mxu0 0
    %1857 = vmatpush2.bf16.msra.mxu0 0
    %1858 = vmatprep.mubr.bf16.mxu0 0
    %1859 = vmatmul.mubr.bf16.gmra.mxu0 %v1812
    %v1860 = vpop.f32.mrf.mxu0
    %v1861 = vadd.f32 %v1625, %v1860
    %v1862 = vpop.f32.mrf.mxu0
    %v1863 = vadd.f32 %v1627, %v1862
    %v1864 = vpop.f32.mrf.mxu0
    %v1865 = vpop.f32.mrf.mxu0
    %1866 = vdwg.mxu0
    %1867 = vmatprep.subr.bf16.mxu0 0
    %1868 = vmatpush1.bf16.msra.mxu0 0
    %1869 = vmatprep.subr.bf16.mxu0 %v1824
    %1870 = vmatpush1.bf16.msra.mxu0 %v1821
    %1871 = vmatprep.subr.bf16.mxu0 %v1782
    %1872 = vmatpush1.bf16.msra.mxu0 %v1781
    %1873 = vmatprep.subr.bf16.mxu0 %v1778
    %1874 = vmatpush1.bf16.msra.mxu0 %v1777
    %1875 = vmatprep.subr.bf16.mxu0 %v1774
    %1876 = vmatpush1.bf16.msra.mxu0 %v1773
    %1877 = vmatprep.subr.bf16.mxu0 %v1770
    %1878 = vmatpush1.bf16.msra.mxu0 %v1769
    %1879 = vmatprep.subr.bf16.mxu0 %v1766
    %1880 = vmatpush1.bf16.msra.mxu0 %v1765
    %1881 = vmatprep.subr.bf16.mxu0 %v1762
    %1882 = vmatpush1.bf16.msra.mxu0 %v1761
    %1883 = vmatprep.subr.bf16.mxu0 0
    %1884 = vmatpush2.bf16.msra.mxu0 0
    %1885 = vmatprep.subr.bf16.mxu0 0
    %1886 = vmatpush2.bf16.msra.mxu0 0
    %1887 = vmatprep.subr.bf16.mxu0 0
    %1888 = vmatpush2.bf16.msra.mxu0 0
    %1889 = vmatprep.subr.bf16.mxu0 0
    %1890 = vmatpush2.bf16.msra.mxu0 0
    %1891 = vmatprep.subr.bf16.mxu0 0
    %1892 = vmatpush2.bf16.msra.mxu0 0
    %1893 = vmatprep.subr.bf16.mxu0 0
    %1894 = vmatpush2.bf16.msra.mxu0 0
    %1895 = vmatprep.subr.bf16.mxu0 0
    %1896 = vmatpush2.bf16.msra.mxu0 0
    %1897 = vmatprep.subr.bf16.mxu0 0
    %1898 = vmatpush2.bf16.msra.mxu0 0
    %1899 = vmatprep.mubr.bf16.mxu0 0
    %1900 = vmatmul.mubr.bf16.gmra.mxu0 %v1812
    %v1901 = vpop.f32.mrf.mxu0
    %v1902 = vadd.f32 %v1666, %v1901
    %v1903 = vpop.f32.mrf.mxu0
    %v1904 = vadd.f32 %v1668, %v1903
    %v1905 = vpop.f32.mrf.mxu0
    %v1906 = vpop.f32.mrf.mxu0
    %1907 = vdwg.mxu0
    %v1908 = vpack.c.bf16 %v1373, %v1373
    %s1909 = scalar_lea.vmem [#allocation16], 448
    %v1910 = vld [vmem:[%s1909] sm:$0xff]
    %v1911 = vld [vmem:[%s1909 + $0x8] sm:$0xff]
    %v1912 = vld [vmem:[%s1909 + $0x10] sm:$0xff]
    %v1913 = vld [vmem:[%s1909 + $0x18] sm:$0xff]
    %v1914 = vld [vmem:[%s1909 + $0x20] sm:$0xff]
    %v1915 = vld [vmem:[%s1909 + $0x28] sm:$0xff]
    %v1916 = vld [vmem:[%s1909 + $0x30] sm:$0xff]
    %v1917 = vld [vmem:[%s1909 + $0x38] sm:$0xff]
    %v1918 = vld [vmem:[%s1909 + $0x40] sm:$0xff]
    %v1919 = vld [vmem:[%s1909 + $0x48] sm:$0xff]
    %v1920 = vld [vmem:[%s1909 + $0x50] sm:$0xff]
    %v1921 = vld [vmem:[%s1909 + $0x58] sm:$0xff]
    %v1922 = vld [vmem:[%s1909 + $0x60] sm:$0xff]
    %v1923 = vld [vmem:[%s1909 + $0x68] sm:$0xff]
    %v1924 = vld [vmem:[%s1909 + $0x70] sm:$0xff]
    %v1925 = vld [vmem:[%s1909 + $0x78] sm:$0xff]
    %v1926 = vld [vmem:[%s1909 + $0x80] sm:$0xff]
    %v1927 = vld [vmem:[%s1909 + $0x88] sm:$0xff]
    %v1928 = vld [vmem:[%s1909 + $0x90] sm:$0xff]
    %v1929 = vld [vmem:[%s1909 + $0x98] sm:$0xff]
    %v1930 = vld [vmem:[%s1909 + $0xa0] sm:$0xff]
    %v1931 = vld [vmem:[%s1909 + $0xa8] sm:$0xff]
    %v1932 = vld [vmem:[%s1909 + $0xb0] sm:$0xff]
    %v1933 = vld [vmem:[%s1909 + $0xb8] sm:$0xff]
    %v1934 = vld [vmem:[%s1909 + $0xc0] sm:$0xff]
    %v1935 = vld [vmem:[%s1909 + $0xc8] sm:$0xff]
    %v1936 = vld [vmem:[%s1909 + $0xd0] sm:$0x77]
    %v1937 = vld [vmem:[%s1909 + $0xd8] sm:$0x77]
    %1939 = vrot.lane.b32.xlu0 %v1908, 111
    %v1940 = vpop.permute.xlu0 %1939
    %v1969 = vunpack.c.l.b16 %v1910
    %v1970 = vunpack.c.h.b16 %v1910
    %v1971 = vunpack.c.l.b16 %v1911
    %v1972 = vunpack.c.h.b16 %v1911
    %v1973 = vunpack.c.l.b16 %v1912
    %v1974 = vunpack.c.h.b16 %v1912
    %v1975 = vunpack.c.l.b16 %v1913
    %v1976 = vunpack.c.h.b16 %v1913
    %v1977 = vunpack.c.l.b16 %v1914
    %v1978 = vunpack.c.h.b16 %v1914
    %v1979 = vunpack.c.l.b16 %v1915
    %v1980 = vunpack.c.h.b16 %v1915
    %v1981 = vunpack.c.l.b16 %v1916
    %v1982 = vunpack.c.h.b16 %v1916
    %v1983 = vunpack.c.l.b16 %v1917
    %v1984 = vunpack.c.h.b16 %v1917
    %v1985 = vunpack.c.l.b16 %v1918
    %v1986 = vunpack.c.h.b16 %v1918
    %v1987 = vunpack.c.l.b16 %v1919
    %v1988 = vunpack.c.h.b16 %v1919
    %v1989 = vunpack.c.l.b16 %v1920
    %v1990 = vunpack.c.h.b16 %v1920
    %v1991 = vunpack.c.l.b16 %v1921
    %v1992 = vunpack.c.h.b16 %v1921
    %v1993 = vunpack.c.l.b16 %v1922
    %v1994 = vunpack.c.h.b16 %v1922
    %v1995 = vunpack.c.l.b16 %v1923
    %v1996 = vunpack.c.h.b16 %v1923
    %v1997 = vunpack.c.l.b16 %v1924
    %v1998 = vunpack.c.h.b16 %v1924
    %v1999 = vunpack.c.l.b16 %v1925
    %v2000 = vunpack.c.h.b16 %v1925
    %v2001 = vunpack.c.l.b16 %v1926
    %v2002 = vunpack.c.h.b16 %v1926
    %v2003 = vunpack.c.l.b16 %v1927
    %v2004 = vunpack.c.h.b16 %v1927
    %v2005 = vunpack.c.l.b16 %v1928
    %v2006 = vunpack.c.h.b16 %v1928
    %v2007 = vunpack.c.l.b16 %v1929
    %v2008 = vunpack.c.h.b16 %v1929
    %v2009 = vunpack.c.l.b16 %v1930
    %v2010 = vunpack.c.h.b16 %v1930
    %v2011 = vunpack.c.l.b16 %v1931
    %v2012 = vunpack.c.h.b16 %v1931
    %v2013 = vunpack.c.l.b16 %v1932
    %v2014 = vunpack.c.h.b16 %v1932
    %v2015 = vunpack.c.l.b16 %v1933
    %v2016 = vunpack.c.h.b16 %v1933
    %v2017 = vunpack.c.l.b16 %v1934
    %v2018 = vunpack.c.h.b16 %v1934
    %v2019 = vunpack.c.l.b16 %v1935
    %v2020 = vunpack.c.h.b16 %v1935
    %v2021 = vunpack.c.l.b16 %v1936
    %v2022 = vunpack.c.h.b16 %v1936
    %v2023 = vunpack.c.l.b16 %v1937
    %v2024 = vunpack.c.h.b16 %v1937
    %v2025 = vpack.c.b16 %v1973, %v1969
    %v2026 = vpack.c.b16 %v1974, %v1970
    %v2027 = vpack.c.b16 %v1975, %v1971
    %v2028 = vpack.c.b16 %v1976, %v1972
    %v2029 = vpack.c.b16 %v1981, %v1977
    %v2030 = vpack.c.b16 %v1982, %v1978
    %v2031 = vpack.c.b16 %v1983, %v1979
    %v2032 = vpack.c.b16 %v1984, %v1980
    %v2033 = vpack.c.b16 %v1989, %v1985
    %v2034 = vpack.c.b16 %v1990, %v1986
    %v2035 = vpack.c.b16 %v1991, %v1987
    %v2036 = vpack.c.b16 %v1992, %v1988
    %v2037 = vpack.c.b16 %v1997, %v1993
    %v2038 = vpack.c.b16 %v1998, %v1994
    %v2039 = vpack.c.b16 %v1999, %v1995
    %v2040 = vpack.c.b16 %v2000, %v1996
    %v2041 = vpack.c.b16 %v2005, %v2001
    %v2042 = vpack.c.b16 %v2006, %v2002
    %v2043 = vpack.c.b16 %v2007, %v2003
    %v2044 = vpack.c.b16 %v2008, %v2004
    %v2045 = vpack.c.b16 %v2013, %v2009
    %v2046 = vpack.c.b16 %v2014, %v2010
    %v2047 = vpack.c.b16 %v2015, %v2011
    %v2048 = vpack.c.b16 %v2016, %v2012
    %v2049 = vpack.c.b16 %v2021, %v2017
    %v2050 = vpack.c.b16 %v2022, %v2018
    %v2051 = vpack.c.b16 %v2023, %v2019
    %v2052 = vpack.c.b16 %v2024, %v2020
    %v2078 = vsel %vm1068, %v1940, 0
    %v2081 = vsel %vm1072, %v2049, 0
    %v2084 = vsel %vm1072, %v2050, 0
    %v2087 = vsel %vm1072, %v2051, 0
    %v2090 = vsel %vm1072, %v2052, 0
    %2092 = vmatprep.subr.bf16.mxu0 0
    %2093 = vmatpush1.bf16.msra.mxu0 0
    %2094 = vmatprep.subr.bf16.mxu0 %v2084
    %2095 = vmatpush1.bf16.msra.mxu0 %v2081
    %2096 = vmatprep.subr.bf16.mxu0 %v2046
    %2097 = vmatpush1.bf16.msra.mxu0 %v2045
    %2098 = vmatprep.subr.bf16.mxu0 %v2042
    %2099 = vmatpush1.bf16.msra.mxu0 %v2041
    %2100 = vmatprep.subr.bf16.mxu0 %v2038
    %2101 = vmatpush1.bf16.msra.mxu0 %v2037
    %2102 = vmatprep.subr.bf16.mxu0 %v2034
    %2103 = vmatpush1.bf16.msra.mxu0 %v2033
    %2104 = vmatprep.subr.bf16.mxu0 %v2030
    %2105 = vmatpush1.bf16.msra.mxu0 %v2029
    %2106 = vmatprep.subr.bf16.mxu0 %v2026
    %2107 = vmatpush1.bf16.msra.mxu0 %v2025
    %2108 = vmatprep.subr.bf16.mxu0 0
    %2109 = vmatpush2.bf16.msra.mxu0 0
    %2110 = vmatprep.subr.bf16.mxu0 0
    %2111 = vmatpush2.bf16.msra.mxu0 0
    %2112 = vmatprep.subr.bf16.mxu0 0
    %2113 = vmatpush2.bf16.msra.mxu0 0
    %2114 = vmatprep.subr.bf16.mxu0 0
    %2115 = vmatpush2.bf16.msra.mxu0 0
    %2116 = vmatprep.subr.bf16.mxu0 0
    %2117 = vmatpush2.bf16.msra.mxu0 0
    %2118 = vmatprep.subr.bf16.mxu0 0
    %2119 = vmatpush2.bf16.msra.mxu0 0
    %2120 = vmatprep.subr.bf16.mxu0 0
    %2121 = vmatpush2.bf16.msra.mxu0 0
    %2122 = vmatprep.subr.bf16.mxu0 0
    %2123 = vmatpush2.bf16.msra.mxu0 0
    %2124 = vmatprep.mubr.bf16.mxu0 0
    %2125 = vmatmul.mubr.bf16.gmra.mxu0 %v2078
    %v2126 = vpop.f32.mrf.mxu0
    %v2127 = vadd.f32 0.0, %v2126
    %v2128 = vpop.f32.mrf.mxu0
    %v2129 = vadd.f32 0.0, %v2128
    %v2130 = vpop.f32.mrf.mxu0
    %v2131 = vpop.f32.mrf.mxu0
    %2132 = vdwg.mxu0
    %2133 = vmatprep.subr.bf16.mxu0 0
    %2134 = vmatpush1.bf16.msra.mxu0 0
    %2135 = vmatprep.subr.bf16.mxu0 %v2090
    %2136 = vmatpush1.bf16.msra.mxu0 %v2087
    %2137 = vmatprep.subr.bf16.mxu0 %v2048
    %2138 = vmatpush1.bf16.msra.mxu0 %v2047
    %2139 = vmatprep.subr.bf16.mxu0 %v2044
    %2140 = vmatpush1.bf16.msra.mxu0 %v2043
    %2141 = vmatprep.subr.bf16.mxu0 %v2040
    %2142 = vmatpush1.bf16.msra.mxu0 %v2039
    %2143 = vmatprep.subr.bf16.mxu0 %v2036
    %2144 = vmatpush1.bf16.msra.mxu0 %v2035
    %2145 = vmatprep.subr.bf16.mxu0 %v2032
    %2146 = vmatpush1.bf16.msra.mxu0 %v2031
    %2147 = vmatprep.subr.bf16.mxu0 %v2028
    %2148 = vmatpush1.bf16.msra.mxu0 %v2027
    %2149 = vmatprep.subr.bf16.mxu0 0
    %2150 = vmatpush2.bf16.msra.mxu0 0
    %2151 = vmatprep.subr.bf16.mxu0 0
    %2152 = vmatpush2.bf16.msra.mxu0 0
    %2153 = vmatprep.subr.bf16.mxu0 0
    %2154 = vmatpush2.bf16.msra.mxu0 0
    %2155 = vmatprep.subr.bf16.mxu0 0
    %2156 = vmatpush2.bf16.msra.mxu0 0
    %2157 = vmatprep.subr.bf16.mxu0 0
    %2158 = vmatpush2.bf16.msra.mxu0 0
    %2159 = vmatprep.subr.bf16.mxu0 0
    %2160 = vmatpush2.bf16.msra.mxu0 0
    %2161 = vmatprep.subr.bf16.mxu0 0
    %2162 = vmatpush2.bf16.msra.mxu0 0
    %2163 = vmatprep.subr.bf16.mxu0 0
    %2164 = vmatpush2.bf16.msra.mxu0 0
    %2165 = vmatprep.mubr.bf16.mxu0 0
    %2166 = vmatmul.mubr.bf16.gmra.mxu0 %v2078
    %v2167 = vpop.f32.mrf.mxu0
    %v2168 = vadd.f32 0.0, %v2167
    %v2169 = vpop.f32.mrf.mxu0
    %v2170 = vadd.f32 0.0, %v2169
    %v2171 = vpop.f32.mrf.mxu0
    %v2172 = vpop.f32.mrf.mxu0
    %2173 = vdwg.mxu0
    %v2174 = vadd.f32 %v1861, %v2127
    %v2175 = vadd.f32 %v1863, %v2129
    %v2176 = vadd.f32 %v1902, %v2168
    %v2177 = vadd.f32 %v1904, %v2170
    %v2178 = vpack.c.bf16 %v1376, %v1376
    %s2179 = scalar_lea.vmem [#allocation16], 672
    %v2180 = vld [vmem:[%s2179] sm:$0xff]
    %v2181 = vld [vmem:[%s2179 + $0x8] sm:$0xff]
    %v2182 = vld [vmem:[%s2179 + $0x10] sm:$0xff]
    %v2183 = vld [vmem:[%s2179 + $0x18] sm:$0xff]
    %v2184 = vld [vmem:[%s2179 + $0x20] sm:$0xff]
    %v2185 = vld [vmem:[%s2179 + $0x28] sm:$0xff]
    %v2186 = vld [vmem:[%s2179 + $0x30] sm:$0xff]
    %v2187 = vld [vmem:[%s2179 + $0x38] sm:$0xff]
    %v2188 = vld [vmem:[%s2179 + $0x40] sm:$0xff]
    %v2189 = vld [vmem:[%s2179 + $0x48] sm:$0xff]
    %v2190 = vld [vmem:[%s2179 + $0x50] sm:$0xff]
    %v2191 = vld [vmem:[%s2179 + $0x58] sm:$0xff]
    %v2192 = vld [vmem:[%s2179 + $0x60] sm:$0xff]
    %v2193 = vld [vmem:[%s2179 + $0x68] sm:$0xff]
    %v2194 = vld [vmem:[%s2179 + $0x70] sm:$0xff]
    %v2195 = vld [vmem:[%s2179 + $0x78] sm:$0xff]
    %v2196 = vld [vmem:[%s2179 + $0x80] sm:$0xff]
    %v2197 = vld [vmem:[%s2179 + $0x88] sm:$0xff]
    %v2198 = vld [vmem:[%s2179 + $0x90] sm:$0xff]
    %v2199 = vld [vmem:[%s2179 + $0x98] sm:$0xff]
    %v2200 = vld [vmem:[%s2179 + $0xa0] sm:$0xff]
    %v2201 = vld [vmem:[%s2179 + $0xa8] sm:$0xff]
    %v2202 = vld [vmem:[%s2179 + $0xb0] sm:$0xff]
    %v2203 = vld [vmem:[%s2179 + $0xb8] sm:$0xff]
    %v2204 = vld [vmem:[%s2179 + $0xc0] sm:$0xff]
    %v2205 = vld [vmem:[%s2179 + $0xc8] sm:$0xff]
    %v2206 = vld [vmem:[%s2179 + $0xd0] sm:$0x77]
    %v2207 = vld [vmem:[%s2179 + $0xd8] sm:$0x77]
    %2209 = vrot.lane.b32.xlu0 %v2178, 110
    %v2210 = vpop.permute.xlu0 %2209
    %v2239 = vunpack.c.l.b16 %v2180
    %v2240 = vunpack.c.h.b16 %v2180
    %v2241 = vunpack.c.l.b16 %v2181
    %v2242 = vunpack.c.h.b16 %v2181
    %v2243 = vunpack.c.l.b16 %v2182
    %v2244 = vunpack.c.h.b16 %v2182
    %v2245 = vunpack.c.l.b16 %v2183
    %v2246 = vunpack.c.h.b16 %v2183
    %v2247 = vunpack.c.l.b16 %v2184
    %v2248 = vunpack.c.h.b16 %v2184
    %v2249 = vunpack.c.l.b16 %v2185
    %v2250 = vunpack.c.h.b16 %v2185
    %v2251 = vunpack.c.l.b16 %v2186
    %v2252 = vunpack.c.h.b16 %v2186
    %v2253 = vunpack.c.l.b16 %v2187
    %v2254 = vunpack.c.h.b16 %v2187
    %v2255 = vunpack.c.l.b16 %v2188
    %v2256 = vunpack.c.h.b16 %v2188
    %v2257 = vunpack.c.l.b16 %v2189
    %v2258 = vunpack.c.h.b16 %v2189
    %v2259 = vunpack.c.l.b16 %v2190
    %v2260 = vunpack.c.h.b16 %v2190
    %v2261 = vunpack.c.l.b16 %v2191
    %v2262 = vunpack.c.h.b16 %v2191
    %v2263 = vunpack.c.l.b16 %v2192
    %v2264 = vunpack.c.h.b16 %v2192
    %v2265 = vunpack.c.l.b16 %v2193
    %v2266 = vunpack.c.h.b16 %v2193
    %v2267 = vunpack.c.l.b16 %v2194
    %v2268 = vunpack.c.h.b16 %v2194
    %v2269 = vunpack.c.l.b16 %v2195
    %v2270 = vunpack.c.h.b16 %v2195
    %v2271 = vunpack.c.l.b16 %v2196
    %v2272 = vunpack.c.h.b16 %v2196
    %v2273 = vunpack.c.l.b16 %v2197
    %v2274 = vunpack.c.h.b16 %v2197
    %v2275 = vunpack.c.l.b16 %v2198
    %v2276 = vunpack.c.h.b16 %v2198
    %v2277 = vunpack.c.l.b16 %v2199
    %v2278 = vunpack.c.h.b16 %v2199
    %v2279 = vunpack.c.l.b16 %v2200
    %v2280 = vunpack.c.h.b16 %v2200
    %v2281 = vunpack.c.l.b16 %v2201
    %v2282 = vunpack.c.h.b16 %v2201
    %v2283 = vunpack.c.l.b16 %v2202
    %v2284 = vunpack.c.h.b16 %v2202
    %v2285 = vunpack.c.l.b16 %v2203
    %v2286 = vunpack.c.h.b16 %v2203
    %v2287 = vunpack.c.l.b16 %v2204
    %v2288 = vunpack.c.h.b16 %v2204
    %v2289 = vunpack.c.l.b16 %v2205
    %v2290 = vunpack.c.h.b16 %v2205
    %v2291 = vunpack.c.l.b16 %v2206
    %v2292 = vunpack.c.h.b16 %v2206
    %v2293 = vunpack.c.l.b16 %v2207
    %v2294 = vunpack.c.h.b16 %v2207
    %v2295 = vpack.c.b16 %v2243, %v2239
    %v2296 = vpack.c.b16 %v2244, %v2240
    %v2297 = vpack.c.b16 %v2245, %v2241
    %v2298 = vpack.c.b16 %v2246, %v2242
    %v2299 = vpack.c.b16 %v2251, %v2247
    %v2300 = vpack.c.b16 %v2252, %v2248
    %v2301 = vpack.c.b16 %v2253, %v2249
    %v2302 = vpack.c.b16 %v2254, %v2250
    %v2303 = vpack.c.b16 %v2259, %v2255
    %v2304 = vpack.c.b16 %v2260, %v2256
    %v2305 = vpack.c.b16 %v2261, %v2257
    %v2306 = vpack.c.b16 %v2262, %v2258
    %v2307 = vpack.c.b16 %v2267, %v2263
    %v2308 = vpack.c.b16 %v2268, %v2264
    %v2309 = vpack.c.b16 %v2269, %v2265
    %v2310 = vpack.c.b16 %v2270, %v2266
    %v2311 = vpack.c.b16 %v2275, %v2271
    %v2312 = vpack.c.b16 %v2276, %v2272
    %v2313 = vpack.c.b16 %v2277, %v2273
    %v2314 = vpack.c.b16 %v2278, %v2274
    %v2315 = vpack.c.b16 %v2283, %v2279
    %v2316 = vpack.c.b16 %v2284, %v2280
    %v2317 = vpack.c.b16 %v2285, %v2281
    %v2318 = vpack.c.b16 %v2286, %v2282
    %v2319 = vpack.c.b16 %v2291, %v2287
    %v2320 = vpack.c.b16 %v2292, %v2288
    %v2321 = vpack.c.b16 %v2293, %v2289
    %v2322 = vpack.c.b16 %v2294, %v2290
    %v2348 = vsel %vm1068, %v2210, 0
    %v2351 = vsel %vm1072, %v2319, 0
    %v2354 = vsel %vm1072, %v2320, 0
    %v2357 = vsel %vm1072, %v2321, 0
    %v2360 = vsel %vm1072, %v2322, 0
    %2362 = vmatprep.subr.bf16.mxu0 0
    %2363 = vmatpush1.bf16.msra.mxu0 0
    %2364 = vmatprep.subr.bf16.mxu0 %v2354
    %2365 = vmatpush1.bf16.msra.mxu0 %v2351
    %2366 = vmatprep.subr.bf16.mxu0 %v2316
    %2367 = vmatpush1.bf16.msra.mxu0 %v2315
    %2368 = vmatprep.subr.bf16.mxu0 %v2312
    %2369 = vmatpush1.bf16.msra.mxu0 %v2311
    %2370 = vmatprep.subr.bf16.mxu0 %v2308
    %2371 = vmatpush1.bf16.msra.mxu0 %v2307
    %2372 = vmatprep.subr.bf16.mxu0 %v2304
    %2373 = vmatpush1.bf16.msra.mxu0 %v2303
    %2374 = vmatprep.subr.bf16.mxu0 %v2300
    %2375 = vmatpush1.bf16.msra.mxu0 %v2299
    %2376 = vmatprep.subr.bf16.mxu0 %v2296
    %2377 = vmatpush1.bf16.msra.mxu0 %v2295
    %2378 = vmatprep.subr.bf16.mxu0 0
    %2379 = vmatpush2.bf16.msra.mxu0 0
    %2380 = vmatprep.subr.bf16.mxu0 0
    %2381 = vmatpush2.bf16.msra.mxu0 0
    %2382 = vmatprep.subr.bf16.mxu0 0
    %2383 = vmatpush2.bf16.msra.mxu0 0
    %2384 = vmatprep.subr.bf16.mxu0 0
    %2385 = vmatpush2.bf16.msra.mxu0 0
    %2386 = vmatprep.subr.bf16.mxu0 0
    %2387 = vmatpush2.bf16.msra.mxu0 0
    %2388 = vmatprep.subr.bf16.mxu0 0
    %2389 = vmatpush2.bf16.msra.mxu0 0
    %2390 = vmatprep.subr.bf16.mxu0 0
    %2391 = vmatpush2.bf16.msra.mxu0 0
    %2392 = vmatprep.subr.bf16.mxu0 0
    %2393 = vmatpush2.bf16.msra.mxu0 0
    %2394 = vmatprep.mubr.bf16.mxu0 0
    %2395 = vmatmul.mubr.bf16.gmra.mxu0 %v2348
    %v2396 = vpop.f32.mrf.mxu0
    %v2397 = vadd.f32 0.0, %v2396
    %v2398 = vpop.f32.mrf.mxu0
    %v2399 = vadd.f32 0.0, %v2398
    %v2400 = vpop.f32.mrf.mxu0
    %v2401 = vpop.f32.mrf.mxu0
    %2402 = vdwg.mxu0
    %2403 = vmatprep.subr.bf16.mxu0 0
    %2404 = vmatpush1.bf16.msra.mxu0 0
    %2405 = vmatprep.subr.bf16.mxu0 %v2360
    %2406 = vmatpush1.bf16.msra.mxu0 %v2357
    %2407 = vmatprep.subr.bf16.mxu0 %v2318
    %2408 = vmatpush1.bf16.msra.mxu0 %v2317
    %2409 = vmatprep.subr.bf16.mxu0 %v2314
    %2410 = vmatpush1.bf16.msra.mxu0 %v2313
    %2411 = vmatprep.subr.bf16.mxu0 %v2310
    %2412 = vmatpush1.bf16.msra.mxu0 %v2309
    %2413 = vmatprep.subr.bf16.mxu0 %v2306
    %2414 = vmatpush1.bf16.msra.mxu0 %v2305
    %2415 = vmatprep.subr.bf16.mxu0 %v2302
    %2416 = vmatpush1.bf16.msra.mxu0 %v2301
    %2417 = vmatprep.subr.bf16.mxu0 %v2298
    %2418 = vmatpush1.bf16.msra.mxu0 %v2297
    %2419 = vmatprep.subr.bf16.mxu0 0
    %2420 = vmatpush2.bf16.msra.mxu0 0
    %2421 = vmatprep.subr.bf16.mxu0 0
    %2422 = vmatpush2.bf16.msra.mxu0 0
    %2423 = vmatprep.subr.bf16.mxu0 0
    %2424 = vmatpush2.bf16.msra.mxu0 0
    %2425 = vmatprep.subr.bf16.mxu0 0
    %2426 = vmatpush2.bf16.msra.mxu0 0
    %2427 = vmatprep.subr.bf16.mxu0 0
    %2428 = vmatpush2.bf16.msra.mxu0 0
    %2429 = vmatprep.subr.bf16.mxu0 0
    %2430 = vmatpush2.bf16.msra.mxu0 0
    %2431 = vmatprep.subr.bf16.mxu0 0
    %2432 = vmatpush2.bf16.msra.mxu0 0
    %2433 = vmatprep.subr.bf16.mxu0 0
    %2434 = vmatpush2.bf16.msra.mxu0 0
    %2435 = vmatprep.mubr.bf16.mxu0 0
    %2436 = vmatmul.mubr.bf16.gmra.mxu0 %v2348
    %v2437 = vpop.f32.mrf.mxu0
    %v2438 = vadd.f32 0.0, %v2437
    %v2439 = vpop.f32.mrf.mxu0
    %v2440 = vadd.f32 0.0, %v2439
    %v2441 = vpop.f32.mrf.mxu0
    %v2442 = vpop.f32.mrf.mxu0
    %2443 = vdwg.mxu0
    %v2444 = vadd.f32 %v2174, %v2397
    %v2445 = vadd.f32 %v2175, %v2399
    %v2446 = vadd.f32 %v2176, %v2438
    %v2447 = vadd.f32 %v2177, %v2440
    %v2448 = vpack.c.bf16 %v2444, %v2444
    %v2449 = vpack.c.bf16 %v2445, %v2445
    %v2450 = vpack.c.bf16 %v2446, %v2446
    %v2451 = vpack.c.bf16 %v2447, %v2447
    %v2452 = vld [vmem:[#allocation18] sm:$0xf]
    %v2453 = vld [vmem:[#allocation18 + $0x4] sm:$0xf]
    %v2454 = vld [vmem:[#allocation18 + $0x8] sm:$0xf]
    %v2455 = vld [vmem:[#allocation18 + $0xc] sm:$0xf]
    %v2456 = vld [vmem:[#allocation18 + $0x10] sm:$0xf]
    %v2457 = vld [vmem:[#allocation18 + $0x14] sm:$0xf]
    %v2458 = vld [vmem:[#allocation18 + $0x18] sm:$0xf]
    %v2459 = vld [vmem:[#allocation18 + $0x1c] sm:$0xf]
    %v2460 = vld [vmem:[#allocation18 + $0x20] sm:$0xf]
    %v2461 = vld [vmem:[#allocation18 + $0x24] sm:$0xf]
    %v2462 = vld [vmem:[#allocation18 + $0x28] sm:$0xf]
    %v2463 = vld [vmem:[#allocation18 + $0x2c] sm:$0xf]
    %v2464 = vld [vmem:[#allocation18 + $0x30] sm:$0xf]
    %v2465 = vld [vmem:[#allocation18 + $0x34] sm:$0xf]
    %v2466 = vld [vmem:[#allocation18 + $0x38] sm:$0xf]
    %v2467 = vld [vmem:[#allocation18 + $0x3c] sm:$0xf]
    %v2484 = vunpack.c.l.b16 %v2452
    %v2485 = vunpack.c.l.b16 %v2453
    %v2486 = vunpack.c.l.b16 %v2454
    %v2487 = vunpack.c.l.b16 %v2455
    %v2488 = vunpack.c.l.b16 %v2456
    %v2489 = vunpack.c.l.b16 %v2457
    %v2490 = vunpack.c.l.b16 %v2458
    %v2491 = vunpack.c.l.b16 %v2459
    %v2492 = vunpack.c.l.b16 %v2460
    %v2493 = vunpack.c.l.b16 %v2461
    %v2494 = vunpack.c.l.b16 %v2462
    %v2495 = vunpack.c.l.b16 %v2463
    %v2496 = vunpack.c.l.b16 %v2464
    %v2497 = vunpack.c.l.b16 %v2465
    %v2498 = vunpack.c.l.b16 %v2466
    %v2499 = vunpack.c.l.b16 %v2467
    %v2500 = vpack.c.b16 %v2485, %v2484
    %v2501 = vpack.c.b16 %v2487, %v2486
    %v2502 = vpack.c.b16 %v2489, %v2488
    %v2503 = vpack.c.b16 %v2491, %v2490
    %v2504 = vpack.c.b16 %v2493, %v2492
    %v2505 = vpack.c.b16 %v2495, %v2494
    %v2506 = vpack.c.b16 %v2497, %v2496
    %v2507 = vpack.c.b16 %v2499, %v2498
    %v2509 = vsel %vm1173, %v2500, 0
    %v2512 = vsel %vm1173, %v2501, 0
    %v2515 = vsel %vm1173, %v2502, 0
    %v2518 = vsel %vm1173, %v2503, 0
    %v2521 = vsel %vm1173, %v2504, 0
    %v2524 = vsel %vm1173, %v2505, 0
    %v2527 = vsel %vm1173, %v2506, 0
    %v2530 = vsel %vm1173, %v2507, 0
    %v2533 = vsel %vm1198, %v2448, 0
    %v2536 = vsel %vm1198, %v2449, 0
    %v2539 = vsel %vm1198, %v2450, 0
    %v2542 = vsel %vm1198, %v2451, 0
    %2544 = vmatprep.subr.bf16.mxu0 0
    %2545 = vmatpush1.bf16.msra.mxu0 0
    %2546 = vmatprep.subr.bf16.mxu0 0
    %2547 = vmatpush1.bf16.msra.mxu0 0
    %2548 = vmatprep.subr.bf16.mxu0 0
    %2549 = vmatpush1.bf16.msra.mxu0 0
    %2550 = vmatprep.subr.bf16.mxu0 0
    %2551 = vmatpush1.bf16.msra.mxu0 0
    %2552 = vmatprep.subr.bf16.mxu0 0
    %2553 = vmatpush1.bf16.msra.mxu0 0
    %2554 = vmatprep.subr.bf16.mxu0 0
    %2555 = vmatpush1.bf16.msra.mxu0 0
    %2556 = vmatprep.subr.bf16.mxu0 0
    %2557 = vmatpush1.bf16.msra.mxu0 0
    %2558 = vmatprep.subr.bf16.mxu0 %v2536
    %2559 = vmatpush1.bf16.msra.mxu0 %v2533
    %2560 = vmatprep.subr.bf16.mxu0 0
    %2561 = vmatpush2.bf16.msra.mxu0 0
    %2562 = vmatprep.subr.bf16.mxu0 0
    %2563 = vmatpush2.bf16.msra.mxu0 0
    %2564 = vmatprep.subr.bf16.mxu0 0
    %2565 = vmatpush2.bf16.msra.mxu0 0
    %2566 = vmatprep.subr.bf16.mxu0 0
    %2567 = vmatpush2.bf16.msra.mxu0 0
    %2568 = vmatprep.subr.bf16.mxu0 0
    %2569 = vmatpush2.bf16.msra.mxu0 0
    %2570 = vmatprep.subr.bf16.mxu0 0
    %2571 = vmatpush2.bf16.msra.mxu0 0
    %2572 = vmatprep.subr.bf16.mxu0 0
    %2573 = vmatpush2.bf16.msra.mxu0 0
    %2574 = vmatprep.subr.bf16.mxu0 0
    %2575 = vmatpush2.bf16.msra.mxu0 0
    %2576 = vmatprep.mubr.bf16.mxu0 0
    %2577 = vmatmul.mubr.bf16.gmra.mxu0 %v2509
    %v2578 = vpop.f32.mrf.mxu0
    %v2579 = vadd.f32 0.0, %v2578
    %v2580 = vpop.f32.mrf.mxu0
    %v2581 = vadd.f32 0.0, %v2580
    %v2582 = vpop.f32.mrf.mxu0
    %v2583 = vadd.f32 0.0, %v2582
    %v2584 = vpop.f32.mrf.mxu0
    %v2585 = vadd.f32 0.0, %v2584
    %2586 = vmatprep.mubr.bf16.mxu0 0
    %2587 = vmatmul.mubr.bf16.gmra.mxu0 %v2512
    %v2588 = vpop.f32.mrf.mxu0
    %v2589 = vadd.f32 0.0, %v2588
    %v2590 = vpop.f32.mrf.mxu0
    %v2591 = vadd.f32 0.0, %v2590
    %v2592 = vpop.f32.mrf.mxu0
    %v2593 = vadd.f32 0.0, %v2592
    %v2594 = vpop.f32.mrf.mxu0
    %v2595 = vadd.f32 0.0, %v2594
    %2596 = vmatprep.mubr.bf16.mxu0 0
    %2597 = vmatmul.mubr.bf16.gmra.mxu0 %v2515
    %v2598 = vpop.f32.mrf.mxu0
    %v2599 = vadd.f32 0.0, %v2598
    %v2600 = vpop.f32.mrf.mxu0
    %v2601 = vadd.f32 0.0, %v2600
    %v2602 = vpop.f32.mrf.mxu0
    %v2603 = vadd.f32 0.0, %v2602
    %v2604 = vpop.f32.mrf.mxu0
    %v2605 = vadd.f32 0.0, %v2604
    %2606 = vmatprep.mubr.bf16.mxu0 0
    %2607 = vmatmul.mubr.bf16.gmra.mxu0 %v2518
    %v2608 = vpop.f32.mrf.mxu0
    %v2609 = vadd.f32 0.0, %v2608
    %v2610 = vpop.f32.mrf.mxu0
    %v2611 = vadd.f32 0.0, %v2610
    %v2612 = vpop.f32.mrf.mxu0
    %v2613 = vadd.f32 0.0, %v2612
    %v2614 = vpop.f32.mrf.mxu0
    %v2615 = vadd.f32 0.0, %v2614
    %2616 = vmatprep.mubr.bf16.mxu0 0
    %2617 = vmatmul.mubr.bf16.gmra.mxu0 %v2521
    %v2618 = vpop.f32.mrf.mxu0
    %v2619 = vadd.f32 0.0, %v2618
    %v2620 = vpop.f32.mrf.mxu0
    %v2621 = vadd.f32 0.0, %v2620
    %v2622 = vpop.f32.mrf.mxu0
    %v2623 = vadd.f32 0.0, %v2622
    %v2624 = vpop.f32.mrf.mxu0
    %v2625 = vadd.f32 0.0, %v2624
    %2626 = vmatprep.mubr.bf16.mxu0 0
    %2627 = vmatmul.mubr.bf16.gmra.mxu0 %v2524
    %v2628 = vpop.f32.mrf.mxu0
    %v2629 = vadd.f32 0.0, %v2628
    %v2630 = vpop.f32.mrf.mxu0
    %v2631 = vadd.f32 0.0, %v2630
    %v2632 = vpop.f32.mrf.mxu0
    %v2633 = vadd.f32 0.0, %v2632
    %v2634 = vpop.f32.mrf.mxu0
    %v2635 = vadd.f32 0.0, %v2634
    %2636 = vmatprep.mubr.bf16.mxu0 0
    %2637 = vmatmul.mubr.bf16.gmra.mxu0 %v2527
    %v2638 = vpop.f32.mrf.mxu0
    %v2639 = vadd.f32 0.0, %v2638
    %v2640 = vpop.f32.mrf.mxu0
    %v2641 = vadd.f32 0.0, %v2640
    %v2642 = vpop.f32.mrf.mxu0
    %v2643 = vadd.f32 0.0, %v2642
    %v2644 = vpop.f32.mrf.mxu0
    %v2645 = vadd.f32 0.0, %v2644
    %2646 = vmatprep.mubr.bf16.mxu0 0
    %2647 = vmatmul.mubr.bf16.gmra.mxu0 %v2530
    %v2648 = vpop.f32.mrf.mxu0
    %v2649 = vadd.f32 0.0, %v2648
    %v2650 = vpop.f32.mrf.mxu0
    %v2651 = vadd.f32 0.0, %v2650
    %v2652 = vpop.f32.mrf.mxu0
    %v2653 = vadd.f32 0.0, %v2652
    %v2654 = vpop.f32.mrf.mxu0
    %v2655 = vadd.f32 0.0, %v2654
    %2656 = vdwg.mxu0
    %2657 = vmatprep.subr.bf16.mxu0 0
    %2658 = vmatpush1.bf16.msra.mxu0 0
    %2659 = vmatprep.subr.bf16.mxu0 0
    %2660 = vmatpush1.bf16.msra.mxu0 0
    %2661 = vmatprep.subr.bf16.mxu0 0
    %2662 = vmatpush1.bf16.msra.mxu0 0
    %2663 = vmatprep.subr.bf16.mxu0 0
    %2664 = vmatpush1.bf16.msra.mxu0 0
    %2665 = vmatprep.subr.bf16.mxu0 0
    %2666 = vmatpush1.bf16.msra.mxu0 0
    %2667 = vmatprep.subr.bf16.mxu0 0
    %2668 = vmatpush1.bf16.msra.mxu0 0
    %2669 = vmatprep.subr.bf16.mxu0 0
    %2670 = vmatpush1.bf16.msra.mxu0 0
    %2671 = vmatprep.subr.bf16.mxu0 %v2542
    %2672 = vmatpush1.bf16.msra.mxu0 %v2539
    %2673 = vmatprep.subr.bf16.mxu0 0
    %2674 = vmatpush2.bf16.msra.mxu0 0
    %2675 = vmatprep.subr.bf16.mxu0 0
    %2676 = vmatpush2.bf16.msra.mxu0 0
    %2677 = vmatprep.subr.bf16.mxu0 0
    %2678 = vmatpush2.bf16.msra.mxu0 0
    %2679 = vmatprep.subr.bf16.mxu0 0
    %2680 = vmatpush2.bf16.msra.mxu0 0
    %2681 = vmatprep.subr.bf16.mxu0 0
    %2682 = vmatpush2.bf16.msra.mxu0 0
    %2683 = vmatprep.subr.bf16.mxu0 0
    %2684 = vmatpush2.bf16.msra.mxu0 0
    %2685 = vmatprep.subr.bf16.mxu0 0
    %2686 = vmatpush2.bf16.msra.mxu0 0
    %2687 = vmatprep.subr.bf16.mxu0 0
    %2688 = vmatpush2.bf16.msra.mxu0 0
    %2689 = vmatprep.mubr.bf16.mxu0 0
    %2690 = vmatmul.mubr.bf16.gmra.mxu0 %v2509
    %v2691 = vpop.f32.mrf.mxu0
    %v2692 = vadd.f32 0.0, %v2691
    %v2693 = vpop.f32.mrf.mxu0
    %v2694 = vadd.f32 0.0, %v2693
    %v2695 = vpop.f32.mrf.mxu0
    %v2696 = vadd.f32 0.0, %v2695
    %v2697 = vpop.f32.mrf.mxu0
    %v2698 = vadd.f32 0.0, %v2697
    %2699 = vmatprep.mubr.bf16.mxu0 0
    %2700 = vmatmul.mubr.bf16.gmra.mxu0 %v2512
    %v2701 = vpop.f32.mrf.mxu0
    %v2702 = vadd.f32 0.0, %v2701
    %v2703 = vpop.f32.mrf.mxu0
    %v2704 = vadd.f32 0.0, %v2703
    %v2705 = vpop.f32.mrf.mxu0
    %v2706 = vadd.f32 0.0, %v2705
    %v2707 = vpop.f32.mrf.mxu0
    %v2708 = vadd.f32 0.0, %v2707
    %2709 = vmatprep.mubr.bf16.mxu0 0
    %2710 = vmatmul.mubr.bf16.gmra.mxu0 %v2515
    %v2711 = vpop.f32.mrf.mxu0
    %v2712 = vadd.f32 0.0, %v2711
    %v2713 = vpop.f32.mrf.mxu0
    %v2714 = vadd.f32 0.0, %v2713
    %v2715 = vpop.f32.mrf.mxu0
    %v2716 = vadd.f32 0.0, %v2715
    %v2717 = vpop.f32.mrf.mxu0
    %v2718 = vadd.f32 0.0, %v2717
    %2719 = vmatprep.mubr.bf16.mxu0 0
    %2720 = vmatmul.mubr.bf16.gmra.mxu0 %v2518
    %v2721 = vpop.f32.mrf.mxu0
    %v2722 = vadd.f32 0.0, %v2721
    %v2723 = vpop.f32.mrf.mxu0
    %v2724 = vadd.f32 0.0, %v2723
    %v2725 = vpop.f32.mrf.mxu0
    %v2726 = vadd.f32 0.0, %v2725
    %v2727 = vpop.f32.mrf.mxu0
    %v2728 = vadd.f32 0.0, %v2727
    %2729 = vmatprep.mubr.bf16.mxu0 0
    %2730 = vmatmul.mubr.bf16.gmra.mxu0 %v2521
    %v2731 = vpop.f32.mrf.mxu0
    %v2732 = vadd.f32 0.0, %v2731
    %v2733 = vpop.f32.mrf.mxu0
    %v2734 = vadd.f32 0.0, %v2733
    %v2735 = vpop.f32.mrf.mxu0
    %v2736 = vadd.f32 0.0, %v2735
    %v2737 = vpop.f32.mrf.mxu0
    %v2738 = vadd.f32 0.0, %v2737
    %2739 = vmatprep.mubr.bf16.mxu0 0
    %2740 = vmatmul.mubr.bf16.gmra.mxu0 %v2524
    %v2741 = vpop.f32.mrf.mxu0
    %v2742 = vadd.f32 0.0, %v2741
    %v2743 = vpop.f32.mrf.mxu0
    %v2744 = vadd.f32 0.0, %v2743
    %v2745 = vpop.f32.mrf.mxu0
    %v2746 = vadd.f32 0.0, %v2745
    %v2747 = vpop.f32.mrf.mxu0
    %v2748 = vadd.f32 0.0, %v2747
    %2749 = vmatprep.mubr.bf16.mxu0 0
    %2750 = vmatmul.mubr.bf16.gmra.mxu0 %v2527
    %v2751 = vpop.f32.mrf.mxu0
    %v2752 = vadd.f32 0.0, %v2751
    %v2753 = vpop.f32.mrf.mxu0
    %v2754 = vadd.f32 0.0, %v2753
    %v2755 = vpop.f32.mrf.mxu0
    %v2756 = vadd.f32 0.0, %v2755
    %v2757 = vpop.f32.mrf.mxu0
    %v2758 = vadd.f32 0.0, %v2757
    %2759 = vmatprep.mubr.bf16.mxu0 0
    %2760 = vmatmul.mubr.bf16.gmra.mxu0 %v2530
    %v2761 = vpop.f32.mrf.mxu0
    %v2762 = vadd.f32 0.0, %v2761
    %v2763 = vpop.f32.mrf.mxu0
    %v2764 = vadd.f32 0.0, %v2763
    %v2765 = vpop.f32.mrf.mxu0
    %v2766 = vadd.f32 0.0, %v2765
    %v2767 = vpop.f32.mrf.mxu0
    %2768 = vdwg.mxu0
    %2773 = vrot.lane.b32.xlu0 %v2613, 1
    %v2774 = vpop.permute.xlu0 %2773
    %2775 = vrot.lane.b32.xlu0 %v2615, 1
    %v2776 = vpop.permute.xlu0 %2775
    %2777 = vrot.lane.b32.xlu0 %v2726, 1
    %v2778 = vpop.permute.xlu0 %2777
    %2779 = vrot.lane.b32.xlu0 %v2728, 1
    %v2780 = vpop.permute.xlu0 %2779
    %vm2781 = vcmask 7168
    %v2782 = vsel %vm2781, %v2774, %v2776
    %v2783 = vsel %vm2781, %v2776, %v2778
    %v2784 = vsel %vm2781, %v2778, %v2780
    %v2789 = vadd.f32 %v2603, %v2774
    %v2790 = vadd.f32 %v2605, %v2782
    %v2791 = vadd.f32 %v2716, %v2783
    %v2792 = vadd.f32 %v2718, %v2784
    %2797 = vrot.lane.b32.xlu0 %v2643, 14
    %v2798 = vpop.permute.xlu0 %2797
    %2799 = vrot.lane.b32.xlu0 %v2645, 14
    %v2800 = vpop.permute.xlu0 %2799
    %2801 = vrot.lane.b32.xlu0 %v2756, 14
    %v2802 = vpop.permute.xlu0 %2801
    %2803 = vrot.lane.b32.xlu0 %v2758, 14
    %v2804 = vpop.permute.xlu0 %2803
    %vm2805 = vcmask 113664
    %v2806 = vsel %vm2805, %v2798, %v2800
    %v2807 = vsel %vm2805, %v2800, %v2802
    %v2808 = vsel %vm2805, %v2802, %v2804
    %v2813 = vadd.f32 %v2789, %v2798
    %v2814 = vadd.f32 %v2790, %v2806
    %v2815 = vadd.f32 %v2791, %v2807
    %v2816 = vadd.f32 %v2792, %v2808
    %2820 = vrot.lane.b32.xlu0 %v2653, 15
    %v2821 = vpop.permute.xlu0 %2820
    %2822 = vrot.lane.b32.xlu0 %v2655, 15
    %v2823 = vpop.permute.xlu0 %2822
    %2824 = vrot.lane.b32.xlu0 %v2766, 15
    %v2825 = vpop.permute.xlu0 %2824
    %vm2826 = vcmask 121856
    %v2827 = vsel %vm2826, %v2821, %v2823
    %v2828 = vsel %vm2826, %v2823, %v2825
    %v2833 = vadd.f32 %v2813, %v2821
    %v2834 = vadd.f32 %v2814, %v2827
    %v2835 = vadd.f32 %v2815, %v2828
    %v2836 = vadd.f32 %v2816, %v2825
    %2841 = vrot.lane.b32.xlu0 %v2609, 1
    %v2842 = vpop.permute.xlu0 %2841
    %2843 = vrot.lane.b32.xlu0 %v2611, 1
    %v2844 = vpop.permute.xlu0 %2843
    %2845 = vrot.lane.b32.xlu0 %v2722, 1
    %v2846 = vpop.permute.xlu0 %2845
    %2847 = vrot.lane.b32.xlu0 %v2724, 1
    %v2848 = vpop.permute.xlu0 %2847
    %v2849 = vsel %vm2781, %v2842, %v2844
    %v2850 = vsel %vm2781, %v2844, %v2846
    %v2851 = vsel %vm2781, %v2846, %v2848
    %v2856 = vadd.f32 %v2599, %v2842
    %v2857 = vadd.f32 %v2601, %v2849
    %v2858 = vadd.f32 %v2712, %v2850
    %v2859 = vadd.f32 %v2714, %v2851
    %2864 = vrot.lane.b32.xlu0 %v2639, 14
    %v2865 = vpop.permute.xlu0 %2864
    %2866 = vrot.lane.b32.xlu0 %v2641, 14
    %v2867 = vpop.permute.xlu0 %2866
    %2868 = vrot.lane.b32.xlu0 %v2752, 14
    %v2869 = vpop.permute.xlu0 %2868
    %2870 = vrot.lane.b32.xlu0 %v2754, 14
    %v2871 = vpop.permute.xlu0 %2870
    %v2872 = vsel %vm2805, %v2865, %v2867
    %v2873 = vsel %vm2805, %v2867, %v2869
    %v2874 = vsel %vm2805, %v2869, %v2871
    %v2879 = vadd.f32 %v2856, %v2865
    %v2880 = vadd.f32 %v2857, %v2872
    %v2881 = vadd.f32 %v2858, %v2873
    %v2882 = vadd.f32 %v2859, %v2874
    %2887 = vrot.lane.b32.xlu0 %v2649, 15
    %v2888 = vpop.permute.xlu0 %2887
    %2889 = vrot.lane.b32.xlu0 %v2651, 15
    %v2890 = vpop.permute.xlu0 %2889
    %2891 = vrot.lane.b32.xlu0 %v2762, 15
    %v2892 = vpop.permute.xlu0 %2891
    %2893 = vrot.lane.b32.xlu0 %v2764, 15
    %v2894 = vpop.permute.xlu0 %2893
    %v2895 = vsel %vm2826, %v2888, %v2890
    %v2896 = vsel %vm2826, %v2890, %v2892
    %v2897 = vsel %vm2826, %v2892, %v2894
    %v2902 = vadd.f32 %v2879, %v2888
    %v2903 = vadd.f32 %v2880, %v2895
    %v2904 = vadd.f32 %v2881, %v2896
    %v2905 = vadd.f32 %v2882, %v2897
    %2910 = vrot.lane.b32.xlu0 %v2593, 1
    %v2911 = vpop.permute.xlu0 %2910
    %2912 = vrot.lane.b32.xlu0 %v2595, 1
    %v2913 = vpop.permute.xlu0 %2912
    %2914 = vrot.lane.b32.xlu0 %v2706, 1
    %v2915 = vpop.permute.xlu0 %2914
    %2916 = vrot.lane.b32.xlu0 %v2708, 1
    %v2917 = vpop.permute.xlu0 %2916
    %v2918 = vsel %vm2781, %v2911, %v2913
    %v2919 = vsel %vm2781, %v2913, %v2915
    %v2920 = vsel %vm2781, %v2915, %v2917
    %v2925 = vadd.f32 %v2583, %v2911
    %v2926 = vadd.f32 %v2585, %v2918
    %v2927 = vadd.f32 %v2696, %v2919
    %v2928 = vadd.f32 %v2698, %v2920
    %2933 = vrot.lane.b32.xlu0 %v2623, 14
    %v2934 = vpop.permute.xlu0 %2933
    %2935 = vrot.lane.b32.xlu0 %v2625, 14
    %v2936 = vpop.permute.xlu0 %2935
    %2937 = vrot.lane.b32.xlu0 %v2736, 14
    %v2938 = vpop.permute.xlu0 %2937
    %2939 = vrot.lane.b32.xlu0 %v2738, 14
    %v2940 = vpop.permute.xlu0 %2939
    %v2941 = vsel %vm2805, %v2934, %v2936
    %v2942 = vsel %vm2805, %v2936, %v2938
    %v2943 = vsel %vm2805, %v2938, %v2940
    %v2948 = vadd.f32 %v2925, %v2934
    %v2949 = vadd.f32 %v2926, %v2941
    %v2950 = vadd.f32 %v2927, %v2942
    %v2951 = vadd.f32 %v2928, %v2943
    %2956 = vrot.lane.b32.xlu0 %v2633, 15
    %v2957 = vpop.permute.xlu0 %2956
    %2958 = vrot.lane.b32.xlu0 %v2635, 15
    %v2959 = vpop.permute.xlu0 %2958
    %2960 = vrot.lane.b32.xlu0 %v2746, 15
    %v2961 = vpop.permute.xlu0 %2960
    %2962 = vrot.lane.b32.xlu0 %v2748, 15
    %v2963 = vpop.permute.xlu0 %2962
    %v2964 = vsel %vm2826, %v2957, %v2959
    %v2965 = vsel %vm2826, %v2959, %v2961
    %v2966 = vsel %vm2826, %v2961, %v2963
    %v2971 = vadd.f32 %v2948, %v2957
    %v2972 = vadd.f32 %v2949, %v2964
    %v2973 = vadd.f32 %v2950, %v2965
    %v2974 = vadd.f32 %v2951, %v2966
    %2979 = vrot.lane.b32.xlu0 %v2589, 1
    %v2980 = vpop.permute.xlu0 %2979
    %2981 = vrot.lane.b32.xlu0 %v2591, 1
    %v2982 = vpop.permute.xlu0 %2981
    %2983 = vrot.lane.b32.xlu0 %v2702, 1
    %v2984 = vpop.permute.xlu0 %2983
    %2985 = vrot.lane.b32.xlu0 %v2704, 1
    %v2986 = vpop.permute.xlu0 %2985
    %v2987 = vsel %vm2781, %v2980, %v2982
    %v2988 = vsel %vm2781, %v2982, %v2984
    %v2989 = vsel %vm2781, %v2984, %v2986
    %v2994 = vadd.f32 %v2579, %v2980
    %v2995 = vadd.f32 %v2581, %v2987
    %v2996 = vadd.f32 %v2692, %v2988
    %v2997 = vadd.f32 %v2694, %v2989
    %3002 = vrot.lane.b32.xlu0 %v2619, 14
    %v3003 = vpop.permute.xlu0 %3002
    %3004 = vrot.lane.b32.xlu0 %v2621, 14
    %v3005 = vpop.permute.xlu0 %3004
    %3006 = vrot.lane.b32.xlu0 %v2732, 14
    %v3007 = vpop.permute.xlu0 %3006
    %3008 = vrot.lane.b32.xlu0 %v2734, 14
    %v3009 = vpop.permute.xlu0 %3008
    %v3010 = vsel %vm2805, %v3003, %v3005
    %v3011 = vsel %vm2805, %v3005, %v3007
    %v3012 = vsel %vm2805, %v3007, %v3009
    %v3017 = vadd.f32 %v2994, %v3003
    %v3018 = vadd.f32 %v2995, %v3010
    %v3019 = vadd.f32 %v2996, %v3011
    %v3020 = vadd.f32 %v2997, %v3012
    %3025 = vrot.lane.b32.xlu0 %v2629, 15
    %v3026 = vpop.permute.xlu0 %3025
    %3027 = vrot.lane.b32.xlu0 %v2631, 15
    %v3028 = vpop.permute.xlu0 %3027
    %3029 = vrot.lane.b32.xlu0 %v2742, 15
    %v3030 = vpop.permute.xlu0 %3029
    %3031 = vrot.lane.b32.xlu0 %v2744, 15
    %v3032 = vpop.permute.xlu0 %3031
    %v3033 = vsel %vm2826, %v3026, %v3028
    %v3034 = vsel %vm2826, %v3028, %v3030
    %v3035 = vsel %vm2826, %v3030, %v3032
    %v3040 = vadd.f32 %v3017, %v3026
    %v3041 = vadd.f32 %v3018, %v3033
    %v3042 = vadd.f32 %v3019, %v3034
    %v3043 = vadd.f32 %v3020, %v3035
    %v3044 = vld [vmem:[%s14] sm:$0xff]
    %3046 = vset.pattern.permute.xlu0 0
    %3047 = vperm.xlu0 %3046, %v3044
    %v3048 = vpop.permute.xlu0 %3047
    %v3050 = vadd.f32 %v2833, %v3048
    %v3051 = vadd.f32 %v2834, %v3048
    %v3052 = vadd.f32 %v2835, %v3048
    %v3053 = vadd.f32 %v2836, %v3048
    %v3054 = vsub.f32 0.0, %v3050
    %v3055 = vsub.f32 0.0, %v3051
    %v3056 = vsub.f32 0.0, %v3052
    %v3057 = vsub.f32 0.0, %v3053
    %v3058 = vmul.f32 %v3054, 1.442695
    %v3059 = vpow.pop %v3058
    %v3060 = vmul.f32 %v3055, 1.442695
    %v3061 = vpow.pop %v3060
    %v3062 = vmul.f32 %v3056, 1.442695
    %v3063 = vpow.pop %v3062
    %v3064 = vmul.f32 %v3057, 1.442695
    %v3065 = vpow.pop %v3064
    %v3066 = vadd.f32 %v3059, 1.0
    %v3067 = vadd.f32 %v3061, 1.0
    %v3068 = vadd.f32 %v3063, 1.0
    %v3069 = vadd.f32 %v3065, 1.0
    %v3070 = vrcp.pop %v3066
    %v3071 = vrcp.pop %v3067
    %v3072 = vrcp.pop %v3068
    %v3073 = vrcp.pop %v3069
    %v3074 = vmin.f32 %v3070, 1.0
    %v3075 = vmin.f32 %v3071, 1.0
    %v3076 = vmin.f32 %v3072, 1.0
    %v3077 = vmin.f32 %v3073, 1.0
    %3082 = vrot.lane.b32.xlu0 %v3074, 113
    %v3083 = vpop.permute.xlu0 %3082
    %3084 = vrot.lane.b32.xlu0 %v3075, 113
    %v3085 = vpop.permute.xlu0 %3084
    %3086 = vrot.lane.b32.xlu0 %v3076, 113
    %v3087 = vpop.permute.xlu0 %3086
    %3088 = vrot.lane.b32.xlu0 %v3077, 113
    %v3089 = vpop.permute.xlu0 %3088
    %vm3090 = vcmask 924672
    %v3091 = vsel %vm3090, %v3083, %v3085
    %v3092 = vsel %vm3090, %v3085, %v3087
    %v3093 = vsel %vm3090, %v3087, %v3089
    %3097 = vst [vmem:[%s15] sm:$0xff] %v3091
    %3098 = vst [vmem:[%s15 + $0x8] sm:$0xff] %v3092
    %3099 = vst [vmem:[%s15 + $0x10] sm:$0xff] %v3093
    %v3100 = vld [vmem:[%s14] sm:$0xff]
    %3102 = vset.pattern.permute.xlu0 0
    %3103 = vperm.xlu0 %3102, %v3100
    %v3104 = vpop.permute.xlu0 %3103
    %v3106 = vadd.f32 %v2902, %v3104
    %v3107 = vadd.f32 %v2903, %v3104
    %v3108 = vadd.f32 %v2904, %v3104
    %v3109 = vadd.f32 %v2905, %v3104
    %v3110 = vsub.f32 0.0, %v3106
    %v3111 = vsub.f32 0.0, %v3107
    %v3112 = vsub.f32 0.0, %v3108
    %v3113 = vsub.f32 0.0, %v3109
    %v3114 = vmul.f32 %v3110, 1.442695
    %v3115 = vpow.pop %v3114
    %v3116 = vmul.f32 %v3111, 1.442695
    %v3117 = vpow.pop %v3116
    %v3118 = vmul.f32 %v3112, 1.442695
    %v3119 = vpow.pop %v3118
    %v3120 = vmul.f32 %v3113, 1.442695
    %v3121 = vpow.pop %v3120
    %v3122 = vadd.f32 %v3115, 1.0
    %v3123 = vadd.f32 %v3117, 1.0
    %v3124 = vadd.f32 %v3119, 1.0
    %v3125 = vadd.f32 %v3121, 1.0
    %v3126 = vrcp.pop %v3122
    %v3127 = vrcp.pop %v3123
    %v3128 = vrcp.pop %v3124
    %v3129 = vrcp.pop %v3125
    %v3130 = vmin.f32 %v3126, 1.0
    %v3131 = vmin.f32 %v3127, 1.0
    %v3132 = vmin.f32 %v3128, 1.0
    %v3133 = vmin.f32 %v3129, 1.0
    %3138 = vrot.lane.b32.xlu0 %v3130, 112
    %v3139 = vpop.permute.xlu0 %3138
    %3140 = vrot.lane.b32.xlu0 %v3131, 112
    %v3141 = vpop.permute.xlu0 %3140
    %3142 = vrot.lane.b32.xlu0 %v3132, 112
    %v3143 = vpop.permute.xlu0 %3142
    %3144 = vrot.lane.b32.xlu0 %v3133, 112
    %v3145 = vpop.permute.xlu0 %3144
    %vm3146 = vcmask 916480
    %v3147 = vsel %vm3146, %v3139, %v3141
    %v3148 = vsel %vm3146, %v3141, %v3143
    %v3149 = vsel %vm3146, %v3143, %v3145
    %s3153 = scalar_lea.vmem %s15, 24
    %3154 = vst [vmem:[%s3153] sm:$0xff] %v3147
    %3155 = vst [vmem:[%s3153 + $0x8] sm:$0xff] %v3148
    %3156 = vst [vmem:[%s3153 + $0x10] sm:$0xff] %v3149
    %v3157 = vld [vmem:[%s14] sm:$0xff]
    %3159 = vset.pattern.permute.xlu0 0
    %3160 = vperm.xlu0 %3159, %v3157
    %v3161 = vpop.permute.xlu0 %3160
    %v3163 = vadd.f32 %v2971, %v3161
    %v3164 = vadd.f32 %v2972, %v3161
    %v3165 = vadd.f32 %v2973, %v3161
    %v3166 = vadd.f32 %v2974, %v3161
    %v3167 = vsub.f32 0.0, %v3163
    %v3168 = vsub.f32 0.0, %v3164
    %v3169 = vsub.f32 0.0, %v3165
    %v3170 = vsub.f32 0.0, %v3166
    %v3171 = vmul.f32 %v3167, 1.442695
    %v3172 = vpow.pop %v3171
    %v3173 = vmul.f32 %v3168, 1.442695
    %v3174 = vpow.pop %v3173
    %v3175 = vmul.f32 %v3169, 1.442695
    %v3176 = vpow.pop %v3175
    %v3177 = vmul.f32 %v3170, 1.442695
    %v3178 = vpow.pop %v3177
    %v3179 = vadd.f32 %v3172, 1.0
    %v3180 = vadd.f32 %v3174, 1.0
    %v3181 = vadd.f32 %v3176, 1.0
    %v3182 = vadd.f32 %v3178, 1.0
    %v3183 = vrcp.pop %v3179
    %v3184 = vrcp.pop %v3180
    %v3185 = vrcp.pop %v3181
    %v3186 = vrcp.pop %v3182
    %v3187 = vmin.f32 %v3183, 1.0
    %v3188 = vmin.f32 %v3184, 1.0
    %v3189 = vmin.f32 %v3185, 1.0
    %v3190 = vmin.f32 %v3186, 1.0
    %3195 = vrot.lane.b32.xlu0 %v3187, 99
    %v3196 = vpop.permute.xlu0 %3195
    %3197 = vrot.lane.b32.xlu0 %v3188, 99
    %v3198 = vpop.permute.xlu0 %3197
    %3199 = vrot.lane.b32.xlu0 %v3189, 99
    %v3200 = vpop.permute.xlu0 %3199
    %3201 = vrot.lane.b32.xlu0 %v3190, 99
    %v3202 = vpop.permute.xlu0 %3201
    %vm3203 = vcmask 809984
    %v3204 = vsel %vm3203, %v3196, %v3198
    %v3205 = vsel %vm3203, %v3198, %v3200
    %v3206 = vsel %vm3203, %v3200, %v3202
    %s3210 = scalar_lea.vmem %s15, 48
    %3211 = vst [vmem:[%s3210] sm:$0xff] %v3204
    %3212 = vst [vmem:[%s3210 + $0x8] sm:$0xff] %v3205
    %3213 = vst [vmem:[%s3210 + $0x10] sm:$0xff] %v3206
    %v3214 = vld [vmem:[%s14] sm:$0xff]
    %3216 = vset.pattern.permute.xlu0 0
    %3217 = vperm.xlu0 %3216, %v3214
    %v3218 = vpop.permute.xlu0 %3217
    %v3220 = vadd.f32 %v3040, %v3218
    %v3221 = vadd.f32 %v3041, %v3218
    %v3222 = vadd.f32 %v3042, %v3218
    %v3223 = vadd.f32 %v3043, %v3218
    %v3224 = vsub.f32 0.0, %v3220
    %v3225 = vsub.f32 0.0, %v3221
    %v3226 = vsub.f32 0.0, %v3222
    %v3227 = vsub.f32 0.0, %v3223
    %v3228 = vmul.f32 %v3224, 1.442695
    %v3229 = vpow.pop %v3228
    %v3230 = vmul.f32 %v3225, 1.442695
    %v3231 = vpow.pop %v3230
    %v3232 = vmul.f32 %v3226, 1.442695
    %v3233 = vpow.pop %v3232
    %v3234 = vmul.f32 %v3227, 1.442695
    %v3235 = vpow.pop %v3234
    %v3236 = vadd.f32 %v3229, 1.0
    %v3237 = vadd.f32 %v3231, 1.0
    %v3238 = vadd.f32 %v3233, 1.0
    %v3239 = vadd.f32 %v3235, 1.0
    %v3240 = vrcp.pop %v3236
    %v3241 = vrcp.pop %v3237
    %v3242 = vrcp.pop %v3238
    %v3243 = vrcp.pop %v3239
    %v3244 = vmin.f32 %v3240, 1.0
    %v3245 = vmin.f32 %v3241, 1.0
    %v3246 = vmin.f32 %v3242, 1.0
    %v3247 = vmin.f32 %v3243, 1.0
    %3252 = vrot.lane.b32.xlu0 %v3244, 98
    %v3253 = vpop.permute.xlu0 %3252
    %3254 = vrot.lane.b32.xlu0 %v3245, 98
    %v3255 = vpop.permute.xlu0 %3254
    %3256 = vrot.lane.b32.xlu0 %v3246, 98
    %v3257 = vpop.permute.xlu0 %3256
    %3258 = vrot.lane.b32.xlu0 %v3247, 98
    %v3259 = vpop.permute.xlu0 %3258
    %vm3260 = vcmask 801792
    %v3261 = vsel %vm3260, %v3253, %v3255
    %v3262 = vsel %vm3260, %v3255, %v3257
    %v3263 = vsel %vm3260, %v3257, %v3259
    %s3267 = scalar_lea.vmem %s15, 72
    %3268 = vst [vmem:[%s3267] sm:$0xff] %v3261
    %3269 = vst [vmem:[%s3267 + $0x8] sm:$0xff] %v3262
    %3270 = vst [vmem:[%s3267 + $0x10] sm:$0xff] %v3263
    // Predicated region
    $region106: #{forward.1} parent=1 // pred_check
      _
    $region107: #{forward.1} parent=1 // pred_check_branch
      %3272 = sbr.rel (0) target = $region109
    $region108: #{forward.1} parent=1 // pred_region
      _
    $region109: #{forward.1} parent=1 // pred_fallthru
      _
    // Predicated region
    $region110: #{forward.1} parent=1 // pred_check
      _
    $region111: #{forward.1} parent=1 // pred_check_branch
      %3274 = sbr.rel (0) target = $region113
    $region112: #{forward.1} parent=1 // pred_region
      _
    $region113: #{forward.1} parent=1 // pred_fallthru
      _
    %3275 = vsyncpa [#allocation3], 1
    %3276 = vsyncpa [#allocation5], 1
    %3277 = vsyncpa [#allocation8], 1
    %3278 = vsyncpa [#allocation11], 1
    %3279 = vsyncpa [#allocation14], 1
    %3280 = vsyncpa [#allocation17], 1

</llo_original>
